<compile_context>
chip_gen: v6e
topology: v6e:2x2x1
jax: 0.10.0
libtpu: 0.0.40
codegen_flags: <defaults>
</compile_context>

<pallas_src>
import math

import jax
import jax.numpy as jnp
from jax.experimental import pallas as pl
from jax.experimental.pallas import tpu as pltpu

CONV_HIDDEN = 64
FFNN_HIDDEN = 126
NUM_CLASSES = 8
IN_CHANNELS = 44
BN_EPS = 1e-5
PAD_MAX = 5        # largest reflect pad (k=11 -> pad 5)
TARGET_M = 128     # target BT*L rows per grid step (v5e MXU height; slab adds more)


def _rev_rows(v):
    """Reverse the (small, static) leading axis of a value via slice + concat."""
    p = v.shape[0]
    if p <= 1:
        return v
    return jnp.concatenate([v[i:i + 1, :] for i in range(p - 1, -1, -1)], axis=0)


# ----------------------------------------------------------------------------
# Fused kernel: conv0 -> conv3 -> conv2 -> conv1 -> FC -> softmax for BT batch
# elements per grid step.  All intermediates stay in VMEM / vregs.
# ----------------------------------------------------------------------------
def make_fused_kernel(BT, L):
    Lpm = L + 2 * PAD_MAX            # per-batch slot length in the padded slab
    M = BT * Lpm - 2 * PAD_MAX       # rows carried through convs / FC
    # Layout: batch b, position j  ->  activation row  b*Lpm + j
    #                              ->  padded-slab row PAD_MAX + b*Lpm + j
    # Rows between batches are junk (computed, never read for valid outputs).

    def kernel(x_ref,
               w0, b0, s0, t0,
               w3, b3, s3, t3,
               w2, b2, s2, t2,
               w1, b1, s1, t1,
               fw1, fb1, fw2, fb2,
               o_ref, xp_scr):

        def fill_slab(h16, p, src_stride):
            """Write h16 plus per-batch reflect rows into the bf16 padded slab."""
            cin = h16.shape[1]
            if src_stride == Lpm:                       # already in slab coords
                xp_scr[PAD_MAX:PAD_MAX + M, 0:cin] = h16          # one dense store
            else:                                       # compact (BT*L, cin) source
                for b in range(BT):
                    xp_scr[PAD_MAX + b * Lpm:PAD_MAX + b * Lpm + L, 0:cin] = \
                        h16[b * L:(b + 1) * L, :]
            for b in range(BT):
                base = PAD_MAX + b * Lpm
                hb = b * src_stride
                # left pad rows:  x[p], x[p-1], ..., x[1]
                left = _rev_rows(h16[hb + 1:hb + 1 + p, :])
                # right pad rows: x[L-2], x[L-3], ..., x[L-1-p]
                right = _rev_rows(h16[hb + L - 1 - p:hb + L - 1, :])
                xp_scr[base - p:base, 0:cin] = left
                xp_scr[base + L:base + L + p, 0:cin] = right

        def conv_taps(p, cin, w_ref, b_ref, scale_ref, shift_ref):
            """Per-tap MXU accumulation over the whole slab + bias/ReLU/eval-BN."""
            acc = None
            for k in range(2 * p + 1):
                start = PAD_MAX - p + k
                xs = xp_scr[start:start + M, 0:cin]               # (M, cin) bf16
                d = jnp.dot(xs, w_ref[k], preferred_element_type=jnp.float32)
                acc = d if acc is None else acc + d
            acc = jnp.maximum(acc + b_ref[...], 0.0)              # conv bias + ReLU
            return acc * scale_ref[...] + shift_ref[...]          # eval-mode BN

        # conv0 (k=1): plain matmul on the compact (BT*L, 44) bf16 input.
        x = x_ref[...]
        h0 = jnp.dot(x, w0[0], preferred_element_type=jnp.float32)
        h0 = jnp.maximum(h0 + b0[...], 0.0) * s0[...] + t0[...]

        fill_slab(h0.astype(jnp.bfloat16), 1, L)                  # conv3, pad=1
        h = conv_taps(1, IN_CHANNELS, w3, b3, s3, t3)             # (M, 64) f32
        fill_slab(h.astype(jnp.bfloat16), 2, Lpm)                 # conv2, pad=2
        h = conv_taps(2, CONV_HIDDEN, w2, b2, s2, t2)
        fill_slab(h.astype(jnp.bfloat16), 5, Lpm)                 # conv1, pad=5
        h = conv_taps(5, CONV_HIDDEN, w1, b1, s1, t1)

        # FC head + softmax over the 8 classes (junk rows computed, never stored).
        z = jnp.dot(h.astype(jnp.bfloat16), fw1[...],
                    preferred_element_type=jnp.float32) + fb1[...]
        z = jnp.maximum(z, 0.0)
        logits = jnp.dot(z.astype(jnp.bfloat16), fw2[...],
                         preferred_element_type=jnp.float32) + fb2[...]
        logits = logits - jnp.max(logits, axis=-1, keepdims=True)
        e = jnp.exp(logits)
        probs = e * pl.reciprocal(jnp.sum(e, axis=-1, keepdims=True), approx=True)

        # Store only the valid L rows of each batch element (8 real class lanes).
        for b in range(BT):
            o_ref[b * L:(b + 1) * L, :] = probs[b * Lpm:b * Lpm + L, :]

    return kernel


# ----------------------------------------------------------------------------
# Wrapper: batch-blocked grid, flat (rows, channels) blocks, 8-lane output.
# ----------------------------------------------------------------------------
def fused_forward(x_bld, kp):
    """x_bld: (B, L, 44) bf16 activations; kp: kernel-ready parameters."""
    B, L, Cin = x_bld.shape
    assert Cin == IN_CHANNELS
    assert L >= PAD_MAX + 1, "reflect pad of 5 requires L >= 6"
    # TODO(synk): for very large L additionally tile L with a (K-1)/2 halo so the
    # per-step working set stays small (v7x: 64 MiB VMEM) and pipelining kicks in.

    # Choose BT so BT*L ~ TARGET_M rows per step; keep (BT*L) % 8 == 0 whenever
    # the grid has >1 step (BlockSpec sublane rule).  Large B -> multi-step
    # "parallel" grid so both v7x TensorCores get work.
    unit = 8 // math.gcd(L, 8)
    bt = max(1, TARGET_M // L)
    bt = max(unit, (bt // unit) * unit)
    if B <= bt:
        BT, B_pad = B, B                       # single step: block == full dims
    else:
        BT = bt
        B_pad = ((B + BT - 1) // BT) * BT
    nblk = B_pad // BT

    x = x_bld
    if B_pad != B:
        x = jnp.pad(x, ((0, B_pad - B), (0, 0), (0, 0)))
    x2d = x.reshape(B_pad * L, Cin)

    def const_spec(arr):
        return pl.BlockSpec(arr.shape, lambda i, nd=arr.ndim: (0,) * nd)

    flat_args = []
    in_specs = [pl.BlockSpec((BT * L, Cin), lambda i: (i, 0))]
    for name in ("conv0", "conv3", "conv2", "conv1"):
        for key_ in ("w", "b", "scale", "shift"):
            a = kp[name][key_]
            flat_args.append(a)
            in_specs.append(const_spec(a))
    for key_ in ("fc_w1", "fc_b1", "fc_w2", "fc_b2"):
        a = kp[key_]
        flat_args.append(a)
        in_specs.append(const_spec(a))

    out2d = pl.pallas_call(
        make_fused_kernel(BT, L),
        out_shape=jax.ShapeDtypeStruct((B_pad * L, NUM_CLASSES), jnp.float32),
        grid=(nblk,),
        in_specs=in_specs,
        out_specs=pl.BlockSpec((BT * L, NUM_CLASSES), lambda i: (i, 0)),
        scratch_shapes=[
            pltpu.VMEM((BT * (L + 2 * PAD_MAX), CONV_HIDDEN), jnp.bfloat16),
        ],
        compiler_params=pltpu.CompilerParams(
            dimension_semantics=("parallel",)),
    )(x2d, *flat_args)

    return out2d.reshape(B_pad, L, NUM_CLASSES)[:B]


# ----------------------------------------------------------------------------
# Parameter construction (deterministic, synthetic) + kernel-ready packing
# ----------------------------------------------------------------------------
def make_conv_block_params(key, cin, cout, k):
    k0, k1, k2, k3, k4, k5 = jax.random.split(key, 6)
    w = jax.random.normal(k0, (k, cin, cout), jnp.float32) * (1.0 / (cin * k) ** 0.5)
    b = jax.random.normal(k1, (1, cout), jnp.float32) * 0.05
    gamma = jax.random.uniform(k2, (1, cout), jnp.float32, 0.8, 1.2)
    beta = jax.random.normal(k3, (1, cout), jnp.float32) * 0.05
    r_mean = jax.random.normal(k4, (1, cout), jnp.float32) * 0.05
    r_var = jax.random.uniform(k5, (1, cout), jnp.float32, 0.5, 1.5)
    scale = gamma / jnp.sqrt(r_var + BN_EPS)
    shift = beta - r_mean * scale
    return dict(w=w, b=b, scale=scale, shift=shift)


def make_params(key):
    k0, k3, k2, k1, kf1, kf2 = jax.random.split(key, 6)
    params = {
        "conv0": make_conv_block_params(k0, IN_CHANNELS, IN_CHANNELS, 1),
        "conv3": make_conv_block_params(k3, IN_CHANNELS, CONV_HIDDEN, 3),
        "conv2": make_conv_block_params(k2, CONV_HIDDEN, CONV_HIDDEN, 5),
        "conv1": make_conv_block_params(k1, CONV_HIDDEN, CONV_HIDDEN, 11),
    }
    params["fc_w1"] = jax.random.normal(
        kf1, (CONV_HIDDEN, FFNN_HIDDEN), jnp.float32) * (1.0 / CONV_HIDDEN ** 0.5)
    params["fc_b1"] = jax.random.normal(
        jax.random.fold_in(kf1, 1), (1, FFNN_HIDDEN), jnp.float32) * 0.05
    params["fc_w2"] = jax.random.normal(
        kf2, (FFNN_HIDDEN, NUM_CLASSES), jnp.float32) * (1.0 / FFNN_HIDDEN ** 0.5)
    params["fc_b2"] = jax.random.normal(
        jax.random.fold_in(kf2, 1), (1, NUM_CLASSES), jnp.float32) * 0.05
    return params


def prepare_kernel_params(params):
    """Cast matmul operands to bf16; keep bias / BN affine / softmax math in f32."""
    kp = {}
    for name in ("conv0", "conv3", "conv2", "conv1"):
        blk = params[name]
        kp[name] = dict(w=blk["w"].astype(jnp.bfloat16), b=blk["b"],
                        scale=blk["scale"], shift=blk["shift"])
    kp["fc_w1"] = params["fc_w1"].astype(jnp.bfloat16)
    kp["fc_b1"] = params["fc_b1"]
    kp["fc_w2"] = params["fc_w2"].astype(jnp.bfloat16)
    kp["fc_b2"] = params["fc_b2"]
    return kp


# ----------------------------------------------------------------------------
# Model forward (Pallas) and pure-JAX references
# ----------------------------------------------------------------------------
def model_forward(params, x_ncl):
    kp = prepare_kernel_params(params)
    # TODO(synk): the NCL->NLC transpose is still a wrapper-side HBM pass; it could
    # be folded into the kernel (transposed conv0 matmul) if it shows up in profiles.
    x = jnp.transpose(x_ncl, (0, 2, 1)).astype(jnp.bfloat16)   # (B, L, 44) bf16
    return fused_forward(x, kp)


def _ref_conv_block(x, blk, pad, in_dtype=jnp.float32):
    xp = jnp.pad(x, ((0, 0), (pad, pad), (0, 0)), mode="reflect") if pad > 0 else x
    y = jax.lax.conv_general_dilated(
        xp.astype(in_dtype), blk["w"].astype(in_dtype),
        window_strides=(1,), padding="VALID",
        dimension_numbers=("NWC", "WIO", "NWC"),
        preferred_element_type=jnp.float32)
    y = jnp.maximum(y + blk["b"], 0.0)
    return y * blk["scale"] + blk["shift"]


def _ref_forward(params, x_ncl, in_dtype):
    x = jnp.transpose(x_ncl, (0, 2, 1)).astype(jnp.float32)
    p = params
    x = _ref_conv_block(x, p["conv0"], 0, in_dtype)
    x = _ref_conv_block(x, p["conv3"], 1, in_dtype)
    x = _ref_conv_block(x, p["conv2"], 2, in_dtype)
    x = _ref_conv_block(x, p["conv1"], 5, in_dtype)
    h = jnp.maximum(
        jnp.dot(x.astype(in_dtype), p["fc_w1"].astype(in_dtype),
                preferred_element_type=jnp.float32) + p["fc_b1"], 0.0)
    y = jnp.dot(h.astype(in_dtype), p["fc_w2"].astype(in_dtype),
                preferred_element_type=jnp.float32) + p["fc_b2"]
    return jax.nn.softmax(y, axis=2)


def model_forward_ref(params, x_ncl):
    return _ref_forward(params, x_ncl, jnp.float32)


def model_forward_ref_bf16(params, x_ncl):
    # Same rounding points as the kernel (bf16 matmul operands, f32 accumulate).
    return _ref_forward(params, x_ncl, jnp.bfloat16)


if __name__ == "__main__":
    key = jax.random.PRNGKey(0)
    pkey, xkey = jax.random.split(key)
    params = make_params(pkey)

    B, L = 2, 16
    x = jax.random.normal(xkey, (B, IN_CHANNELS, L), jnp.float32)  # NCL like PyTorch

    out = jax.jit(model_forward)(params, x)
    out = jax.block_until_ready(out)

    assert out.shape == (B, L, NUM_CLASSES), out.shape
    assert out.dtype == jnp.float32

    ref_f32 = model_forward_ref(params, x)
    ref_bf16 = model_forward_ref_bf16(params, x)

    assert jnp.allclose(jnp.sum(out, axis=-1), 1.0, atol=1e-2), \
        "softmax rows must sum to 1"
    assert jnp.allclose(out, ref_bf16, atol=1e-2), \
        "mismatch vs bf16-matched pure-JAX reference"
    assert jnp.allclose(out, ref_f32, atol=3e-2), \
        "mismatch vs f32 pure-JAX reference"

    print("KERNEL_OK")
</pallas_src>

<mosaic_0001>
module attributes {stable_mosaic.version = 11 : i64} {
  func.func @kernel(%arg0: i32, %arg1: memref<32x44xbf16, #tpu.memory_space<vmem>>, %arg2: memref<1x44x44xbf16, #tpu.memory_space<vmem>>, %arg3: memref<1x44xf32, #tpu.memory_space<vmem>>, %arg4: memref<1x44xf32, #tpu.memory_space<vmem>>, %arg5: memref<1x44xf32, #tpu.memory_space<vmem>>, %arg6: memref<3x44x64xbf16, #tpu.memory_space<vmem>>, %arg7: memref<1x64xf32, #tpu.memory_space<vmem>>, %arg8: memref<1x64xf32, #tpu.memory_space<vmem>>, %arg9: memref<1x64xf32, #tpu.memory_space<vmem>>, %arg10: memref<5x64x64xbf16, #tpu.memory_space<vmem>>, %arg11: memref<1x64xf32, #tpu.memory_space<vmem>>, %arg12: memref<1x64xf32, #tpu.memory_space<vmem>>, %arg13: memref<1x64xf32, #tpu.memory_space<vmem>>, %arg14: memref<11x64x64xbf16, #tpu.memory_space<vmem>>, %arg15: memref<1x64xf32, #tpu.memory_space<vmem>>, %arg16: memref<1x64xf32, #tpu.memory_space<vmem>>, %arg17: memref<1x64xf32, #tpu.memory_space<vmem>>, %arg18: memref<64x126xbf16, #tpu.memory_space<vmem>>, %arg19: memref<1x126xf32, #tpu.memory_space<vmem>>, %arg20: memref<126x8xbf16, #tpu.memory_space<vmem>>, %arg21: memref<1x8xf32, #tpu.memory_space<vmem>>, %arg22: memref<32x8xf32, #tpu.memory_space<vmem>>, %arg23: memref<52x64xbf16, #tpu.memory_space<vmem>>) attributes {dimension_semantics = [#tpu.dimension_semantics<parallel>], iteration_bounds = array<i64: 1>, scalar_prefetch = 0 : i64, scratch_operands = 1 : i64, tpu.core_type = #tpu.core_type<tc>, window_params = [{transform_indices = @transform_0, window_bounds = array<i64: 32, 44>}, {pipeline_mode = #tpu.pipeline_mode<synchronous>, transform_indices = @transform_1, window_bounds = array<i64: 1, 44, 44>}, {pipeline_mode = #tpu.pipeline_mode<synchronous>, transform_indices = @transform_2, window_bounds = array<i64: 1, 44>}, {pipeline_mode = #tpu.pipeline_mode<synchronous>, transform_indices = @transform_3, window_bounds = array<i64: 1, 44>}, {pipeline_mode = #tpu.pipeline_mode<synchronous>, transform_indices = @transform_4, window_bounds = array<i64: 1, 44>}, {pipeline_mode = #tpu.pipeline_mode<synchronous>, transform_indices = @transform_5, window_bounds = array<i64: 3, 44, 64>}, {pipeline_mode = #tpu.pipeline_mode<synchronous>, transform_indices = @transform_6, window_bounds = array<i64: 1, 64>}, {pipeline_mode = #tpu.pipeline_mode<synchronous>, transform_indices = @transform_7, window_bounds = array<i64: 1, 64>}, {pipeline_mode = #tpu.pipeline_mode<synchronous>, transform_indices = @transform_8, window_bounds = array<i64: 1, 64>}, {pipeline_mode = #tpu.pipeline_mode<synchronous>, transform_indices = @transform_9, window_bounds = array<i64: 5, 64, 64>}, {pipeline_mode = #tpu.pipeline_mode<synchronous>, transform_indices = @transform_10, window_bounds = array<i64: 1, 64>}, {pipeline_mode = #tpu.pipeline_mode<synchronous>, transform_indices = @transform_11, window_bounds = array<i64: 1, 64>}, {pipeline_mode = #tpu.pipeline_mode<synchronous>, transform_indices = @transform_12, window_bounds = array<i64: 1, 64>}, {pipeline_mode = #tpu.pipeline_mode<synchronous>, transform_indices = @transform_13, window_bounds = array<i64: 11, 64, 64>}, {pipeline_mode = #tpu.pipeline_mode<synchronous>, transform_indices = @transform_14, window_bounds = array<i64: 1, 64>}, {pipeline_mode = #tpu.pipeline_mode<synchronous>, transform_indices = @transform_15, window_bounds = array<i64: 1, 64>}, {pipeline_mode = #tpu.pipeline_mode<synchronous>, transform_indices = @transform_16, window_bounds = array<i64: 1, 64>}, {pipeline_mode = #tpu.pipeline_mode<synchronous>, transform_indices = @transform_17, window_bounds = array<i64: 64, 126>}, {pipeline_mode = #tpu.pipeline_mode<synchronous>, transform_indices = @transform_18, window_bounds = array<i64: 1, 126>}, {pipeline_mode = #tpu.pipeline_mode<synchronous>, transform_indices = @transform_19, window_bounds = array<i64: 126, 8>}, {pipeline_mode = #tpu.pipeline_mode<synchronous>, transform_indices = @transform_20, window_bounds = array<i64: 1, 8>}, {transform_indices = @transform_21, window_bounds = array<i64: 32, 8>}]} {
    %c0 = arith.constant 0 : index
    %c0_0 = arith.constant 0 : index
    %0 = vector.load %arg1[%c0, %c0_0] : memref<32x44xbf16, #tpu.memory_space<vmem>>, vector<32x44xbf16>
    %c0_1 = arith.constant 0 : index
    %c0_2 = arith.constant 0 : index
    %c0_3 = arith.constant 0 : index
    %1 = vector.load %arg2[%c0_1, %c0_2, %c0_3] : memref<1x44x44xbf16, #tpu.memory_space<vmem>>, vector<1x44x44xbf16>
    %2 = vector.shape_cast %1 : vector<1x44x44xbf16> to vector<44x44xbf16>
    %cst = arith.constant dense<0.000000e+00> : vector<32x44xf32>
    %3 = tpu.matmul %0, %2, %cst {dimension_numbers = #tpu.dot_dimension_numbers<[1], [0], [0], [1], [0, 0, 1, 1], [], []>} : vector<32x44xbf16>, vector<44x44xbf16>, vector<32x44xf32> -> vector<32x44xf32>
    %c0_4 = arith.constant 0 : index
    %c0_5 = arith.constant 0 : index
    %4 = vector.load %arg3[%c0_4, %c0_5] : memref<1x44xf32, #tpu.memory_space<vmem>>, vector<1x44xf32>
    %5 = vector.broadcast %4 : vector<1x44xf32> to vector<32x44xf32>
    %6 = arith.addf %3, %5 : vector<32x44xf32>
    %cst_6 = arith.constant 0.000000e+00 : f32
    %7 = vector.broadcast %cst_6 : f32 to vector<32x44xf32>
    %8 = arith.maximumf %6, %7 : vector<32x44xf32>
    %c0_7 = arith.constant 0 : index
    %c0_8 = arith.constant 0 : index
    %9 = vector.load %arg4[%c0_7, %c0_8] : memref<1x44xf32, #tpu.memory_space<vmem>>, vector<1x44xf32>
    %10 = vector.broadcast %9 : vector<1x44xf32> to vector<32x44xf32>
    %11 = arith.mulf %8, %10 : vector<32x44xf32>
    %c0_9 = arith.constant 0 : index
    %c0_10 = arith.constant 0 : index
    %12 = vector.load %arg5[%c0_9, %c0_10] : memref<1x44xf32, #tpu.memory_space<vmem>>, vector<1x44xf32>
    %13 = vector.broadcast %12 : vector<1x44xf32> to vector<32x44xf32>
    %14 = arith.addf %11, %13 : vector<32x44xf32>
    %15 = arith.truncf %14 : vector<32x44xf32> to vector<32x44xbf16>
    %16 = vector.extract_strided_slice %15 {offsets = [0, 0], sizes = [16, 44], strides = [1, 1]} : vector<32x44xbf16> to vector<16x44xbf16>
    %c5 = arith.constant 5 : index
    %c0_11 = arith.constant 0 : index
    %17 = vector.load %arg23[%c5, %c0_11] : memref<52x64xbf16, #tpu.memory_space<vmem>>, vector<16x44xbf16>
    tpu.vector_store %arg23[%c5, %c0_11], %16 {strides = array<i32>} : memref<52x64xbf16, #tpu.memory_space<vmem>>, vector<16x44xbf16>,
    %18 = vector.extract_strided_slice %15 {offsets = [16, 0], sizes = [16, 44], strides = [1, 1]} : vector<32x44xbf16> to vector<16x44xbf16>
    %c31 = arith.constant 31 : index
    %c0_12 = arith.constant 0 : index
    %19 = vector.load %arg23[%c31, %c0_12] : memref<52x64xbf16, #tpu.memory_space<vmem>>, vector<16x44xbf16>
    tpu.vector_store %arg23[%c31, %c0_12], %18 {strides = array<i32>} : memref<52x64xbf16, #tpu.memory_space<vmem>>, vector<16x44xbf16>,
    %20 = vector.extract_strided_slice %15 {offsets = [1, 0], sizes = [1, 44], strides = [1, 1]} : vector<32x44xbf16> to vector<1x44xbf16>
    %21 = vector.extract_strided_slice %15 {offsets = [14, 0], sizes = [1, 44], strides = [1, 1]} : vector<32x44xbf16> to vector<1x44xbf16>
    %c4 = arith.constant 4 : index
    %c0_13 = arith.constant 0 : index
    %22 = vector.load %arg23[%c4, %c0_13] : memref<52x64xbf16, #tpu.memory_space<vmem>>, vector<1x44xbf16>
    tpu.vector_store %arg23[%c4, %c0_13], %20 {strides = array<i32>} : memref<52x64xbf16, #tpu.memory_space<vmem>>, vector<1x44xbf16>,
    %c21 = arith.constant 21 : index
    %c0_14 = arith.constant 0 : index
    %23 = vector.load %arg23[%c21, %c0_14] : memref<52x64xbf16, #tpu.memory_space<vmem>>, vector<1x44xbf16>
    tpu.vector_store %arg23[%c21, %c0_14], %21 {strides = array<i32>} : memref<52x64xbf16, #tpu.memory_space<vmem>>, vector<1x44xbf16>,
    %24 = vector.extract_strided_slice %15 {offsets = [17, 0], sizes = [1, 44], strides = [1, 1]} : vector<32x44xbf16> to vector<1x44xbf16>
    %25 = vector.extract_strided_slice %15 {offsets = [30, 0], sizes = [1, 44], strides = [1, 1]} : vector<32x44xbf16> to vector<1x44xbf16>
    %c30 = arith.constant 30 : index
    %c0_15 = arith.constant 0 : index
    %26 = vector.load %arg23[%c30, %c0_15] : memref<52x64xbf16, #tpu.memory_space<vmem>>, vector<1x44xbf16>
    tpu.vector_store %arg23[%c30, %c0_15], %24 {strides = array<i32>} : memref<52x64xbf16, #tpu.memory_space<vmem>>, vector<1x44xbf16>,
    %c47 = arith.constant 47 : index
    %c0_16 = arith.constant 0 : index
    %27 = vector.load %arg23[%c47, %c0_16] : memref<52x64xbf16, #tpu.memory_space<vmem>>, vector<1x44xbf16>
    tpu.vector_store %arg23[%c47, %c0_16], %25 {strides = array<i32>} : memref<52x64xbf16, #tpu.memory_space<vmem>>, vector<1x44xbf16>,
    %c4_17 = arith.constant 4 : index
    %c0_18 = arith.constant 0 : index
    %28 = vector.load %arg23[%c4_17, %c0_18] : memref<52x64xbf16, #tpu.memory_space<vmem>>, vector<42x44xbf16>
    %c0_19 = arith.constant 0 : index
    %c0_20 = arith.constant 0 : index
    %c0_21 = arith.constant 0 : index
    %29 = vector.load %arg6[%c0_19, %c0_20, %c0_21] : memref<3x44x64xbf16, #tpu.memory_space<vmem>>, vector<1x44x64xbf16>
    %30 = vector.shape_cast %29 : vector<1x44x64xbf16> to vector<44x64xbf16>
    %cst_22 = arith.constant dense<0.000000e+00> : vector<42x64xf32>
    %31 = tpu.matmul %28, %30, %cst_22 {dimension_numbers = #tpu.dot_dimension_numbers<[1], [0], [0], [1], [0, 0, 1, 1], [], []>} : vector<42x44xbf16>, vector<44x64xbf16>, vector<42x64xf32> -> vector<42x64xf32>
    %c5_23 = arith.constant 5 : index
    %c0_24 = arith.constant 0 : index
    %32 = vector.load %arg23[%c5_23, %c0_24] : memref<52x64xbf16, #tpu.memory_space<vmem>>, vector<42x44xbf16>
    %c1 = arith.constant 1 : index
    %c0_25 = arith.constant 0 : index
    %c0_26 = arith.constant 0 : index
    %33 = vector.load %arg6[%c1, %c0_25, %c0_26] : memref<3x44x64xbf16, #tpu.memory_space<vmem>>, vector<1x44x64xbf16>
    %34 = vector.shape_cast %33 : vector<1x44x64xbf16> to vector<44x64xbf16>
    %cst_27 = arith.constant dense<0.000000e+00> : vector<42x64xf32>
    %35 = tpu.matmul %32, %34, %cst_27 {dimension_numbers = #tpu.dot_dimension_numbers<[1], [0], [0], [1], [0, 0, 1, 1], [], []>} : vector<42x44xbf16>, vector<44x64xbf16>, vector<42x64xf32> -> vector<42x64xf32>
    %36 = arith.addf %31, %35 : vector<42x64xf32>
    %c6 = arith.constant 6 : index
    %c0_28 = arith.constant 0 : index
    %37 = vector.load %arg23[%c6, %c0_28] : memref<52x64xbf16, #tpu.memory_space<vmem>>, vector<42x44xbf16>
    %c2 = arith.constant 2 : index
    %c0_29 = arith.constant 0 : index
    %c0_30 = arith.constant 0 : index
    %38 = vector.load %arg6[%c2, %c0_29, %c0_30] : memref<3x44x64xbf16, #tpu.memory_space<vmem>>, vector<1x44x64xbf16>
    %39 = vector.shape_cast %38 : vector<1x44x64xbf16> to vector<44x64xbf16>
    %cst_31 = arith.constant dense<0.000000e+00> : vector<42x64xf32>
    %40 = tpu.matmul %37, %39, %cst_31 {dimension_numbers = #tpu.dot_dimension_numbers<[1], [0], [0], [1], [0, 0, 1, 1], [], []>} : vector<42x44xbf16>, vector<44x64xbf16>, vector<42x64xf32> -> vector<42x64xf32>
    %41 = arith.addf %36, %40 : vector<42x64xf32>
    %c0_32 = arith.constant 0 : index
    %c0_33 = arith.constant 0 : index
    %42 = vector.load %arg7[%c0_32, %c0_33] : memref<1x64xf32, #tpu.memory_space<vmem>>, vector<1x64xf32>
    %43 = vector.broadcast %42 : vector<1x64xf32> to vector<42x64xf32>
    %44 = arith.addf %41, %43 : vector<42x64xf32>
    %cst_34 = arith.constant 0.000000e+00 : f32
    %45 = vector.broadcast %cst_34 : f32 to vector<42x64xf32>
    %46 = arith.maximumf %44, %45 : vector<42x64xf32>
    %c0_35 = arith.constant 0 : index
    %c0_36 = arith.constant 0 : index
    %47 = vector.load %arg8[%c0_35, %c0_36] : memref<1x64xf32, #tpu.memory_space<vmem>>, vector<1x64xf32>
    %48 = vector.broadcast %47 : vector<1x64xf32> to vector<42x64xf32>
    %49 = arith.mulf %46, %48 : vector<42x64xf32>
    %c0_37 = arith.constant 0 : index
    %c0_38 = arith.constant 0 : index
    %50 = vector.load %arg9[%c0_37, %c0_38] : memref<1x64xf32, #tpu.memory_space<vmem>>, vector<1x64xf32>
    %51 = vector.broadcast %50 : vector<1x64xf32> to vector<42x64xf32>
    %52 = arith.addf %49, %51 : vector<42x64xf32>
    %53 = arith.truncf %52 : vector<42x64xf32> to vector<42x64xbf16>
    %c5_39 = arith.constant 5 : index
    %c0_40 = arith.constant 0 : index
    %54 = vector.load %arg23[%c5_39, %c0_40] : memref<52x64xbf16, #tpu.memory_space<vmem>>, vector<42x64xbf16>
    tpu.vector_store %arg23[%c5_39, %c0_40], %53 {strides = array<i32>} : memref<52x64xbf16, #tpu.memory_space<vmem>>, vector<42x64xbf16>,
    %55 = vector.extract_strided_slice %53 {offsets = [1, 0], sizes = [2, 64], strides = [1, 1]} : vector<42x64xbf16> to vector<2x64xbf16>
    %56 = vector.extract_strided_slice %55 {offsets = [1, 0], sizes = [1, 64], strides = [1, 1]} : vector<2x64xbf16> to vector<1x64xbf16>
    %57 = vector.extract_strided_slice %55 {offsets = [0, 0], sizes = [1, 64], strides = [1, 1]} : vector<2x64xbf16> to vector<1x64xbf16>
    %58 = tpu.concatenate %56, %57 in 0 : vector<1x64xbf16>, vector<1x64xbf16> -> vector<2x64xbf16>
    %59 = vector.extract_strided_slice %53 {offsets = [13, 0], sizes = [2, 64], strides = [1, 1]} : vector<42x64xbf16> to vector<2x64xbf16>
    %60 = vector.extract_strided_slice %59 {offsets = [1, 0], sizes = [1, 64], strides = [1, 1]} : vector<2x64xbf16> to vector<1x64xbf16>
    %61 = vector.extract_strided_slice %59 {offsets = [0, 0], sizes = [1, 64], strides = [1, 1]} : vector<2x64xbf16> to vector<1x64xbf16>
    %62 = tpu.concatenate %60, %61 in 0 : vector<1x64xbf16>, vector<1x64xbf16> -> vector<2x64xbf16>
    %c3 = arith.constant 3 : index
    %c0_41 = arith.constant 0 : index
    %63 = vector.load %arg23[%c3, %c0_41] : memref<52x64xbf16, #tpu.memory_space<vmem>>, vector<2x64xbf16>
    tpu.vector_store %arg23[%c3, %c0_41], %58 {strides = array<i32>} : memref<52x64xbf16, #tpu.memory_space<vmem>>, vector<2x64xbf16>,
    %c21_42 = arith.constant 21 : index
    %c0_43 = arith.constant 0 : index
    %64 = vector.load %arg23[%c21_42, %c0_43] : memref<52x64xbf16, #tpu.memory_space<vmem>>, vector<2x64xbf16>
    tpu.vector_store %arg23[%c21_42, %c0_43], %62 {strides = array<i32>} : memref<52x64xbf16, #tpu.memory_space<vmem>>, vector<2x64xbf16>,
    %65 = vector.extract_strided_slice %53 {offsets = [27, 0], sizes = [2, 64], strides = [1, 1]} : vector<42x64xbf16> to vector<2x64xbf16>
    %66 = vector.extract_strided_slice %65 {offsets = [1, 0], sizes = [1, 64], strides = [1, 1]} : vector<2x64xbf16> to vector<1x64xbf16>
    %67 = vector.extract_strided_slice %65 {offsets = [0, 0], sizes = [1, 64], strides = [1, 1]} : vector<2x64xbf16> to vector<1x64xbf16>
    %68 = tpu.concatenate %66, %67 in 0 : vector<1x64xbf16>, vector<1x64xbf16> -> vector<2x64xbf16>
    %69 = vector.extract_strided_slice %53 {offsets = [39, 0], sizes = [2, 64], strides = [1, 1]} : vector<42x64xbf16> to vector<2x64xbf16>
    %70 = vector.extract_strided_slice %69 {offsets = [1, 0], sizes = [1, 64], strides = [1, 1]} : vector<2x64xbf16> to vector<1x64xbf16>
    %71 = vector.extract_strided_slice %69 {offsets = [0, 0], sizes = [1, 64], strides = [1, 1]} : vector<2x64xbf16> to vector<1x64xbf16>
    %72 = tpu.concatenate %70, %71 in 0 : vector<1x64xbf16>, vector<1x64xbf16> -> vector<2x64xbf16>
    %c29 = arith.constant 29 : index
    %c0_44 = arith.constant 0 : index
    %73 = vector.load %arg23[%c29, %c0_44] : memref<52x64xbf16, #tpu.memory_space<vmem>>, vector<2x64xbf16>
    tpu.vector_store %arg23[%c29, %c0_44], %68 {strides = array<i32>} : memref<52x64xbf16, #tpu.memory_space<vmem>>, vector<2x64xbf16>,
    %c47_45 = arith.constant 47 : index
    %c0_46 = arith.constant 0 : index
    %74 = vector.load %arg23[%c47_45, %c0_46] : memref<52x64xbf16, #tpu.memory_space<vmem>>, vector<2x64xbf16>
    tpu.vector_store %arg23[%c47_45, %c0_46], %72 {strides = array<i32>} : memref<52x64xbf16, #tpu.memory_space<vmem>>, vector<2x64xbf16>,
    %c3_47 = arith.constant 3 : index
    %c0_48 = arith.constant 0 : index
    %75 = vector.load %arg23[%c3_47, %c0_48] : memref<52x64xbf16, #tpu.memory_space<vmem>>, vector<42x64xbf16>
    %c0_49 = arith.constant 0 : index
    %c0_50 = arith.constant 0 : index
    %c0_51 = arith.constant 0 : index
    %76 = vector.load %arg10[%c0_49, %c0_50, %c0_51] : memref<5x64x64xbf16, #tpu.memory_space<vmem>>, vector<1x64x64xbf16>
    %77 = vector.shape_cast %76 : vector<1x64x64xbf16> to vector<64x64xbf16>
    %cst_52 = arith.constant dense<0.000000e+00> : vector<42x64xf32>
    %78 = tpu.matmul %75, %77, %cst_52 {dimension_numbers = #tpu.dot_dimension_numbers<[1], [0], [0], [1], [0, 0, 1, 1], [], []>} : vector<42x64xbf16>, vector<64x64xbf16>, vector<42x64xf32> -> vector<42x64xf32>
    %c4_53 = arith.constant 4 : index
    %c0_54 = arith.constant 0 : index
    %79 = vector.load %arg23[%c4_53, %c0_54] : memref<52x64xbf16, #tpu.memory_space<vmem>>, vector<42x64xbf16>
    %c1_55 = arith.constant 1 : index
    %c0_56 = arith.constant 0 : index
    %c0_57 = arith.constant 0 : index
    %80 = vector.load %arg10[%c1_55, %c0_56, %c0_57] : memref<5x64x64xbf16, #tpu.memory_space<vmem>>, vector<1x64x64xbf16>
    %81 = vector.shape_cast %80 : vector<1x64x64xbf16> to vector<64x64xbf16>
    %cst_58 = arith.constant dense<0.000000e+00> : vector<42x64xf32>
    %82 = tpu.matmul %79, %81, %cst_58 {dimension_numbers = #tpu.dot_dimension_numbers<[1], [0], [0], [1], [0, 0, 1, 1], [], []>} : vector<42x64xbf16>, vector<64x64xbf16>, vector<42x64xf32> -> vector<42x64xf32>
    %83 = arith.addf %78, %82 : vector<42x64xf32>
    %c5_59 = arith.constant 5 : index
    %c0_60 = arith.constant 0 : index
    %84 = vector.load %arg23[%c5_59, %c0_60] : memref<52x64xbf16, #tpu.memory_space<vmem>>, vector<42x64xbf16>
    %c2_61 = arith.constant 2 : index
    %c0_62 = arith.constant 0 : index
    %c0_63 = arith.constant 0 : index
    %85 = vector.load %arg10[%c2_61, %c0_62, %c0_63] : memref<5x64x64xbf16, #tpu.memory_space<vmem>>, vector<1x64x64xbf16>
    %86 = vector.shape_cast %85 : vector<1x64x64xbf16> to vector<64x64xbf16>
    %cst_64 = arith.constant dense<0.000000e+00> : vector<42x64xf32>
    %87 = tpu.matmul %84, %86, %cst_64 {dimension_numbers = #tpu.dot_dimension_numbers<[1], [0], [0], [1], [0, 0, 1, 1], [], []>} : vector<42x64xbf16>, vector<64x64xbf16>, vector<42x64xf32> -> vector<42x64xf32>
    %88 = arith.addf %83, %87 : vector<42x64xf32>
    %c6_65 = arith.constant 6 : index
    %c0_66 = arith.constant 0 : index
    %89 = vector.load %arg23[%c6_65, %c0_66] : memref<52x64xbf16, #tpu.memory_space<vmem>>, vector<42x64xbf16>
    %c3_67 = arith.constant 3 : index
    %c0_68 = arith.constant 0 : index
    %c0_69 = arith.constant 0 : index
    %90 = vector.load %arg10[%c3_67, %c0_68, %c0_69] : memref<5x64x64xbf16, #tpu.memory_space<vmem>>, vector<1x64x64xbf16>
    %91 = vector.shape_cast %90 : vector<1x64x64xbf16> to vector<64x64xbf16>
    %cst_70 = arith.constant dense<0.000000e+00> : vector<42x64xf32>
    %92 = tpu.matmul %89, %91, %cst_70 {dimension_numbers = #tpu.dot_dimension_numbers<[1], [0], [0], [1], [0, 0, 1, 1], [], []>} : vector<42x64xbf16>, vector<64x64xbf16>, vector<42x64xf32> -> vector<42x64xf32>
    %93 = arith.addf %88, %92 : vector<42x64xf32>
    %c7 = arith.constant 7 : index
    %c0_71 = arith.constant 0 : index
    %94 = vector.load %arg23[%c7, %c0_71] : memref<52x64xbf16, #tpu.memory_space<vmem>>, vector<42x64xbf16>
    %c4_72 = arith.constant 4 : index
    %c0_73 = arith.constant 0 : index
    %c0_74 = arith.constant 0 : index
    %95 = vector.load %arg10[%c4_72, %c0_73, %c0_74] : memref<5x64x64xbf16, #tpu.memory_space<vmem>>, vector<1x64x64xbf16>
    %96 = vector.shape_cast %95 : vector<1x64x64xbf16> to vector<64x64xbf16>
    %cst_75 = arith.constant dense<0.000000e+00> : vector<42x64xf32>
    %97 = tpu.matmul %94, %96, %cst_75 {dimension_numbers = #tpu.dot_dimension_numbers<[1], [0], [0], [1], [0, 0, 1, 1], [], []>} : vector<42x64xbf16>, vector<64x64xbf16>, vector<42x64xf32> -> vector<42x64xf32>
    %98 = arith.addf %93, %97 : vector<42x64xf32>
    %c0_76 = arith.constant 0 : index
    %c0_77 = arith.constant 0 : index
    %99 = vector.load %arg11[%c0_76, %c0_77] : memref<1x64xf32, #tpu.memory_space<vmem>>, vector<1x64xf32>
    %100 = vector.broadcast %99 : vector<1x64xf32> to vector<42x64xf32>
    %101 = arith.addf %98, %100 : vector<42x64xf32>
    %cst_78 = arith.constant 0.000000e+00 : f32
    %102 = vector.broadcast %cst_78 : f32 to vector<42x64xf32>
    %103 = arith.maximumf %101, %102 : vector<42x64xf32>
    %c0_79 = arith.constant 0 : index
    %c0_80 = arith.constant 0 : index
    %104 = vector.load %arg12[%c0_79, %c0_80] : memref<1x64xf32, #tpu.memory_space<vmem>>, vector<1x64xf32>
    %105 = vector.broadcast %104 : vector<1x64xf32> to vector<42x64xf32>
    %106 = arith.mulf %103, %105 : vector<42x64xf32>
    %c0_81 = arith.constant 0 : index
    %c0_82 = arith.constant 0 : index
    %107 = vector.load %arg13[%c0_81, %c0_82] : memref<1x64xf32, #tpu.memory_space<vmem>>, vector<1x64xf32>
    %108 = vector.broadcast %107 : vector<1x64xf32> to vector<42x64xf32>
    %109 = arith.addf %106, %108 : vector<42x64xf32>
    %110 = arith.truncf %109 : vector<42x64xf32> to vector<42x64xbf16>
    %c5_83 = arith.constant 5 : index
    %c0_84 = arith.constant 0 : index
    %111 = vector.load %arg23[%c5_83, %c0_84] : memref<52x64xbf16, #tpu.memory_space<vmem>>, vector<42x64xbf16>
    tpu.vector_store %arg23[%c5_83, %c0_84], %110 {strides = array<i32>} : memref<52x64xbf16, #tpu.memory_space<vmem>>, vector<42x64xbf16>,
    %112 = vector.extract_strided_slice %110 {offsets = [1, 0], sizes = [5, 64], strides = [1, 1]} : vector<42x64xbf16> to vector<5x64xbf16>
    %113 = vector.extract_strided_slice %112 {offsets = [4, 0], sizes = [1, 64], strides = [1, 1]} : vector<5x64xbf16> to vector<1x64xbf16>
    %114 = vector.extract_strided_slice %112 {offsets = [3, 0], sizes = [1, 64], strides = [1, 1]} : vector<5x64xbf16> to vector<1x64xbf16>
    %115 = vector.extract_strided_slice %112 {offsets = [2, 0], sizes = [1, 64], strides = [1, 1]} : vector<5x64xbf16> to vector<1x64xbf16>
    %116 = vector.extract_strided_slice %112 {offsets = [1, 0], sizes = [1, 64], strides = [1, 1]} : vector<5x64xbf16> to vector<1x64xbf16>
    %117 = vector.extract_strided_slice %112 {offsets = [0, 0], sizes = [1, 64], strides = [1, 1]} : vector<5x64xbf16> to vector<1x64xbf16>
    %118 = tpu.concatenate %113, %114, %115, %116, %117 in 0 : vector<1x64xbf16>, vector<1x64xbf16>, vector<1x64xbf16>, vector<1x64xbf16>, vector<1x64xbf16> -> vector<5x64xbf16>
    %119 = vector.extract_strided_slice %110 {offsets = [10, 0], sizes = [5, 64], strides = [1, 1]} : vector<42x64xbf16> to vector<5x64xbf16>
    %120 = vector.extract_strided_slice %119 {offsets = [4, 0], sizes = [1, 64], strides = [1, 1]} : vector<5x64xbf16> to vector<1x64xbf16>
    %121 = vector.extract_strided_slice %119 {offsets = [3, 0], sizes = [1, 64], strides = [1, 1]} : vector<5x64xbf16> to vector<1x64xbf16>
    %122 = vector.extract_strided_slice %119 {offsets = [2, 0], sizes = [1, 64], strides = [1, 1]} : vector<5x64xbf16> to vector<1x64xbf16>
    %123 = vector.extract_strided_slice %119 {offsets = [1, 0], sizes = [1, 64], strides = [1, 1]} : vector<5x64xbf16> to vector<1x64xbf16>
    %124 = vector.extract_strided_slice %119 {offsets = [0, 0], sizes = [1, 64], strides = [1, 1]} : vector<5x64xbf16> to vector<1x64xbf16>
    %125 = tpu.concatenate %120, %121, %122, %123, %124 in 0 : vector<1x64xbf16>, vector<1x64xbf16>, vector<1x64xbf16>, vector<1x64xbf16>, vector<1x64xbf16> -> vector<5x64xbf16>
    %c0_85 = arith.constant 0 : index
    %c0_86 = arith.constant 0 : index
    %126 = vector.load %arg23[%c0_85, %c0_86] : memref<52x64xbf16, #tpu.memory_space<vmem>>, vector<5x64xbf16>
    tpu.vector_store %arg23[%c0_85, %c0_86], %118 {strides = array<i32>} : memref<52x64xbf16, #tpu.memory_space<vmem>>, vector<5x64xbf16>,
    %c21_87 = arith.constant 21 : index
    %c0_88 = arith.constant 0 : index
    %127 = vector.load %arg23[%c21_87, %c0_88] : memref<52x64xbf16, #tpu.memory_space<vmem>>, vector<5x64xbf16>
    tpu.vector_store %arg23[%c21_87, %c0_88], %125 {strides = array<i32>} : memref<52x64xbf16, #tpu.memory_space<vmem>>, vector<5x64xbf16>,
    %128 = vector.extract_strided_slice %110 {offsets = [27, 0], sizes = [5, 64], strides = [1, 1]} : vector<42x64xbf16> to vector<5x64xbf16>
    %129 = vector.extract_strided_slice %128 {offsets = [4, 0], sizes = [1, 64], strides = [1, 1]} : vector<5x64xbf16> to vector<1x64xbf16>
    %130 = vector.extract_strided_slice %128 {offsets = [3, 0], sizes = [1, 64], strides = [1, 1]} : vector<5x64xbf16> to vector<1x64xbf16>
    %131 = vector.extract_strided_slice %128 {offsets = [2, 0], sizes = [1, 64], strides = [1, 1]} : vector<5x64xbf16> to vector<1x64xbf16>
    %132 = vector.extract_strided_slice %128 {offsets = [1, 0], sizes = [1, 64], strides = [1, 1]} : vector<5x64xbf16> to vector<1x64xbf16>
    %133 = vector.extract_strided_slice %128 {offsets = [0, 0], sizes = [1, 64], strides = [1, 1]} : vector<5x64xbf16> to vector<1x64xbf16>
    %134 = tpu.concatenate %129, %130, %131, %132, %133 in 0 : vector<1x64xbf16>, vector<1x64xbf16>, vector<1x64xbf16>, vector<1x64xbf16>, vector<1x64xbf16> -> vector<5x64xbf16>
    %135 = vector.extract_strided_slice %110 {offsets = [36, 0], sizes = [5, 64], strides = [1, 1]} : vector<42x64xbf16> to vector<5x64xbf16>
    %136 = vector.extract_strided_slice %135 {offsets = [4, 0], sizes = [1, 64], strides = [1, 1]} : vector<5x64xbf16> to vector<1x64xbf16>
    %137 = vector.extract_strided_slice %135 {offsets = [3, 0], sizes = [1, 64], strides = [1, 1]} : vector<5x64xbf16> to vector<1x64xbf16>
    %138 = vector.extract_strided_slice %135 {offsets = [2, 0], sizes = [1, 64], strides = [1, 1]} : vector<5x64xbf16> to vector<1x64xbf16>
    %139 = vector.extract_strided_slice %135 {offsets = [1, 0], sizes = [1, 64], strides = [1, 1]} : vector<5x64xbf16> to vector<1x64xbf16>
    %140 = vector.extract_strided_slice %135 {offsets = [0, 0], sizes = [1, 64], strides = [1, 1]} : vector<5x64xbf16> to vector<1x64xbf16>
    %141 = tpu.concatenate %136, %137, %138, %139, %140 in 0 : vector<1x64xbf16>, vector<1x64xbf16>, vector<1x64xbf16>, vector<1x64xbf16>, vector<1x64xbf16> -> vector<5x64xbf16>
    %c26 = arith.constant 26 : index
    %c0_89 = arith.constant 0 : index
    %142 = vector.load %arg23[%c26, %c0_89] : memref<52x64xbf16, #tpu.memory_space<vmem>>, vector<5x64xbf16>
    tpu.vector_store %arg23[%c26, %c0_89], %134 {strides = array<i32>} : memref<52x64xbf16, #tpu.memory_space<vmem>>, vector<5x64xbf16>,
    %c47_90 = arith.constant 47 : index
    %c0_91 = arith.constant 0 : index
    %143 = vector.load %arg23[%c47_90, %c0_91] : memref<52x64xbf16, #tpu.memory_space<vmem>>, vector<5x64xbf16>
    tpu.vector_store %arg23[%c47_90, %c0_91], %141 {strides = array<i32>} : memref<52x64xbf16, #tpu.memory_space<vmem>>, vector<5x64xbf16>,
    %c0_92 = arith.constant 0 : index
    %c0_93 = arith.constant 0 : index
    %144 = vector.load %arg23[%c0_92, %c0_93] : memref<52x64xbf16, #tpu.memory_space<vmem>>, vector<42x64xbf16>
    %c0_94 = arith.constant 0 : index
    %c0_95 = arith.constant 0 : index
    %c0_96 = arith.constant 0 : index
    %145 = vector.load %arg14[%c0_94, %c0_95, %c0_96] : memref<11x64x64xbf16, #tpu.memory_space<vmem>>, vector<1x64x64xbf16>
    %146 = vector.shape_cast %145 : vector<1x64x64xbf16> to vector<64x64xbf16>
    %cst_97 = arith.constant dense<0.000000e+00> : vector<42x64xf32>
    %147 = tpu.matmul %144, %146, %cst_97 {dimension_numbers = #tpu.dot_dimension_numbers<[1], [0], [0], [1], [0, 0, 1, 1], [], []>} : vector<42x64xbf16>, vector<64x64xbf16>, vector<42x64xf32> -> vector<42x64xf32>
    %c1_98 = arith.constant 1 : index
    %c0_99 = arith.constant 0 : index
    %148 = vector.load %arg23[%c1_98, %c0_99] : memref<52x64xbf16, #tpu.memory_space<vmem>>, vector<42x64xbf16>
    %c1_100 = arith.constant 1 : index
    %c0_101 = arith.constant 0 : index
    %c0_102 = arith.constant 0 : index
    %149 = vector.load %arg14[%c1_100, %c0_101, %c0_102] : memref<11x64x64xbf16, #tpu.memory_space<vmem>>, vector<1x64x64xbf16>
    %150 = vector.shape_cast %149 : vector<1x64x64xbf16> to vector<64x64xbf16>
    %cst_103 = arith.constant dense<0.000000e+00> : vector<42x64xf32>
    %151 = tpu.matmul %148, %150, %cst_103 {dimension_numbers = #tpu.dot_dimension_numbers<[1], [0], [0], [1], [0, 0, 1, 1], [], []>} : vector<42x64xbf16>, vector<64x64xbf16>, vector<42x64xf32> -> vector<42x64xf32>
    %152 = arith.addf %147, %151 : vector<42x64xf32>
    %c2_104 = arith.constant 2 : index
    %c0_105 = arith.constant 0 : index
    %153 = vector.load %arg23[%c2_104, %c0_105] : memref<52x64xbf16, #tpu.memory_space<vmem>>, vector<42x64xbf16>
    %c2_106 = arith.constant 2 : index
    %c0_107 = arith.constant 0 : index
    %c0_108 = arith.constant 0 : index
    %154 = vector.load %arg14[%c2_106, %c0_107, %c0_108] : memref<11x64x64xbf16, #tpu.memory_space<vmem>>, vector<1x64x64xbf16>
    %155 = vector.shape_cast %154 : vector<1x64x64xbf16> to vector<64x64xbf16>
    %cst_109 = arith.constant dense<0.000000e+00> : vector<42x64xf32>
    %156 = tpu.matmul %153, %155, %cst_109 {dimension_numbers = #tpu.dot_dimension_numbers<[1], [0], [0], [1], [0, 0, 1, 1], [], []>} : vector<42x64xbf16>, vector<64x64xbf16>, vector<42x64xf32> -> vector<42x64xf32>
    %157 = arith.addf %152, %156 : vector<42x64xf32>
    %c3_110 = arith.constant 3 : index
    %c0_111 = arith.constant 0 : index
    %158 = vector.load %arg23[%c3_110, %c0_111] : memref<52x64xbf16, #tpu.memory_space<vmem>>, vector<42x64xbf16>
    %c3_112 = arith.constant 3 : index
    %c0_113 = arith.constant 0 : index
    %c0_114 = arith.constant 0 : index
    %159 = vector.load %arg14[%c3_112, %c0_113, %c0_114] : memref<11x64x64xbf16, #tpu.memory_space<vmem>>, vector<1x64x64xbf16>
    %160 = vector.shape_cast %159 : vector<1x64x64xbf16> to vector<64x64xbf16>
    %cst_115 = arith.constant dense<0.000000e+00> : vector<42x64xf32>
    %161 = tpu.matmul %158, %160, %cst_115 {dimension_numbers = #tpu.dot_dimension_numbers<[1], [0], [0], [1], [0, 0, 1, 1], [], []>} : vector<42x64xbf16>, vector<64x64xbf16>, vector<42x64xf32> -> vector<42x64xf32>
    %162 = arith.addf %157, %161 : vector<42x64xf32>
    %c4_116 = arith.constant 4 : index
    %c0_117 = arith.constant 0 : index
    %163 = vector.load %arg23[%c4_116, %c0_117] : memref<52x64xbf16, #tpu.memory_space<vmem>>, vector<42x64xbf16>
    %c4_118 = arith.constant 4 : index
    %c0_119 = arith.constant 0 : index
    %c0_120 = arith.constant 0 : index
    %164 = vector.load %arg14[%c4_118, %c0_119, %c0_120] : memref<11x64x64xbf16, #tpu.memory_space<vmem>>, vector<1x64x64xbf16>
    %165 = vector.shape_cast %164 : vector<1x64x64xbf16> to vector<64x64xbf16>
    %cst_121 = arith.constant dense<0.000000e+00> : vector<42x64xf32>
    %166 = tpu.matmul %163, %165, %cst_121 {dimension_numbers = #tpu.dot_dimension_numbers<[1], [0], [0], [1], [0, 0, 1, 1], [], []>} : vector<42x64xbf16>, vector<64x64xbf16>, vector<42x64xf32> -> vector<42x64xf32>
    %167 = arith.addf %162, %166 : vector<42x64xf32>
    %c5_122 = arith.constant 5 : index
    %c0_123 = arith.constant 0 : index
    %168 = vector.load %arg23[%c5_122, %c0_123] : memref<52x64xbf16, #tpu.memory_space<vmem>>, vector<42x64xbf16>
    %c5_124 = arith.constant 5 : index
    %c0_125 = arith.constant 0 : index
    %c0_126 = arith.constant 0 : index
    %169 = vector.load %arg14[%c5_124, %c0_125, %c0_126] : memref<11x64x64xbf16, #tpu.memory_space<vmem>>, vector<1x64x64xbf16>
    %170 = vector.shape_cast %169 : vector<1x64x64xbf16> to vector<64x64xbf16>
    %cst_127 = arith.constant dense<0.000000e+00> : vector<42x64xf32>
    %171 = tpu.matmul %168, %170, %cst_127 {dimension_numbers = #tpu.dot_dimension_numbers<[1], [0], [0], [1], [0, 0, 1, 1], [], []>} : vector<42x64xbf16>, vector<64x64xbf16>, vector<42x64xf32> -> vector<42x64xf32>
    %172 = arith.addf %167, %171 : vector<42x64xf32>
    %c6_128 = arith.constant 6 : index
    %c0_129 = arith.constant 0 : index
    %173 = vector.load %arg23[%c6_128, %c0_129] : memref<52x64xbf16, #tpu.memory_space<vmem>>, vector<42x64xbf16>
    %c6_130 = arith.constant 6 : index
    %c0_131 = arith.constant 0 : index
    %c0_132 = arith.constant 0 : index
    %174 = vector.load %arg14[%c6_130, %c0_131, %c0_132] : memref<11x64x64xbf16, #tpu.memory_space<vmem>>, vector<1x64x64xbf16>
    %175 = vector.shape_cast %174 : vector<1x64x64xbf16> to vector<64x64xbf16>
    %cst_133 = arith.constant dense<0.000000e+00> : vector<42x64xf32>
    %176 = tpu.matmul %173, %175, %cst_133 {dimension_numbers = #tpu.dot_dimension_numbers<[1], [0], [0], [1], [0, 0, 1, 1], [], []>} : vector<42x64xbf16>, vector<64x64xbf16>, vector<42x64xf32> -> vector<42x64xf32>
    %177 = arith.addf %172, %176 : vector<42x64xf32>
    %c7_134 = arith.constant 7 : index
    %c0_135 = arith.constant 0 : index
    %178 = vector.load %arg23[%c7_134, %c0_135] : memref<52x64xbf16, #tpu.memory_space<vmem>>, vector<42x64xbf16>
    %c7_136 = arith.constant 7 : index
    %c0_137 = arith.constant 0 : index
    %c0_138 = arith.constant 0 : index
    %179 = vector.load %arg14[%c7_136, %c0_137, %c0_138] : memref<11x64x64xbf16, #tpu.memory_space<vmem>>, vector<1x64x64xbf16>
    %180 = vector.shape_cast %179 : vector<1x64x64xbf16> to vector<64x64xbf16>
    %cst_139 = arith.constant dense<0.000000e+00> : vector<42x64xf32>
    %181 = tpu.matmul %178, %180, %cst_139 {dimension_numbers = #tpu.dot_dimension_numbers<[1], [0], [0], [1], [0, 0, 1, 1], [], []>} : vector<42x64xbf16>, vector<64x64xbf16>, vector<42x64xf32> -> vector<42x64xf32>
    %182 = arith.addf %177, %181 : vector<42x64xf32>
    %c8 = arith.constant 8 : index
    %c0_140 = arith.constant 0 : index
    %183 = vector.load %arg23[%c8, %c0_140] : memref<52x64xbf16, #tpu.memory_space<vmem>>, vector<42x64xbf16>
    %c8_141 = arith.constant 8 : index
    %c0_142 = arith.constant 0 : index
    %c0_143 = arith.constant 0 : index
    %184 = vector.load %arg14[%c8_141, %c0_142, %c0_143] : memref<11x64x64xbf16, #tpu.memory_space<vmem>>, vector<1x64x64xbf16>
    %185 = vector.shape_cast %184 : vector<1x64x64xbf16> to vector<64x64xbf16>
    %cst_144 = arith.constant dense<0.000000e+00> : vector<42x64xf32>
    %186 = tpu.matmul %183, %185, %cst_144 {dimension_numbers = #tpu.dot_dimension_numbers<[1], [0], [0], [1], [0, 0, 1, 1], [], []>} : vector<42x64xbf16>, vector<64x64xbf16>, vector<42x64xf32> -> vector<42x64xf32>
    %187 = arith.addf %182, %186 : vector<42x64xf32>
    %c9 = arith.constant 9 : index
    %c0_145 = arith.constant 0 : index
    %188 = vector.load %arg23[%c9, %c0_145] : memref<52x64xbf16, #tpu.memory_space<vmem>>, vector<42x64xbf16>
    %c9_146 = arith.constant 9 : index
    %c0_147 = arith.constant 0 : index
    %c0_148 = arith.constant 0 : index
    %189 = vector.load %arg14[%c9_146, %c0_147, %c0_148] : memref<11x64x64xbf16, #tpu.memory_space<vmem>>, vector<1x64x64xbf16>
    %190 = vector.shape_cast %189 : vector<1x64x64xbf16> to vector<64x64xbf16>
    %cst_149 = arith.constant dense<0.000000e+00> : vector<42x64xf32>
    %191 = tpu.matmul %188, %190, %cst_149 {dimension_numbers = #tpu.dot_dimension_numbers<[1], [0], [0], [1], [0, 0, 1, 1], [], []>} : vector<42x64xbf16>, vector<64x64xbf16>, vector<42x64xf32> -> vector<42x64xf32>
    %192 = arith.addf %187, %191 : vector<42x64xf32>
    %c10 = arith.constant 10 : index
    %c0_150 = arith.constant 0 : index
    %193 = vector.load %arg23[%c10, %c0_150] : memref<52x64xbf16, #tpu.memory_space<vmem>>, vector<42x64xbf16>
    %c10_151 = arith.constant 10 : index
    %c0_152 = arith.constant 0 : index
    %c0_153 = arith.constant 0 : index
    %194 = vector.load %arg14[%c10_151, %c0_152, %c0_153] : memref<11x64x64xbf16, #tpu.memory_space<vmem>>, vector<1x64x64xbf16>
    %195 = vector.shape_cast %194 : vector<1x64x64xbf16> to vector<64x64xbf16>
    %cst_154 = arith.constant dense<0.000000e+00> : vector<42x64xf32>
    %196 = tpu.matmul %193, %195, %cst_154 {dimension_numbers = #tpu.dot_dimension_numbers<[1], [0], [0], [1], [0, 0, 1, 1], [], []>} : vector<42x64xbf16>, vector<64x64xbf16>, vector<42x64xf32> -> vector<42x64xf32>
    %197 = arith.addf %192, %196 : vector<42x64xf32>
    %c0_155 = arith.constant 0 : index
    %c0_156 = arith.constant 0 : index
    %198 = vector.load %arg15[%c0_155, %c0_156] : memref<1x64xf32, #tpu.memory_space<vmem>>, vector<1x64xf32>
    %199 = vector.broadcast %198 : vector<1x64xf32> to vector<42x64xf32>
    %200 = arith.addf %197, %199 : vector<42x64xf32>
    %cst_157 = arith.constant 0.000000e+00 : f32
    %201 = vector.broadcast %cst_157 : f32 to vector<42x64xf32>
    %202 = arith.maximumf %200, %201 : vector<42x64xf32>
    %c0_158 = arith.constant 0 : index
    %c0_159 = arith.constant 0 : index
    %203 = vector.load %arg16[%c0_158, %c0_159] : memref<1x64xf32, #tpu.memory_space<vmem>>, vector<1x64xf32>
    %204 = vector.broadcast %203 : vector<1x64xf32> to vector<42x64xf32>
    %205 = arith.mulf %202, %204 : vector<42x64xf32>
    %c0_160 = arith.constant 0 : index
    %c0_161 = arith.constant 0 : index
    %206 = vector.load %arg17[%c0_160, %c0_161] : memref<1x64xf32, #tpu.memory_space<vmem>>, vector<1x64xf32>
    %207 = vector.broadcast %206 : vector<1x64xf32> to vector<42x64xf32>
    %208 = arith.addf %205, %207 : vector<42x64xf32>
    %209 = arith.truncf %208 : vector<42x64xf32> to vector<42x64xbf16>
    %c0_162 = arith.constant 0 : index
    %c0_163 = arith.constant 0 : index
    %210 = vector.load %arg18[%c0_162, %c0_163] : memref<64x126xbf16, #tpu.memory_space<vmem>>, vector<64x126xbf16>
    %cst_164 = arith.constant dense<0.000000e+00> : vector<42x126xf32>
    %211 = tpu.matmul %209, %210, %cst_164 {dimension_numbers = #tpu.dot_dimension_numbers<[1], [0], [0], [1], [0, 0, 1, 1], [], []>} : vector<42x64xbf16>, vector<64x126xbf16>, vector<42x126xf32> -> vector<42x126xf32>
    %c0_165 = arith.constant 0 : index
    %c0_166 = arith.constant 0 : index
    %212 = vector.load %arg19[%c0_165, %c0_166] : memref<1x126xf32, #tpu.memory_space<vmem>>, vector<1x126xf32>
    %213 = vector.broadcast %212 : vector<1x126xf32> to vector<42x126xf32>
    %214 = arith.addf %211, %213 : vector<42x126xf32>
    %cst_167 = arith.constant 0.000000e+00 : f32
    %215 = vector.broadcast %cst_167 : f32 to vector<42x126xf32>
    %216 = arith.maximumf %214, %215 : vector<42x126xf32>
    %217 = arith.truncf %216 : vector<42x126xf32> to vector<42x126xbf16>
    %c0_168 = arith.constant 0 : index
    %c0_169 = arith.constant 0 : index
    %218 = vector.load %arg20[%c0_168, %c0_169] : memref<126x8xbf16, #tpu.memory_space<vmem>>, vector<126x8xbf16>
    %cst_170 = arith.constant dense<0.000000e+00> : vector<42x8xf32>
    %219 = tpu.matmul %217, %218, %cst_170 {dimension_numbers = #tpu.dot_dimension_numbers<[1], [0], [0], [1], [0, 0, 1, 1], [], []>} : vector<42x126xbf16>, vector<126x8xbf16>, vector<42x8xf32> -> vector<42x8xf32>
    %c0_171 = arith.constant 0 : index
    %c0_172 = arith.constant 0 : index
    %220 = vector.load %arg21[%c0_171, %c0_172] : memref<1x8xf32, #tpu.memory_space<vmem>>, vector<1x8xf32>
    %221 = vector.broadcast %220 : vector<1x8xf32> to vector<42x8xf32>
    %222 = arith.addf %219, %221 : vector<42x8xf32>
    %cst_173 = arith.constant dense<0xFF800000> : vector<42xf32>
    %223 = vector.multi_reduction <maximumf>, %222, %cst_173 [1] : vector<42x8xf32> to vector<42xf32>
    %224 = vector.shape_cast %223 : vector<42xf32> to vector<42x1xf32>
    %225 = vector.broadcast %224 : vector<42x1xf32> to vector<42x8xf32>
    %226 = arith.subf %222, %225 : vector<42x8xf32>
    %227 = math.exp %226 : vector<42x8xf32>
    %cst_174 = arith.constant dense<0.000000e+00> : vector<42xf32>
    %228 = vector.multi_reduction <add>, %227, %cst_174 [1] : vector<42x8xf32> to vector<42xf32>
    %229 = vector.shape_cast %228 : vector<42xf32> to vector<42x1xf32>
    %230 = tpu.reciprocal %229 {approx = true} : vector<42x1xf32> -> vector<42x1xf32>
    %231 = vector.broadcast %230 : vector<42x1xf32> to vector<42x8xf32>
    %232 = arith.mulf %227, %231 : vector<42x8xf32>
    %233 = vector.extract_strided_slice %232 {offsets = [0, 0], sizes = [16, 8], strides = [1, 1]} : vector<42x8xf32> to vector<16x8xf32>
    %c0_175 = arith.constant 0 : index
    %c0_176 = arith.constant 0 : index
    %234 = vector.load %arg22[%c0_175, %c0_176] : memref<32x8xf32, #tpu.memory_space<vmem>>, vector<16x8xf32>
    tpu.vector_store %arg22[%c0_175, %c0_176], %233 {strides = array<i32>} : memref<32x8xf32, #tpu.memory_space<vmem>>, vector<16x8xf32>,
    %235 = vector.extract_strided_slice %232 {offsets = [26, 0], sizes = [16, 8], strides = [1, 1]} : vector<42x8xf32> to vector<16x8xf32>
    %c16 = arith.constant 16 : index
    %c0_177 = arith.constant 0 : index
    %236 = vector.load %arg22[%c16, %c0_177] : memref<32x8xf32, #tpu.memory_space<vmem>>, vector<16x8xf32>
    tpu.vector_store %arg22[%c16, %c0_177], %235 {strides = array<i32>} : memref<32x8xf32, #tpu.memory_space<vmem>>, vector<16x8xf32>,
    return
  }
  func.func @transform_0(%arg0: i32) -> (i32, i32) {
    %c0_i32 = arith.constant 0 : i32
    %c0_i32_0 = arith.constant 0 : i32
    return %arg0, %c0_i32 : i32, i32
  }
  func.func @transform_1(%arg0: i32) -> (i32, i32, i32) {
    %c0_i32 = arith.constant 0 : i32
    %c0_i32_0 = arith.constant 0 : i32
    %c0_i32_1 = arith.constant 0 : i32
    %c0_i32_2 = arith.constant 0 : i32
    return %c0_i32, %c0_i32_0, %c0_i32_1 : i32, i32, i32
  }
  func.func @transform_2(%arg0: i32) -> (i32, i32) {
    %c0_i32 = arith.constant 0 : i32
    %c0_i32_0 = arith.constant 0 : i32
    %c0_i32_1 = arith.constant 0 : i32
    return %c0_i32, %c0_i32_0 : i32, i32
  }
  func.func @transform_3(%arg0: i32) -> (i32, i32) {
    %c0_i32 = arith.constant 0 : i32
    %c0_i32_0 = arith.constant 0 : i32
    %c0_i32_1 = arith.constant 0 : i32
    return %c0_i32, %c0_i32_0 : i32, i32
  }
  func.func @transform_4(%arg0: i32) -> (i32, i32) {
    %c0_i32 = arith.constant 0 : i32
    %c0_i32_0 = arith.constant 0 : i32
    %c0_i32_1 = arith.constant 0 : i32
    return %c0_i32, %c0_i32_0 : i32, i32
  }
  func.func @transform_5(%arg0: i32) -> (i32, i32, i32) {
    %c0_i32 = arith.constant 0 : i32
    %c0_i32_0 = arith.constant 0 : i32
    %c0_i32_1 = arith.constant 0 : i32
    %c0_i32_2 = arith.constant 0 : i32
    return %c0_i32, %c0_i32_0, %c0_i32_1 : i32, i32, i32
  }
  func.func @transform_6(%arg0: i32) -> (i32, i32) {
    %c0_i32 = arith.constant 0 : i32
    %c0_i32_0 = arith.constant 0 : i32
    %c0_i32_1 = arith.constant 0 : i32
    return %c0_i32, %c0_i32_0 : i32, i32
  }
  func.func @transform_7(%arg0: i32) -> (i32, i32) {
    %c0_i32 = arith.constant 0 : i32
    %c0_i32_0 = arith.constant 0 : i32
    %c0_i32_1 = arith.constant 0 : i32
    return %c0_i32, %c0_i32_0 : i32, i32
  }
  func.func @transform_8(%arg0: i32) -> (i32, i32) {
    %c0_i32 = arith.constant 0 : i32
    %c0_i32_0 = arith.constant 0 : i32
    %c0_i32_1 = arith.constant 0 : i32
    return %c0_i32, %c0_i32_0 : i32, i32
  }
  func.func @transform_9(%arg0: i32) -> (i32, i32, i32) {
    %c0_i32 = arith.constant 0 : i32
    %c0_i32_0 = arith.constant 0 : i32
    %c0_i32_1 = arith.constant 0 : i32
    %c0_i32_2 = arith.constant 0 : i32
    return %c0_i32, %c0_i32_0, %c0_i32_1 : i32, i32, i32
  }
  func.func @transform_10(%arg0: i32) -> (i32, i32) {
    %c0_i32 = arith.constant 0 : i32
    %c0_i32_0 = arith.constant 0 : i32
    %c0_i32_1 = arith.constant 0 : i32
    return %c0_i32, %c0_i32_0 : i32, i32
  }
  func.func @transform_11(%arg0: i32) -> (i32, i32) {
    %c0_i32 = arith.constant 0 : i32
    %c0_i32_0 = arith.constant 0 : i32
    %c0_i32_1 = arith.constant 0 : i32
    return %c0_i32, %c0_i32_0 : i32, i32
  }
  func.func @transform_12(%arg0: i32) -> (i32, i32) {
    %c0_i32 = arith.constant 0 : i32
    %c0_i32_0 = arith.constant 0 : i32
    %c0_i32_1 = arith.constant 0 : i32
    return %c0_i32, %c0_i32_0 : i32, i32
  }
  func.func @transform_13(%arg0: i32) -> (i32, i32, i32) {
    %c0_i32 = arith.constant 0 : i32
    %c0_i32_0 = arith.constant 0 : i32
    %c0_i32_1 = arith.constant 0 : i32
    %c0_i32_2 = arith.constant 0 : i32
    return %c0_i32, %c0_i32_0, %c0_i32_1 : i32, i32, i32
  }
  func.func @transform_14(%arg0: i32) -> (i32, i32) {
    %c0_i32 = arith.constant 0 : i32
    %c0_i32_0 = arith.constant 0 : i32
    %c0_i32_1 = arith.constant 0 : i32
    return %c0_i32, %c0_i32_0 : i32, i32
  }
  func.func @transform_15(%arg0: i32) -> (i32, i32) {
    %c0_i32 = arith.constant 0 : i32
    %c0_i32_0 = arith.constant 0 : i32
    %c0_i32_1 = arith.constant 0 : i32
    return %c0_i32, %c0_i32_0 : i32, i32
  }
  func.func @transform_16(%arg0: i32) -> (i32, i32) {
    %c0_i32 = arith.constant 0 : i32
    %c0_i32_0 = arith.constant 0 : i32
    %c0_i32_1 = arith.constant 0 : i32
    return %c0_i32, %c0_i32_0 : i32, i32
  }
  func.func @transform_17(%arg0: i32) -> (i32, i32) {
    %c0_i32 = arith.constant 0 : i32
    %c0_i32_0 = arith.constant 0 : i32
    %c0_i32_1 = arith.constant 0 : i32
    return %c0_i32, %c0_i32_0 : i32, i32
  }
  func.func @transform_18(%arg0: i32) -> (i32, i32) {
    %c0_i32 = arith.constant 0 : i32
    %c0_i32_0 = arith.constant 0 : i32
    %c0_i32_1 = arith.constant 0 : i32
    return %c0_i32, %c0_i32_0 : i32, i32
  }
  func.func @transform_19(%arg0: i32) -> (i32, i32) {
    %c0_i32 = arith.constant 0 : i32
    %c0_i32_0 = arith.constant 0 : i32
    %c0_i32_1 = arith.constant 0 : i32
    return %c0_i32, %c0_i32_0 : i32, i32
  }
  func.func @transform_20(%arg0: i32) -> (i32, i32) {
    %c0_i32 = arith.constant 0 : i32
    %c0_i32_0 = arith.constant 0 : i32
    %c0_i32_1 = arith.constant 0 : i32
    return %c0_i32, %c0_i32_0 : i32, i32
  }
  func.func @transform_21(%arg0: i32) -> (i32, i32) {
    %c0_i32 = arith.constant 0 : i32
    %c0_i32_0 = arith.constant 0 : i32
    return %arg0, %c0_i32 : i32, i32
  }
}

</mosaic_0001>

<llo_original>
// kernel: model_forward.1
$region0: #{model_forward.1}
  #allocation0 [shape = 'u32[]', space=smem, size = 0x4, offset = 0x4, fixed_abs, tag = 'smem constant byte address 0x4 - core index']
  #allocation1 [shape = 'u32[144,128]{1,0:T(1,128)}', space=vmem, size = 0x12000, scoped, tag = 'internal scratch']
  #allocation2 [shape = 'bf16[52,64]{1,0:T(8,128)(2,1)}', space=vmem, size = 0x3800, scoped, tag = 'scratch operand']
  %s0 = inlined_call_operand.vmem [shape: bf16[32,44], index: 0, kind: input, shape index: {}]
  %s1 = inlined_call_operand.vmem [shape: bf16[1,44,44], index: 1, kind: input, shape index: {}]
  %s2 = inlined_call_operand.vmem [shape: f32[1,44], index: 2, kind: input, shape index: {}]
  %s3 = inlined_call_operand.vmem [shape: f32[1,44], index: 3, kind: input, shape index: {}]
  %s4 = inlined_call_operand.vmem [shape: f32[1,44], index: 4, kind: input, shape index: {}]
  %s5 = inlined_call_operand.vmem [shape: bf16[3,44,64], index: 5, kind: input, shape index: {}]
  %s6 = inlined_call_operand.vmem [shape: f32[1,64], index: 6, kind: input, shape index: {}]
  %s7 = inlined_call_operand.vmem [shape: f32[1,64], index: 7, kind: input, shape index: {}]
  %s8 = inlined_call_operand.vmem [shape: f32[1,64], index: 8, kind: input, shape index: {}]
  %s9 = inlined_call_operand.vmem [shape: bf16[5,64,64], index: 9, kind: input, shape index: {}]
  %s10 = inlined_call_operand.vmem [shape: f32[1,64], index: 10, kind: input, shape index: {}]
  %s11 = inlined_call_operand.vmem [shape: f32[1,64], index: 11, kind: input, shape index: {}]
  %s12 = inlined_call_operand.vmem [shape: f32[1,64], index: 12, kind: input, shape index: {}]
  %s13 = inlined_call_operand.vmem [shape: bf16[11,64,64], index: 13, kind: input, shape index: {}]
  %s14 = inlined_call_operand.vmem [shape: f32[1,64], index: 14, kind: input, shape index: {}]
  %s15 = inlined_call_operand.vmem [shape: f32[1,64], index: 15, kind: input, shape index: {}]
  %s16 = inlined_call_operand.vmem [shape: f32[1,64], index: 16, kind: input, shape index: {}]
  %s17 = inlined_call_operand.vmem [shape: bf16[64,126], index: 17, kind: input, shape index: {}]
  %s18 = inlined_call_operand.vmem [shape: f32[1,126], index: 18, kind: input, shape index: {}]
  %s19 = inlined_call_operand.vmem [shape: bf16[126,8], index: 19, kind: input, shape index: {}]
  %s20 = inlined_call_operand.vmem [shape: f32[1,8], index: 20, kind: input, shape index: {}]
  %s21 = inlined_call_operand.vmem [shape: f32[32,8], index: 21, kind: output, shape index: {}]
  %s22 = sld [smem:[#allocation0]]
  $region94: #{model_forward.1} parent=0
    _
  %s24 = ssub.s32 1, %s22
  %s25 = scalar_select 0, %s24, %s22
  // Predicated region
  $region2: #{model_forward.1} parent=0 // pred_check
    _
  $region3: #{model_forward.1} parent=0 // pred_check_branch
    %27 = sbr.rel (0) target = $region5
  $region4: #{model_forward.1} parent=0 // pred_region
    _
  $region5: #{model_forward.1} parent=0 // pred_fallthru
    _
  // Predicated region
  $region6: #{model_forward.1} parent=0 // pred_check
    _
  $region7: #{model_forward.1} parent=0 // pred_check_branch
    %29 = sbr.rel (0) target = $region9
  $region8: #{model_forward.1} parent=0 // pred_region
    _
  $region9: #{model_forward.1} parent=0 // pred_fallthru
    _
  // Predicated region
  $region10: #{model_forward.1} parent=0 // pred_check
    _
  $region11: #{model_forward.1} parent=0 // pred_check_branch
    %31 = sbr.rel (0) target = $region13
  $region12: #{model_forward.1} parent=0 // pred_region
    _
  $region13: #{model_forward.1} parent=0 // pred_fallthru
    _
  // Predicated region
  $region14: #{model_forward.1} parent=0 // pred_check
    _
  $region15: #{model_forward.1} parent=0 // pred_check_branch
    %33 = sbr.rel (0) target = $region17
  $region16: #{model_forward.1} parent=0 // pred_region
    _
  $region17: #{model_forward.1} parent=0 // pred_fallthru
    _
  // Predicated region
  $region18: #{model_forward.1} parent=0 // pred_check
    _
  $region19: #{model_forward.1} parent=0 // pred_check_branch
    %35 = sbr.rel (0) target = $region21
  $region20: #{model_forward.1} parent=0 // pred_region
    _
  $region21: #{model_forward.1} parent=0 // pred_fallthru
    _
  // Predicated region
  $region22: #{model_forward.1} parent=0 // pred_check
    _
  $region23: #{model_forward.1} parent=0 // pred_check_branch
    %37 = sbr.rel (0) target = $region25
  $region24: #{model_forward.1} parent=0 // pred_region
    _
  $region25: #{model_forward.1} parent=0 // pred_fallthru
    _
  // Predicated region
  $region26: #{model_forward.1} parent=0 // pred_check
    _
  $region27: #{model_forward.1} parent=0 // pred_check_branch
    %39 = sbr.rel (0) target = $region29
  $region28: #{model_forward.1} parent=0 // pred_region
    _
  $region29: #{model_forward.1} parent=0 // pred_fallthru
    _
  // Predicated region
  $region30: #{model_forward.1} parent=0 // pred_check
    _
  $region31: #{model_forward.1} parent=0 // pred_check_branch
    %41 = sbr.rel (0) target = $region33
  $region32: #{model_forward.1} parent=0 // pred_region
    _
  $region33: #{model_forward.1} parent=0 // pred_fallthru
    _
  // Predicated region
  $region34: #{model_forward.1} parent=0 // pred_check
    _
  $region35: #{model_forward.1} parent=0 // pred_check_branch
    %43 = sbr.rel (0) target = $region37
  $region36: #{model_forward.1} parent=0 // pred_region
    _
  $region37: #{model_forward.1} parent=0 // pred_fallthru
    _
  // Predicated region
  $region38: #{model_forward.1} parent=0 // pred_check
    _
  $region39: #{model_forward.1} parent=0 // pred_check_branch
    %45 = sbr.rel (0) target = $region41
  $region40: #{model_forward.1} parent=0 // pred_region
    _
  $region41: #{model_forward.1} parent=0 // pred_fallthru
    _
  // Predicated region
  $region42: #{model_forward.1} parent=0 // pred_check
    _
  $region43: #{model_forward.1} parent=0 // pred_check_branch
    %47 = sbr.rel (0) target = $region45
  $region44: #{model_forward.1} parent=0 // pred_region
    _
  $region45: #{model_forward.1} parent=0 // pred_fallthru
    _
  // Predicated region
  $region46: #{model_forward.1} parent=0 // pred_check
    _
  $region47: #{model_forward.1} parent=0 // pred_check_branch
    %49 = sbr.rel (0) target = $region49
  $region48: #{model_forward.1} parent=0 // pred_region
    _
  $region49: #{model_forward.1} parent=0 // pred_fallthru
    _
  // Predicated region
  $region50: #{model_forward.1} parent=0 // pred_check
    _
  $region51: #{model_forward.1} parent=0 // pred_check_branch
    %51 = sbr.rel (0) target = $region53
  $region52: #{model_forward.1} parent=0 // pred_region
    _
  $region53: #{model_forward.1} parent=0 // pred_fallthru
    _
  // Predicated region
  $region54: #{model_forward.1} parent=0 // pred_check
    _
  $region55: #{model_forward.1} parent=0 // pred_check_branch
    %53 = sbr.rel (0) target = $region57
  $region56: #{model_forward.1} parent=0 // pred_region
    _
  $region57: #{model_forward.1} parent=0 // pred_fallthru
    _
  // Predicated region
  $region58: #{model_forward.1} parent=0 // pred_check
    _
  $region59: #{model_forward.1} parent=0 // pred_check_branch
    %55 = sbr.rel (0) target = $region61
  $region60: #{model_forward.1} parent=0 // pred_region
    _
  $region61: #{model_forward.1} parent=0 // pred_fallthru
    _
  // Predicated region
  $region62: #{model_forward.1} parent=0 // pred_check
    _
  $region63: #{model_forward.1} parent=0 // pred_check_branch
    %57 = sbr.rel (0) target = $region65
  $region64: #{model_forward.1} parent=0 // pred_region
    _
  $region65: #{model_forward.1} parent=0 // pred_fallthru
    _
  // Predicated region
  $region66: #{model_forward.1} parent=0 // pred_check
    _
  $region67: #{model_forward.1} parent=0 // pred_check_branch
    %59 = sbr.rel (0) target = $region69
  $region68: #{model_forward.1} parent=0 // pred_region
    _
  $region69: #{model_forward.1} parent=0 // pred_fallthru
    _
  // Predicated region
  $region70: #{model_forward.1} parent=0 // pred_check
    _
  $region71: #{model_forward.1} parent=0 // pred_check_branch
    %61 = sbr.rel (0) target = $region73
  $region72: #{model_forward.1} parent=0 // pred_region
    _
  $region73: #{model_forward.1} parent=0 // pred_fallthru
    _
  // Predicated region
  $region74: #{model_forward.1} parent=0 // pred_check
    _
  $region75: #{model_forward.1} parent=0 // pred_check_branch
    %63 = sbr.rel (0) target = $region77
  $region76: #{model_forward.1} parent=0 // pred_region
    _
  $region77: #{model_forward.1} parent=0 // pred_fallthru
    _
  // Predicated region
  $region78: #{model_forward.1} parent=0 // pred_check
    _
  $region79: #{model_forward.1} parent=0 // pred_check_branch
    %65 = sbr.rel (0) target = $region81
  $region80: #{model_forward.1} parent=0 // pred_region
    _
  $region81: #{model_forward.1} parent=0 // pred_fallthru
    _
  // Predicated region
  $region82: #{model_forward.1} parent=0 // pred_check
    _
  $region83: #{model_forward.1} parent=0 // pred_check_branch
    %67 = sbr.rel (0) target = $region85
  $region84: #{model_forward.1} parent=0 // pred_region
    _
  $region85: #{model_forward.1} parent=0 // pred_fallthru
    _
  %v69 = vld [vmem:[%s0] sm:$0xf]
  %v70 = vld [vmem:[%s0 + $0x4] sm:$0xf]
  %v71 = vld [vmem:[%s0 + $0x8] sm:$0xf]
  %v72 = vld [vmem:[%s0 + $0xc] sm:$0xf]
  %v73 = vld [vmem:[%s1] sm:$0xf]
  %v74 = vld [vmem:[%s1 + $0x4] sm:$0xf]
  %v75 = vld [vmem:[%s1 + $0x8] sm:$0xf]
  %v76 = vld [vmem:[%s1 + $0xc] sm:$0xf]
  %v77 = vld [vmem:[%s1 + $0x10] sm:$0xf]
  %v78 = vld [vmem:[%s1 + $0x14] sm:$0x3]
  %v79 = vld [vmem:[%s2] sm:$0x1]
  %v81 = vlaneseq
  %v82 = vshrl.u32 %v81, 7
  %v83 = vsub.s32 0, %v82
  %v84 = vrot.slane %v79, %v83
  %v90 = vunpack.c.l.b16 %v69
  %v91 = vunpack.c.l.b16 %v70
  %v92 = vunpack.c.l.b16 %v71
  %v93 = vunpack.c.l.b16 %v72
  %v94 = vpack.c.b16 %v91, %v90
  %v95 = vpack.c.b16 %v93, %v92
  %v102 = vunpack.c.l.b16 %v73
  %v103 = vunpack.c.l.b16 %v74
  %v104 = vunpack.c.l.b16 %v75
  %v105 = vunpack.c.l.b16 %v76
  %v106 = vunpack.c.l.b16 %v77
  %v107 = vunpack.c.l.b16 %v78
  %v108 = vpack.c.b16 %v103, %v102
  %v109 = vpack.c.b16 %v105, %v104
  %v110 = vpack.c.b16 %v107, %v106
  %vm113 = vcmask 359424
  %v115 = vsel %vm113, %v94, 0
  %v118 = vsel %vm113, %v95, 0
  %vm120 = vcmask 1045504
  %v122 = vsel %vm120, %v110, 0
  %124 = vmatprep.subr.bf16.mxu0 0
  %125 = vmatpush1.bf16.msra.mxu0 0
  %126 = vmatprep.subr.bf16.mxu0 0
  %127 = vmatpush1.bf16.msra.mxu0 0
  %128 = vmatprep.subr.bf16.mxu0 0
  %129 = vmatpush1.bf16.msra.mxu0 0
  %130 = vmatprep.subr.bf16.mxu0 0
  %131 = vmatpush1.bf16.msra.mxu0 0
  %132 = vmatprep.subr.bf16.mxu0 0
  %133 = vmatpush1.bf16.msra.mxu0 0
  %134 = vmatprep.subr.bf16.mxu0 0
  %135 = vmatpush1.bf16.msra.mxu0 %v122
  %136 = vmatprep.subr.bf16.mxu0 0
  %137 = vmatpush1.bf16.msra.mxu0 %v109
  %138 = vmatprep.subr.bf16.mxu0 0
  %139 = vmatpush1.bf16.msra.mxu0 %v108
  %140 = vmatprep.subr.bf16.mxu0 0
  %141 = vmatpush2.bf16.msra.mxu0 0
  %142 = vmatprep.subr.bf16.mxu0 0
  %143 = vmatpush2.bf16.msra.mxu0 0
  %144 = vmatprep.subr.bf16.mxu0 0
  %145 = vmatpush2.bf16.msra.mxu0 0
  %146 = vmatprep.subr.bf16.mxu0 0
  %147 = vmatpush2.bf16.msra.mxu0 0
  %148 = vmatprep.subr.bf16.mxu0 0
  %149 = vmatpush2.bf16.msra.mxu0 0
  %150 = vmatprep.subr.bf16.mxu0 0
  %151 = vmatpush2.bf16.msra.mxu0 0
  %152 = vmatprep.subr.bf16.mxu0 0
  %153 = vmatpush2.bf16.msra.mxu0 0
  %154 = vmatprep.subr.bf16.mxu0 0
  %155 = vmatpush2.bf16.msra.mxu0 0
  %156 = vmatprep.mubr.bf16.mxu0 0
  %157 = vmatmul.mubr.bf16.gmra.mxu0 %v115
  %v158 = vpop.f32.mrf.mxu0
  %v159 = vadd.f32 %v84, %v158
  %v160 = vpop.f32.mrf.mxu0
  %v161 = vpop.f32.mrf.mxu0
  %v162 = vadd.f32 %v84, %v161
  %v163 = vpop.f32.mrf.mxu0
  %164 = vmatprep.mubr.bf16.mxu0 0
  %165 = vmatmul.mubr.bf16.gmra.mxu0 %v118
  %v166 = vpop.f32.mrf.mxu0
  %v167 = vadd.f32 %v84, %v166
  %v168 = vpop.f32.mrf.mxu0
  %v169 = vpop.f32.mrf.mxu0
  %v170 = vadd.f32 %v84, %v169
  %v171 = vpop.f32.mrf.mxu0
  %172 = vdwg.mxu0
  %v173 = vmax.f32 %v159, 0.0
  %v174 = vmax.f32 %v162, 0.0
  %v175 = vmax.f32 %v167, 0.0
  %v176 = vmax.f32 %v170, 0.0
  %v177 = vld [vmem:[%s3] sm:$0x1]
  %v179 = vlaneseq
  %v180 = vshrl.u32 %v179, 7
  %v181 = vsub.s32 0, %v180
  %v182 = vrot.slane %v177, %v181
  %v184 = vmul.f32 %v173, %v182
  %v185 = vmul.f32 %v174, %v182
  %v186 = vmul.f32 %v175, %v182
  %v187 = vmul.f32 %v176, %v182
  %v188 = vld [vmem:[%s4] sm:$0x1]
  %v190 = vlaneseq
  %v191 = vshrl.u32 %v190, 7
  %v192 = vsub.s32 0, %v191
  %v193 = vrot.slane %v188, %v192
  %v195 = vadd.f32 %v184, %v193
  %v196 = vadd.f32 %v185, %v193
  %v197 = vadd.f32 %v186, %v193
  %v198 = vadd.f32 %v187, %v193
  %v199 = vpack.c.bf16 %v196, %v195
  %v200 = vpack.c.bf16 %v198, %v197
  %v202 = vunpack.c.l.b16 %v199
  %v203 = vunpack.c.h.b16 %v199
  %v204 = vpack.c.b16 %v202, %v202
  %v205 = vpack.c.b16 %v203, %v203
  %vm206 = vsmask.f32 2304
  %vm207 = vsmask.f32 6416
  %vm208 = vmor %vm206, %vm207
  %v210 = vshrl.u32 %v204, 16
  %v212 = vrot.slane %v210, 5
  %v213 = vshll.u32 %v204, 16
  %v215 = vrot.slane %v213, 6
  %v216 = vor.u32 %v212, %v215
  %v217 = vrot.slane %v216, 4
  %v219 = vshrl.u32 %v205, 16
  %v221 = vrot.slane %v219, 5
  %v222 = vshll.u32 %v205, 16
  %v224 = vrot.slane %v222, 6
  %v225 = vor.u32 %v221, %v224
  %v226 = vsel %vm208, %v217, %v225
  %v227 = vrot.slane %v225, 4
  %vm231 = vcmask 355330
  %vm232 = vsmask.f32 7946
  %vm233 = vmand %vm231, %vm232
  %v234 = vld [vmem:[#allocation2] sm:$0xc]
  %v235 = vsel %vm233, %v216, %v234
  %236 = vst [vmem:[#allocation2] sm:$0xc] %v235
  %vm237 = vcmask 355328
  %238 = vst.msk [vmem:[#allocation2 + $0x4] sm:$0xf] %vm237, %v226
  %vm239 = vcmask 354304
  %vm240 = vmand %vm239, %vm206
  %v241 = vld [vmem:[#allocation2 + $0x8] sm:$0x7]
  %v242 = vsel %vm240, %v227, %v241
  %243 = vst [vmem:[#allocation2 + $0x8] sm:$0x7] %v242
  %v245 = vunpack.c.l.b16 %v200
  %v246 = vunpack.c.h.b16 %v200
  %v247 = vpack.c.b16 %v245, %v245
  %v248 = vpack.c.b16 %v246, %v246
  %vm249 = vsmask.f32 3328
  %vm250 = vsmask.f32 7440
  %vm251 = vmor %vm249, %vm250
  %v253 = vshll.u32 %v247, 16
  %v255 = vrot.slane %v253, 5
  %v256 = vshrl.u32 %v247, 16
  %v258 = vrot.slane %v256, 4
  %v259 = vor.u32 %v258, %v255
  %v260 = vrot.slane %v259, 4
  %v262 = vshll.u32 %v248, 16
  %v264 = vrot.slane %v262, 5
  %v265 = vsel %vm251, %v260, %v264
  %v266 = vshrl.u32 %v248, 16
  %v268 = vrot.slane %v266, 4
  %v269 = vor.u32 %v268, %v264
  %v270 = vrot.slane %v269, 4
  %vm274 = vcmask 355331
  %vm275 = vsmask.f32 7950
  %vm276 = vmand %vm274, %vm275
  %v277 = vld [vmem:[#allocation2 + $0xc] sm:$0x8]
  %v278 = vsel %vm276, %v255, %v277
  %279 = vst [vmem:[#allocation2 + $0xc] sm:$0x8] %v278
  %280 = vst.msk [vmem:[#allocation2 + $0x10] sm:$0xf] %vm237, %v265
  %vm281 = vcmask 355328
  %vm282 = vmand %vm281, %vm249
  %v283 = vld [vmem:[#allocation2 + $0x14] sm:$0xf]
  %v284 = vsel %vm282, %v270, %v283
  %285 = vst [vmem:[#allocation2 + $0x14] sm:$0xf] %v284
  %v286 = vrot.slane %v210, 6
  %vm288 = vcmask 354306
  %vm289 = vmand %vm288, %vm206
  %v290 = vld [vmem:[#allocation2] sm:$0x4]
  %v291 = vsel %vm289, %v286, %v290
  %292 = vst [vmem:[#allocation2] sm:$0x4] %v291
  %v293 = vrot.slane %v222, 5
  %v294 = vrot.slane %v293, 4
  %vm296 = vmand %vm288, %vm232
  %v297 = vld [vmem:[#allocation2 + $0x8] sm:$0x4]
  %v298 = vsel %vm296, %v294, %v297
  %299 = vst [vmem:[#allocation2 + $0x8] sm:$0x4] %v298
  %v300 = vrot.slane %v256, 5
  %vm302 = vmand %vm274, %vm249
  %v303 = vld [vmem:[#allocation2 + $0xc] sm:$0x8]
  %v304 = vsel %vm302, %v300, %v303
  %305 = vst [vmem:[#allocation2 + $0xc] sm:$0x8] %v304
  %v307 = vld [vmem:[#allocation2 + $0x14] sm:$0x8]
  %v308 = vsel %vm276, %v262, %v307
  %309 = vst [vmem:[#allocation2 + $0x14] sm:$0x8] %v308
  %v310 = vld [vmem:[#allocation2] sm:$0xc]
  %v311 = vld [vmem:[#allocation2 + $0x4] sm:$0xf]
  %v312 = vld [vmem:[#allocation2 + $0x8] sm:$0xf]
  %v313 = vld [vmem:[#allocation2 + $0xc] sm:$0xf]
  %v314 = vld [vmem:[#allocation2 + $0x10] sm:$0xf]
  %v315 = vld [vmem:[#allocation2 + $0x14] sm:$0x7]
  %v316 = vld [vmem:[%s5] sm:$0xf]
  %v317 = vld [vmem:[%s5 + $0x4] sm:$0xf]
  %v318 = vld [vmem:[%s5 + $0x8] sm:$0xf]
  %v319 = vld [vmem:[%s5 + $0xc] sm:$0xf]
  %v320 = vld [vmem:[%s5 + $0x10] sm:$0xf]
  %v321 = vld [vmem:[%s5 + $0x14] sm:$0x3]
  %v322 = vld [vmem:[#allocation2 + $0x14] sm:$0xf]
  %s323 = scalar_lea.vmem %s5, 24
  %v324 = vld [vmem:[%s323] sm:$0xf]
  %v325 = vld [vmem:[%s323 + $0x4] sm:$0xf]
  %v326 = vld [vmem:[%s323 + $0x8] sm:$0xf]
  %v327 = vld [vmem:[%s323 + $0xc] sm:$0xf]
  %v328 = vld [vmem:[%s323 + $0x10] sm:$0xf]
  %v329 = vld [vmem:[%s323 + $0x14] sm:$0x3]
  %v336 = vunpack.c.l.b16 %v310
  %v337 = vunpack.c.l.b16 %v311
  %v338 = vunpack.c.l.b16 %v312
  %v339 = vunpack.c.l.b16 %v313
  %v340 = vunpack.c.l.b16 %v314
  %v341 = vunpack.c.l.b16 %v322
  %v342 = vpack.c.b16 %v337, %v336
  %v343 = vpack.c.b16 %v339, %v338
  %v344 = vpack.c.b16 %v341, %v340
  %vm345 = vsmask.f32 5376
  %v347 = vshrl.u32 %v342, 16
  %v349 = vrot.slane %v347, 2
  %v350 = vshll.u32 %v342, 16
  %v352 = vrot.slane %v350, 3
  %v353 = vor.u32 %v349, %v352
  %v355 = vshrl.u32 %v343, 16
  %v357 = vrot.slane %v355, 2
  %v358 = vshll.u32 %v343, 16
  %v360 = vrot.slane %v358, 3
  %v361 = vor.u32 %v357, %v360
  %v362 = vsel %vm345, %v353, %v361
  %v364 = vshrl.u32 %v344, 16
  %v366 = vrot.slane %v364, 2
  %v367 = vshll.u32 %v344, 16
  %v369 = vrot.slane %v367, 3
  %v370 = vor.u32 %v366, %v369
  %v371 = vsel %vm345, %v361, %v370
  %v378 = vunpack.c.l.b16 %v324
  %v379 = vunpack.c.l.b16 %v325
  %v380 = vunpack.c.l.b16 %v326
  %v381 = vunpack.c.l.b16 %v327
  %v382 = vunpack.c.l.b16 %v328
  %v383 = vunpack.c.l.b16 %v329
  %v384 = vpack.c.b16 %v379, %v378
  %v385 = vpack.c.b16 %v381, %v380
  %v386 = vpack.c.b16 %v383, %v382
  %v390 = vsel %vm113, %v362, 0
  %v393 = vsel %vm113, %v371, 0
  %v396 = vsel %vm113, %v370, 0
  %v399 = vsel %vm120, %v386, 0
  %401 = vmatprep.subr.bf16.mxu0 0
  %402 = vmatpush1.bf16.msra.mxu0 0
  %403 = vmatprep.subr.bf16.mxu0 0
  %404 = vmatpush1.bf16.msra.mxu0 0
  %405 = vmatprep.subr.bf16.mxu0 0
  %406 = vmatpush1.bf16.msra.mxu0 0
  %407 = vmatprep.subr.bf16.mxu0 0
  %408 = vmatpush1.bf16.msra.mxu0 0
  %409 = vmatprep.subr.bf16.mxu0 0
  %410 = vmatpush1.bf16.msra.mxu0 0
  %411 = vmatprep.subr.bf16.mxu0 0
  %412 = vmatpush1.bf16.msra.mxu0 %v399
  %413 = vmatprep.subr.bf16.mxu0 0
  %414 = vmatpush1.bf16.msra.mxu0 %v385
  %415 = vmatprep.subr.bf16.mxu0 0
  %416 = vmatpush1.bf16.msra.mxu0 %v384
  %417 = vmatprep.subr.bf16.mxu0 0
  %418 = vmatpush2.bf16.msra.mxu0 0
  %419 = vmatprep.subr.bf16.mxu0 0
  %420 = vmatpush2.bf16.msra.mxu0 0
  %421 = vmatprep.subr.bf16.mxu0 0
  %422 = vmatpush2.bf16.msra.mxu0 0
  %423 = vmatprep.subr.bf16.mxu0 0
  %424 = vmatpush2.bf16.msra.mxu0 0
  %425 = vmatprep.subr.bf16.mxu0 0
  %426 = vmatpush2.bf16.msra.mxu0 0
  %427 = vmatprep.subr.bf16.mxu0 0
  %428 = vmatpush2.bf16.msra.mxu0 0
  %429 = vmatprep.subr.bf16.mxu0 0
  %430 = vmatpush2.bf16.msra.mxu0 0
  %431 = vmatprep.subr.bf16.mxu0 0
  %432 = vmatpush2.bf16.msra.mxu0 0
  %433 = vmatprep.mubr.bf16.mxu0 0
  %434 = vmatmul.mubr.bf16.gmra.mxu0 %v390
  %v435 = vpop.f32.mrf.mxu0
  %v436 = vadd.f32 0.0, %v435
  %v437 = vpop.f32.mrf.mxu0
  %v438 = vpop.f32.mrf.mxu0
  %v439 = vadd.f32 0.0, %v438
  %v440 = vpop.f32.mrf.mxu0
  %441 = vmatprep.mubr.bf16.mxu0 0
  %442 = vmatmul.mubr.bf16.gmra.mxu0 %v393
  %v443 = vpop.f32.mrf.mxu0
  %v444 = vadd.f32 0.0, %v443
  %v445 = vpop.f32.mrf.mxu0
  %v446 = vpop.f32.mrf.mxu0
  %v447 = vadd.f32 0.0, %v446
  %v448 = vpop.f32.mrf.mxu0
  %449 = vmatprep.mubr.bf16.mxu0 0
  %450 = vmatmul.mubr.bf16.gmra.mxu0 %v396
  %v451 = vpop.f32.mrf.mxu0
  %v452 = vadd.f32 0.0, %v451
  %v453 = vpop.f32.mrf.mxu0
  %v454 = vpop.f32.mrf.mxu0
  %v455 = vadd.f32 0.0, %v454
  %v456 = vpop.f32.mrf.mxu0
  %457 = vdwg.mxu0
  %v459 = vunpack.c.l.b16 %v315
  %v460 = vpack.c.b16 %v459, %v340
  %vm461 = vcmask 1045504
  %v462 = vrot.slane %v342, 2
  %v463 = vrot.slane %v343, 2
  %v464 = vsel %vm461, %v462, %v463
  %v465 = vrot.slane %v460, 2
  %v466 = vsel %vm461, %v463, %v465
  %v473 = vunpack.c.l.b16 %v316
  %v474 = vunpack.c.l.b16 %v317
  %v475 = vunpack.c.l.b16 %v318
  %v476 = vunpack.c.l.b16 %v319
  %v477 = vunpack.c.l.b16 %v320
  %v478 = vunpack.c.l.b16 %v321
  %v479 = vpack.c.b16 %v474, %v473
  %v480 = vpack.c.b16 %v476, %v475
  %v481 = vpack.c.b16 %v478, %v477
  %v485 = vsel %vm113, %v464, 0
  %v488 = vsel %vm113, %v466, 0
  %v491 = vsel %vm113, %v465, 0
  %v494 = vsel %vm120, %v481, 0
  %496 = vmatprep.subr.bf16.mxu0 0
  %497 = vmatpush1.bf16.msra.mxu0 0
  %498 = vmatprep.subr.bf16.mxu0 0
  %499 = vmatpush1.bf16.msra.mxu0 0
  %500 = vmatprep.subr.bf16.mxu0 0
  %501 = vmatpush1.bf16.msra.mxu0 0
  %502 = vmatprep.subr.bf16.mxu0 0
  %503 = vmatpush1.bf16.msra.mxu0 0
  %504 = vmatprep.subr.bf16.mxu0 0
  %505 = vmatpush1.bf16.msra.mxu0 0
  %506 = vmatprep.subr.bf16.mxu0 0
  %507 = vmatpush1.bf16.msra.mxu0 %v494
  %508 = vmatprep.subr.bf16.mxu0 0
  %509 = vmatpush1.bf16.msra.mxu0 %v480
  %510 = vmatprep.subr.bf16.mxu0 0
  %511 = vmatpush1.bf16.msra.mxu0 %v479
  %512 = vmatprep.subr.bf16.mxu0 0
  %513 = vmatpush2.bf16.msra.mxu0 0
  %514 = vmatprep.subr.bf16.mxu0 0
  %515 = vmatpush2.bf16.msra.mxu0 0
  %516 = vmatprep.subr.bf16.mxu0 0
  %517 = vmatpush2.bf16.msra.mxu0 0
  %518 = vmatprep.subr.bf16.mxu0 0
  %519 = vmatpush2.bf16.msra.mxu0 0
  %520 = vmatprep.subr.bf16.mxu0 0
  %521 = vmatpush2.bf16.msra.mxu0 0
  %522 = vmatprep.subr.bf16.mxu0 0
  %523 = vmatpush2.bf16.msra.mxu0 0
  %524 = vmatprep.subr.bf16.mxu0 0
  %525 = vmatpush2.bf16.msra.mxu0 0
  %526 = vmatprep.subr.bf16.mxu0 0
  %527 = vmatpush2.bf16.msra.mxu0 0
  %528 = vmatprep.mubr.bf16.mxu0 0
  %529 = vmatmul.mubr.bf16.gmra.mxu0 %v485
  %v530 = vpop.f32.mrf.mxu0
  %v531 = vadd.f32 %v436, %v530
  %v532 = vpop.f32.mrf.mxu0
  %v533 = vpop.f32.mrf.mxu0
  %v534 = vadd.f32 %v439, %v533
  %v535 = vpop.f32.mrf.mxu0
  %536 = vmatprep.mubr.bf16.mxu0 0
  %537 = vmatmul.mubr.bf16.gmra.mxu0 %v488
  %v538 = vpop.f32.mrf.mxu0
  %v539 = vadd.f32 %v444, %v538
  %v540 = vpop.f32.mrf.mxu0
  %v541 = vpop.f32.mrf.mxu0
  %v542 = vadd.f32 %v447, %v541
  %v543 = vpop.f32.mrf.mxu0
  %544 = vmatprep.mubr.bf16.mxu0 0
  %545 = vmatmul.mubr.bf16.gmra.mxu0 %v491
  %v546 = vpop.f32.mrf.mxu0
  %v547 = vadd.f32 %v452, %v546
  %v548 = vpop.f32.mrf.mxu0
  %v549 = vpop.f32.mrf.mxu0
  %v550 = vadd.f32 %v455, %v549
  %v551 = vpop.f32.mrf.mxu0
  %552 = vdwg.mxu0
  %v553 = vld [vmem:[#allocation2] sm:$0x8]
  %s554 = scalar_lea.vmem %s5, 48
  %v555 = vld [vmem:[%s554] sm:$0xf]
  %v556 = vld [vmem:[%s554 + $0x4] sm:$0xf]
  %v557 = vld [vmem:[%s554 + $0x8] sm:$0xf]
  %v558 = vld [vmem:[%s554 + $0xc] sm:$0xf]
  %v559 = vld [vmem:[%s554 + $0x10] sm:$0xf]
  %v560 = vld [vmem:[%s554 + $0x14] sm:$0x3]
  %v562 = vunpack.c.l.b16 %v553
  %v563 = vpack.c.b16 %v337, %v562
  %vm564 = vcmask 1044480
  %v565 = vrot.slane %v563, 3
  %v566 = vrot.slane %v343, 3
  %v567 = vsel %vm564, %v565, %v566
  %v568 = vrot.slane %v344, 3
  %v569 = vsel %vm564, %v566, %v568
  %v576 = vunpack.c.l.b16 %v555
  %v577 = vunpack.c.l.b16 %v556
  %v578 = vunpack.c.l.b16 %v557
  %v579 = vunpack.c.l.b16 %v558
  %v580 = vunpack.c.l.b16 %v559
  %v581 = vunpack.c.l.b16 %v560
  %v582 = vpack.c.b16 %v577, %v576
  %v583 = vpack.c.b16 %v579, %v578
  %v584 = vpack.c.b16 %v581, %v580
  %v588 = vsel %vm113, %v567, 0
  %v591 = vsel %vm113, %v569, 0
  %v594 = vsel %vm113, %v568, 0
  %v597 = vsel %vm120, %v584, 0
  %599 = vmatprep.subr.bf16.mxu0 0
  %600 = vmatpush1.bf16.msra.mxu0 0
  %601 = vmatprep.subr.bf16.mxu0 0
  %602 = vmatpush1.bf16.msra.mxu0 0
  %603 = vmatprep.subr.bf16.mxu0 0
  %604 = vmatpush1.bf16.msra.mxu0 0
  %605 = vmatprep.subr.bf16.mxu0 0
  %606 = vmatpush1.bf16.msra.mxu0 0
  %607 = vmatprep.subr.bf16.mxu0 0
  %608 = vmatpush1.bf16.msra.mxu0 0
  %609 = vmatprep.subr.bf16.mxu0 0
  %610 = vmatpush1.bf16.msra.mxu0 %v597
  %611 = vmatprep.subr.bf16.mxu0 0
  %612 = vmatpush1.bf16.msra.mxu0 %v583
  %613 = vmatprep.subr.bf16.mxu0 0
  %614 = vmatpush1.bf16.msra.mxu0 %v582
  %615 = vmatprep.subr.bf16.mxu0 0
  %616 = vmatpush2.bf16.msra.mxu0 0
  %617 = vmatprep.subr.bf16.mxu0 0
  %618 = vmatpush2.bf16.msra.mxu0 0
  %619 = vmatprep.subr.bf16.mxu0 0
  %620 = vmatpush2.bf16.msra.mxu0 0
  %621 = vmatprep.subr.bf16.mxu0 0
  %622 = vmatpush2.bf16.msra.mxu0 0
  %623 = vmatprep.subr.bf16.mxu0 0
  %624 = vmatpush2.bf16.msra.mxu0 0
  %625 = vmatprep.subr.bf16.mxu0 0
  %626 = vmatpush2.bf16.msra.mxu0 0
  %627 = vmatprep.subr.bf16.mxu0 0
  %628 = vmatpush2.bf16.msra.mxu0 0
  %629 = vmatprep.subr.bf16.mxu0 0
  %630 = vmatpush2.bf16.msra.mxu0 0
  %631 = vmatprep.mubr.bf16.mxu0 0
  %632 = vmatmul.mubr.bf16.gmra.mxu0 %v588
  %v633 = vpop.f32.mrf.mxu0
  %v634 = vadd.f32 0.0, %v633
  %v635 = vpop.f32.mrf.mxu0
  %v636 = vpop.f32.mrf.mxu0
  %v637 = vadd.f32 0.0, %v636
  %v638 = vpop.f32.mrf.mxu0
  %639 = vmatprep.mubr.bf16.mxu0 0
  %640 = vmatmul.mubr.bf16.gmra.mxu0 %v591
  %v641 = vpop.f32.mrf.mxu0
  %v642 = vadd.f32 0.0, %v641
  %v643 = vpop.f32.mrf.mxu0
  %v644 = vpop.f32.mrf.mxu0
  %v645 = vadd.f32 0.0, %v644
  %v646 = vpop.f32.mrf.mxu0
  %647 = vmatprep.mubr.bf16.mxu0 0
  %648 = vmatmul.mubr.bf16.gmra.mxu0 %v594
  %v649 = vpop.f32.mrf.mxu0
  %v650 = vadd.f32 0.0, %v649
  %v651 = vpop.f32.mrf.mxu0
  %v652 = vpop.f32.mrf.mxu0
  %v653 = vadd.f32 0.0, %v652
  %v654 = vpop.f32.mrf.mxu0
  %655 = vdwg.mxu0
  %v656 = vadd.f32 %v531, %v634
  %v657 = vadd.f32 %v534, %v637
  %v658 = vadd.f32 %v539, %v642
  %v659 = vadd.f32 %v542, %v645
  %v660 = vadd.f32 %v547, %v650
  %v661 = vadd.f32 %v550, %v653
  %v662 = vld [vmem:[%s6] sm:$0x1]
  %v664 = vlaneseq
  %v665 = vshrl.u32 %v664, 7
  %v666 = vsub.s32 0, %v665
  %v667 = vrot.slane %v662, %v666
  %v669 = vadd.f32 %v656, %v667
  %v670 = vadd.f32 %v657, %v667
  %v671 = vadd.f32 %v658, %v667
  %v672 = vadd.f32 %v659, %v667
  %v673 = vadd.f32 %v660, %v667
  %v674 = vadd.f32 %v661, %v667
  %v675 = vmax.f32 %v669, 0.0
  %v676 = vmax.f32 %v670, 0.0
  %v677 = vmax.f32 %v671, 0.0
  %v678 = vmax.f32 %v672, 0.0
  %v679 = vmax.f32 %v673, 0.0
  %v680 = vmax.f32 %v674, 0.0
  %v681 = vld [vmem:[%s7] sm:$0x1]
  %v683 = vlaneseq
  %v684 = vshrl.u32 %v683, 7
  %v685 = vsub.s32 0, %v684
  %v686 = vrot.slane %v681, %v685
  %v688 = vmul.f32 %v675, %v686
  %v689 = vmul.f32 %v676, %v686
  %v690 = vmul.f32 %v677, %v686
  %v691 = vmul.f32 %v678, %v686
  %v692 = vmul.f32 %v679, %v686
  %v693 = vmul.f32 %v680, %v686
  %v694 = vld [vmem:[%s8] sm:$0x1]
  %v696 = vlaneseq
  %v697 = vshrl.u32 %v696, 7
  %v698 = vsub.s32 0, %v697
  %v699 = vrot.slane %v694, %v698
  %v701 = vadd.f32 %v688, %v699
  %v702 = vadd.f32 %v689, %v699
  %v703 = vadd.f32 %v690, %v699
  %v704 = vadd.f32 %v691, %v699
  %v705 = vadd.f32 %v692, %v699
  %v706 = vadd.f32 %v693, %v699
  %v707 = vpack.c.bf16 %v702, %v701
  %v708 = vpack.c.bf16 %v704, %v703
  %v709 = vpack.c.bf16 %v706, %v705
  %v713 = vunpack.c.l.b16 %v707
  %v714 = vunpack.c.h.b16 %v707
  %v715 = vunpack.c.l.b16 %v708
  %v716 = vunpack.c.h.b16 %v708
  %v717 = vunpack.c.l.b16 %v709
  %v718 = vunpack.c.h.b16 %v709
  %v719 = vpack.c.b16 %v713, %v713
  %v720 = vpack.c.b16 %v714, %v714
  %v721 = vpack.c.b16 %v715, %v715
  %v722 = vpack.c.b16 %v716, %v716
  %v723 = vpack.c.b16 %v717, %v717
  %v724 = vpack.c.b16 %v718, %v718
  %v726 = vshrl.u32 %v719, 16
  %v728 = vrot.slane %v726, 5
  %v729 = vshll.u32 %v719, 16
  %v731 = vrot.slane %v729, 6
  %v732 = vor.u32 %v728, %v731
  %v733 = vrot.slane %v732, 4
  %v735 = vshrl.u32 %v720, 16
  %v737 = vrot.slane %v735, 5
  %v738 = vshll.u32 %v720, 16
  %v740 = vrot.slane %v738, 6
  %v741 = vor.u32 %v737, %v740
  %v742 = vsel %vm208, %v733, %v741
  %v743 = vrot.slane %v741, 4
  %v745 = vshrl.u32 %v721, 16
  %v747 = vrot.slane %v745, 5
  %v748 = vshll.u32 %v721, 16
  %v750 = vrot.slane %v748, 6
  %v751 = vor.u32 %v747, %v750
  %v752 = vsel %vm208, %v743, %v751
  %v753 = vrot.slane %v751, 4
  %v755 = vshrl.u32 %v722, 16
  %v757 = vrot.slane %v755, 5
  %v758 = vshll.u32 %v722, 16
  %v760 = vrot.slane %v758, 6
  %v761 = vor.u32 %v757, %v760
  %v762 = vsel %vm208, %v753, %v761
  %v763 = vrot.slane %v761, 4
  %v765 = vshrl.u32 %v723, 16
  %v767 = vrot.slane %v765, 5
  %v768 = vshll.u32 %v723, 16
  %v770 = vrot.slane %v768, 6
  %v771 = vor.u32 %v767, %v770
  %v772 = vsel %vm208, %v763, %v771
  %v773 = vrot.slane %v771, 4
  %v775 = vshrl.u32 %v724, 16
  %v777 = vrot.slane %v775, 5
  %v778 = vshll.u32 %v724, 16
  %v780 = vrot.slane %v778, 6
  %v781 = vor.u32 %v777, %v780
  %v782 = vsel %vm208, %v773, %v781
  %vm789 = vcmask 519170
  %vm790 = vmand %vm789, %vm232
  %v791 = vsel %vm790, %v732, %v310
  %792 = vst [vmem:[#allocation2] sm:$0xc] %v791
  %vm793 = vcmask 519168
  %794 = vst.msk [vmem:[#allocation2 + $0x4] sm:$0xf] %vm793, %v742
  %795 = vst.msk [vmem:[#allocation2 + $0x8] sm:$0xf] %vm793, %v752
  %796 = vst.msk [vmem:[#allocation2 + $0xc] sm:$0xf] %vm793, %v762
  %797 = vst.msk [vmem:[#allocation2 + $0x10] sm:$0xf] %vm793, %v772
  %vm798 = vcmask 519168
  %vm799 = vmand %vm798, %vm249
  %v800 = vld [vmem:[#allocation2 + $0x14] sm:$0xf]
  %v801 = vsel %vm799, %v782, %v800
  %802 = vst [vmem:[#allocation2 + $0x14] sm:$0xf] %v801
  %v803 = vrot.slane %v707, 1
  %vm805 = vcmask 1040384
  %vm806 = vsmask.f32 256
  %vm807 = vmand %vm805, %vm806
  %v808 = vsel %vm807, %v803, %v707
  %v809 = vrot.slane %v707, 7
  %v811 = vrot.slane %v707, 6
  %v813 = vsel %vm807, %v809, %v811
  %v815 = vunpack.c.l.b16 %v808
  %v816 = vpack.c.b16 %v815, %v815
  %v818 = vshrl.u32 %v816, 16
  %v820 = vrot.slane %v818, 6
  %v821 = vshll.u32 %v816, 16
  %v823 = vrot.slane %v821, 7
  %v824 = vor.u32 %v820, %v823
  %vm826 = vcmask 518145
  %vm827 = vsmask.f32 2310
  %vm828 = vmand %vm826, %vm827
  %v829 = vld [vmem:[#allocation2] sm:$0x6]
  %v830 = vsel %vm828, %v824, %v829
  %831 = vst [vmem:[#allocation2] sm:$0x6] %v830
  %v833 = vunpack.c.l.b16 %v813
  %v834 = vpack.c.b16 %v833, %v833
  %v836 = vshrl.u32 %v834, 16
  %v838 = vrot.slane %v836, 5
  %v839 = vshll.u32 %v834, 16
  %v841 = vrot.slane %v839, 6
  %v842 = vor.u32 %v838, %v841
  %vm844 = vsmask.f32 3338
  %vm845 = vmand %vm789, %vm844
  %v846 = vld [vmem:[#allocation2 + $0x8] sm:$0xc]
  %v847 = vsel %vm845, %v842, %v846
  %848 = vst [vmem:[#allocation2 + $0x8] sm:$0xc] %v847
  %v849 = vrot.slane %v708, 6
  %v851 = vrot.slane %v708, 5
  %v853 = vsel %vm807, %v849, %v851
  %v854 = vrot.slane %v709, 4
  %v856 = vrot.slane %v709, 3
  %v858 = vsel %vm807, %v854, %v856
  %v860 = vunpack.c.l.b16 %v853
  %v861 = vpack.c.b16 %v860, %v860
  %v863 = vshrl.u32 %v861, 16
  %v865 = vrot.slane %v863, 5
  %v866 = vshll.u32 %v861, 16
  %v868 = vrot.slane %v866, 6
  %v869 = vor.u32 %v865, %v868
  %v871 = vld [vmem:[#allocation2 + $0xc] sm:$0xc]
  %v872 = vsel %vm845, %v869, %v871
  %873 = vst [vmem:[#allocation2 + $0xc] sm:$0xc] %v872
  %v875 = vunpack.c.l.b16 %v858
  %v876 = vpack.c.b16 %v875, %v875
  %v878 = vshll.u32 %v876, 16
  %v880 = vrot.slane %v878, 5
  %v881 = vshrl.u32 %v876, 16
  %v883 = vrot.slane %v881, 4
  %v884 = vrot.slane %v883, 4
  %vm887 = vcmask 519171
  %vm888 = vmand %vm887, %vm275
  %v889 = vld [vmem:[#allocation2 + $0x14] sm:$0x8]
  %v890 = vsel %vm888, %v880, %v889
  %891 = vst [vmem:[#allocation2 + $0x14] sm:$0x8] %v890
  %vm892 = vcmask 516096
  %vm893 = vmand %vm892, %vm806
  %v894 = vld [vmem:[#allocation2 + $0x18] sm:$0x1]
  %v895 = vsel %vm893, %v884, %v894
  %896 = vst [vmem:[#allocation2 + $0x18] sm:$0x1] %v895
  %v897 = vld [vmem:[#allocation2] sm:$0xe]
  %v898 = vld [vmem:[#allocation2 + $0x4] sm:$0xf]
  %v899 = vld [vmem:[#allocation2 + $0x8] sm:$0xf]
  %v900 = vld [vmem:[#allocation2 + $0xc] sm:$0xf]
  %v901 = vld [vmem:[#allocation2 + $0x10] sm:$0xf]
  %v902 = vld [vmem:[#allocation2 + $0x14] sm:$0x7]
  %v903 = vld [vmem:[%s9] sm:$0xf]
  %v904 = vld [vmem:[%s9 + $0x4] sm:$0xf]
  %v905 = vld [vmem:[%s9 + $0x8] sm:$0xf]
  %v906 = vld [vmem:[%s9 + $0xc] sm:$0xf]
  %v907 = vld [vmem:[%s9 + $0x10] sm:$0xf]
  %v908 = vld [vmem:[%s9 + $0x14] sm:$0xf]
  %v909 = vld [vmem:[%s9 + $0x18] sm:$0xf]
  %v910 = vld [vmem:[%s9 + $0x1c] sm:$0xf]
  %v911 = vld [vmem:[#allocation2] sm:$0xc]
  %s912 = scalar_lea.vmem %s9, 32
  %v913 = vld [vmem:[%s912] sm:$0xf]
  %v914 = vld [vmem:[%s912 + $0x4] sm:$0xf]
  %v915 = vld [vmem:[%s912 + $0x8] sm:$0xf]
  %v916 = vld [vmem:[%s912 + $0xc] sm:$0xf]
  %v917 = vld [vmem:[%s912 + $0x10] sm:$0xf]
  %v918 = vld [vmem:[%s912 + $0x14] sm:$0xf]
  %v919 = vld [vmem:[%s912 + $0x18] sm:$0xf]
  %v920 = vld [vmem:[%s912 + $0x1c] sm:$0xf]
  %v927 = vunpack.c.l.b16 %v911
  %v928 = vunpack.c.l.b16 %v898
  %v929 = vunpack.c.l.b16 %v899
  %v930 = vunpack.c.l.b16 %v900
  %v931 = vunpack.c.l.b16 %v901
  %v932 = vunpack.c.l.b16 %v902
  %v933 = vpack.c.b16 %v928, %v927
  %v934 = vpack.c.b16 %v930, %v929
  %v935 = vpack.c.b16 %v932, %v931
  %v936 = vrot.slane %v933, 2
  %v937 = vrot.slane %v934, 2
  %v938 = vsel %vm461, %v936, %v937
  %v939 = vrot.slane %v935, 2
  %v940 = vsel %vm461, %v937, %v939
  %v949 = vunpack.c.l.b16 %v913
  %v950 = vunpack.c.l.b16 %v914
  %v951 = vunpack.c.l.b16 %v915
  %v952 = vunpack.c.l.b16 %v916
  %v953 = vunpack.c.l.b16 %v917
  %v954 = vunpack.c.l.b16 %v918
  %v955 = vunpack.c.l.b16 %v919
  %v956 = vunpack.c.l.b16 %v920
  %v957 = vpack.c.b16 %v950, %v949
  %v958 = vpack.c.b16 %v952, %v951
  %v959 = vpack.c.b16 %v954, %v953
  %v960 = vpack.c.b16 %v956, %v955
  %vm965 = vcmask 523264
  %v967 = vsel %vm965, %v938, 0
  %v970 = vsel %vm965, %v940, 0
  %v973 = vsel %vm965, %v939, 0
  %975 = vmatprep.subr.bf16.mxu0 0
  %976 = vmatpush1.bf16.msra.mxu0 0
  %977 = vmatprep.subr.bf16.mxu0 0
  %978 = vmatpush1.bf16.msra.mxu0 0
  %979 = vmatprep.subr.bf16.mxu0 0
  %980 = vmatpush1.bf16.msra.mxu0 0
  %981 = vmatprep.subr.bf16.mxu0 0
  %982 = vmatpush1.bf16.msra.mxu0 0
  %983 = vmatprep.subr.bf16.mxu0 0
  %984 = vmatpush1.bf16.msra.mxu0 %v960
  %985 = vmatprep.subr.bf16.mxu0 0
  %986 = vmatpush1.bf16.msra.mxu0 %v959
  %987 = vmatprep.subr.bf16.mxu0 0
  %988 = vmatpush1.bf16.msra.mxu0 %v958
  %989 = vmatprep.subr.bf16.mxu0 0
  %990 = vmatpush1.bf16.msra.mxu0 %v957
  %991 = vmatprep.subr.bf16.mxu0 0
  %992 = vmatpush2.bf16.msra.mxu0 0
  %993 = vmatprep.subr.bf16.mxu0 0
  %994 = vmatpush2.bf16.msra.mxu0 0
  %995 = vmatprep.subr.bf16.mxu0 0
  %996 = vmatpush2.bf16.msra.mxu0 0
  %997 = vmatprep.subr.bf16.mxu0 0
  %998 = vmatpush2.bf16.msra.mxu0 0
  %999 = vmatprep.subr.bf16.mxu0 0
  %1000 = vmatpush2.bf16.msra.mxu0 0
  %1001 = vmatprep.subr.bf16.mxu0 0
  %1002 = vmatpush2.bf16.msra.mxu0 0
  %1003 = vmatprep.subr.bf16.mxu0 0
  %1004 = vmatpush2.bf16.msra.mxu0 0
  %1005 = vmatprep.subr.bf16.mxu0 0
  %1006 = vmatpush2.bf16.msra.mxu0 0
  %1007 = vmatprep.mubr.bf16.mxu0 0
  %1008 = vmatmul.mubr.bf16.gmra.mxu0 %v967
  %v1009 = vpop.f32.mrf.mxu0
  %v1010 = vadd.f32 0.0, %v1009
  %v1011 = vpop.f32.mrf.mxu0
  %v1012 = vpop.f32.mrf.mxu0
  %v1013 = vadd.f32 0.0, %v1012
  %v1014 = vpop.f32.mrf.mxu0
  %1015 = vmatprep.mubr.bf16.mxu0 0
  %1016 = vmatmul.mubr.bf16.gmra.mxu0 %v970
  %v1017 = vpop.f32.mrf.mxu0
  %v1018 = vadd.f32 0.0, %v1017
  %v1019 = vpop.f32.mrf.mxu0
  %v1020 = vpop.f32.mrf.mxu0
  %v1021 = vadd.f32 0.0, %v1020
  %v1022 = vpop.f32.mrf.mxu0
  %1023 = vmatprep.mubr.bf16.mxu0 0
  %1024 = vmatmul.mubr.bf16.gmra.mxu0 %v973
  %v1025 = vpop.f32.mrf.mxu0
  %v1026 = vadd.f32 0.0, %v1025
  %v1027 = vpop.f32.mrf.mxu0
  %v1028 = vpop.f32.mrf.mxu0
  %v1029 = vadd.f32 0.0, %v1028
  %v1030 = vpop.f32.mrf.mxu0
  %1031 = vdwg.mxu0
  %v1033 = vunpack.c.l.b16 %v897
  %v1034 = vpack.c.b16 %v928, %v1033
  %vm1035 = vsmask.f32 6400
  %v1037 = vshrl.u32 %v1034, 16
  %v1039 = vrot.slane %v1037, 1
  %v1040 = vshll.u32 %v1034, 16
  %v1042 = vrot.slane %v1040, 2
  %v1043 = vor.u32 %v1039, %v1042
  %v1045 = vshrl.u32 %v934, 16
  %v1047 = vrot.slane %v1045, 1
  %v1048 = vshll.u32 %v934, 16
  %v1050 = vrot.slane %v1048, 2
  %v1051 = vor.u32 %v1047, %v1050
  %v1052 = vsel %vm1035, %v1043, %v1051
  %v1054 = vshrl.u32 %v935, 16
  %v1056 = vrot.slane %v1054, 1
  %v1057 = vshll.u32 %v935, 16
  %v1059 = vrot.slane %v1057, 2
  %v1060 = vor.u32 %v1056, %v1059
  %v1061 = vsel %vm1035, %v1051, %v1060
  %v1070 = vunpack.c.l.b16 %v903
  %v1071 = vunpack.c.l.b16 %v904
  %v1072 = vunpack.c.l.b16 %v905
  %v1073 = vunpack.c.l.b16 %v906
  %v1074 = vunpack.c.l.b16 %v907
  %v1075 = vunpack.c.l.b16 %v908
  %v1076 = vunpack.c.l.b16 %v909
  %v1077 = vunpack.c.l.b16 %v910
  %v1078 = vpack.c.b16 %v1071, %v1070
  %v1079 = vpack.c.b16 %v1073, %v1072
  %v1080 = vpack.c.b16 %v1075, %v1074
  %v1081 = vpack.c.b16 %v1077, %v1076
  %v1087 = vsel %vm965, %v1052, 0
  %v1090 = vsel %vm965, %v1061, 0
  %v1093 = vsel %vm965, %v1060, 0
  %1095 = vmatprep.subr.bf16.mxu0 0
  %1096 = vmatpush1.bf16.msra.mxu0 0
  %1097 = vmatprep.subr.bf16.mxu0 0
  %1098 = vmatpush1.bf16.msra.mxu0 0
  %1099 = vmatprep.subr.bf16.mxu0 0
  %1100 = vmatpush1.bf16.msra.mxu0 0
  %1101 = vmatprep.subr.bf16.mxu0 0
  %1102 = vmatpush1.bf16.msra.mxu0 0
  %1103 = vmatprep.subr.bf16.mxu0 0
  %1104 = vmatpush1.bf16.msra.mxu0 %v1081
  %1105 = vmatprep.subr.bf16.mxu0 0
  %1106 = vmatpush1.bf16.msra.mxu0 %v1080
  %1107 = vmatprep.subr.bf16.mxu0 0
  %1108 = vmatpush1.bf16.msra.mxu0 %v1079
  %1109 = vmatprep.subr.bf16.mxu0 0
  %1110 = vmatpush1.bf16.msra.mxu0 %v1078
  %1111 = vmatprep.subr.bf16.mxu0 0
  %1112 = vmatpush2.bf16.msra.mxu0 0
  %1113 = vmatprep.subr.bf16.mxu0 0
  %1114 = vmatpush2.bf16.msra.mxu0 0
  %1115 = vmatprep.subr.bf16.mxu0 0
  %1116 = vmatpush2.bf16.msra.mxu0 0
  %1117 = vmatprep.subr.bf16.mxu0 0
  %1118 = vmatpush2.bf16.msra.mxu0 0
  %1119 = vmatprep.subr.bf16.mxu0 0
  %1120 = vmatpush2.bf16.msra.mxu0 0
  %1121 = vmatprep.subr.bf16.mxu0 0
  %1122 = vmatpush2.bf16.msra.mxu0 0
  %1123 = vmatprep.subr.bf16.mxu0 0
  %1124 = vmatpush2.bf16.msra.mxu0 0
  %1125 = vmatprep.subr.bf16.mxu0 0
  %1126 = vmatpush2.bf16.msra.mxu0 0
  %1127 = vmatprep.mubr.bf16.mxu0 0
  %1128 = vmatmul.mubr.bf16.gmra.mxu0 %v1087
  %v1129 = vpop.f32.mrf.mxu0
  %v1130 = vadd.f32 %v1010, %v1129
  %v1131 = vpop.f32.mrf.mxu0
  %v1132 = vpop.f32.mrf.mxu0
  %v1133 = vadd.f32 %v1013, %v1132
  %v1134 = vpop.f32.mrf.mxu0
  %1135 = vmatprep.mubr.bf16.mxu0 0
  %1136 = vmatmul.mubr.bf16.gmra.mxu0 %v1090
  %v1137 = vpop.f32.mrf.mxu0
  %v1138 = vadd.f32 %v1018, %v1137
  %v1139 = vpop.f32.mrf.mxu0
  %v1140 = vpop.f32.mrf.mxu0
  %v1141 = vadd.f32 %v1021, %v1140
  %v1142 = vpop.f32.mrf.mxu0
  %1143 = vmatprep.mubr.bf16.mxu0 0
  %1144 = vmatmul.mubr.bf16.gmra.mxu0 %v1093
  %v1145 = vpop.f32.mrf.mxu0
  %v1146 = vadd.f32 %v1026, %v1145
  %v1147 = vpop.f32.mrf.mxu0
  %v1148 = vpop.f32.mrf.mxu0
  %v1149 = vadd.f32 %v1029, %v1148
  %v1150 = vpop.f32.mrf.mxu0
  %1151 = vdwg.mxu0
  %v1152 = vld [vmem:[#allocation2 + $0x14] sm:$0xf]
  %s1153 = scalar_lea.vmem %s9, 64
  %v1154 = vld [vmem:[%s1153] sm:$0xf]
  %v1155 = vld [vmem:[%s1153 + $0x4] sm:$0xf]
  %v1156 = vld [vmem:[%s1153 + $0x8] sm:$0xf]
  %v1157 = vld [vmem:[%s1153 + $0xc] sm:$0xf]
  %v1158 = vld [vmem:[%s1153 + $0x10] sm:$0xf]
  %v1159 = vld [vmem:[%s1153 + $0x14] sm:$0xf]
  %v1160 = vld [vmem:[%s1153 + $0x18] sm:$0xf]
  %v1161 = vld [vmem:[%s1153 + $0x1c] sm:$0xf]
  %v1163 = vunpack.c.l.b16 %v1152
  %v1164 = vpack.c.b16 %v1163, %v931
  %v1166 = vshrl.u32 %v933, 16
  %v1168 = vrot.slane %v1166, 2
  %v1169 = vshll.u32 %v933, 16
  %v1171 = vrot.slane %v1169, 3
  %v1172 = vor.u32 %v1168, %v1171
  %v1173 = vrot.slane %v1045, 2
  %v1174 = vrot.slane %v1048, 3
  %v1175 = vor.u32 %v1173, %v1174
  %v1176 = vsel %vm345, %v1172, %v1175
  %v1178 = vshrl.u32 %v1164, 16
  %v1180 = vrot.slane %v1178, 2
  %v1181 = vshll.u32 %v1164, 16
  %v1183 = vrot.slane %v1181, 3
  %v1184 = vor.u32 %v1180, %v1183
  %v1185 = vsel %vm345, %v1175, %v1184
  %v1194 = vunpack.c.l.b16 %v1154
  %v1195 = vunpack.c.l.b16 %v1155
  %v1196 = vunpack.c.l.b16 %v1156
  %v1197 = vunpack.c.l.b16 %v1157
  %v1198 = vunpack.c.l.b16 %v1158
  %v1199 = vunpack.c.l.b16 %v1159
  %v1200 = vunpack.c.l.b16 %v1160
  %v1201 = vunpack.c.l.b16 %v1161
  %v1202 = vpack.c.b16 %v1195, %v1194
  %v1203 = vpack.c.b16 %v1197, %v1196
  %v1204 = vpack.c.b16 %v1199, %v1198
  %v1205 = vpack.c.b16 %v1201, %v1200
  %v1211 = vsel %vm965, %v1176, 0
  %v1214 = vsel %vm965, %v1185, 0
  %v1217 = vsel %vm965, %v1184, 0
  %1219 = vmatprep.subr.bf16.mxu0 0
  %1220 = vmatpush1.bf16.msra.mxu0 0
  %1221 = vmatprep.subr.bf16.mxu0 0
  %1222 = vmatpush1.bf16.msra.mxu0 0
  %1223 = vmatprep.subr.bf16.mxu0 0
  %1224 = vmatpush1.bf16.msra.mxu0 0
  %1225 = vmatprep.subr.bf16.mxu0 0
  %1226 = vmatpush1.bf16.msra.mxu0 0
  %1227 = vmatprep.subr.bf16.mxu0 0
  %1228 = vmatpush1.bf16.msra.mxu0 %v1205
  %1229 = vmatprep.subr.bf16.mxu0 0
  %1230 = vmatpush1.bf16.msra.mxu0 %v1204
  %1231 = vmatprep.subr.bf16.mxu0 0
  %1232 = vmatpush1.bf16.msra.mxu0 %v1203
  %1233 = vmatprep.subr.bf16.mxu0 0
  %1234 = vmatpush1.bf16.msra.mxu0 %v1202
  %1235 = vmatprep.subr.bf16.mxu0 0
  %1236 = vmatpush2.bf16.msra.mxu0 0
  %1237 = vmatprep.subr.bf16.mxu0 0
  %1238 = vmatpush2.bf16.msra.mxu0 0
  %1239 = vmatprep.subr.bf16.mxu0 0
  %1240 = vmatpush2.bf16.msra.mxu0 0
  %1241 = vmatprep.subr.bf16.mxu0 0
  %1242 = vmatpush2.bf16.msra.mxu0 0
  %1243 = vmatprep.subr.bf16.mxu0 0
  %1244 = vmatpush2.bf16.msra.mxu0 0
  %1245 = vmatprep.subr.bf16.mxu0 0
  %1246 = vmatpush2.bf16.msra.mxu0 0
  %1247 = vmatprep.subr.bf16.mxu0 0
  %1248 = vmatpush2.bf16.msra.mxu0 0
  %1249 = vmatprep.subr.bf16.mxu0 0
  %1250 = vmatpush2.bf16.msra.mxu0 0
  %1251 = vmatprep.mubr.bf16.mxu0 0
  %1252 = vmatmul.mubr.bf16.gmra.mxu0 %v1211
  %v1253 = vpop.f32.mrf.mxu0
  %v1254 = vadd.f32 0.0, %v1253
  %v1255 = vpop.f32.mrf.mxu0
  %v1256 = vpop.f32.mrf.mxu0
  %v1257 = vadd.f32 0.0, %v1256
  %v1258 = vpop.f32.mrf.mxu0
  %1259 = vmatprep.mubr.bf16.mxu0 0
  %1260 = vmatmul.mubr.bf16.gmra.mxu0 %v1214
  %v1261 = vpop.f32.mrf.mxu0
  %v1262 = vadd.f32 0.0, %v1261
  %v1263 = vpop.f32.mrf.mxu0
  %v1264 = vpop.f32.mrf.mxu0
  %v1265 = vadd.f32 0.0, %v1264
  %v1266 = vpop.f32.mrf.mxu0
  %1267 = vmatprep.mubr.bf16.mxu0 0
  %1268 = vmatmul.mubr.bf16.gmra.mxu0 %v1217
  %v1269 = vpop.f32.mrf.mxu0
  %v1270 = vadd.f32 0.0, %v1269
  %v1271 = vpop.f32.mrf.mxu0
  %v1272 = vpop.f32.mrf.mxu0
  %v1273 = vadd.f32 0.0, %v1272
  %v1274 = vpop.f32.mrf.mxu0
  %1275 = vdwg.mxu0
  %v1276 = vadd.f32 %v1130, %v1254
  %v1277 = vadd.f32 %v1133, %v1257
  %v1278 = vadd.f32 %v1138, %v1262
  %v1279 = vadd.f32 %v1141, %v1265
  %v1280 = vadd.f32 %v1146, %v1270
  %v1281 = vadd.f32 %v1149, %v1273
  %v1282 = vld [vmem:[#allocation2] sm:$0x8]
  %s1283 = scalar_lea.vmem %s9, 96
  %v1284 = vld [vmem:[%s1283] sm:$0xf]
  %v1285 = vld [vmem:[%s1283 + $0x4] sm:$0xf]
  %v1286 = vld [vmem:[%s1283 + $0x8] sm:$0xf]
  %v1287 = vld [vmem:[%s1283 + $0xc] sm:$0xf]
  %v1288 = vld [vmem:[%s1283 + $0x10] sm:$0xf]
  %v1289 = vld [vmem:[%s1283 + $0x14] sm:$0xf]
  %v1290 = vld [vmem:[%s1283 + $0x18] sm:$0xf]
  %v1291 = vld [vmem:[%s1283 + $0x1c] sm:$0xf]
  %v1293 = vunpack.c.l.b16 %v1282
  %v1294 = vpack.c.b16 %v928, %v1293
  %v1295 = vrot.slane %v1294, 3
  %v1296 = vrot.slane %v934, 3
  %v1297 = vsel %vm564, %v1295, %v1296
  %v1298 = vrot.slane %v1164, 3
  %v1299 = vsel %vm564, %v1296, %v1298
  %v1308 = vunpack.c.l.b16 %v1284
  %v1309 = vunpack.c.l.b16 %v1285
  %v1310 = vunpack.c.l.b16 %v1286
  %v1311 = vunpack.c.l.b16 %v1287
  %v1312 = vunpack.c.l.b16 %v1288
  %v1313 = vunpack.c.l.b16 %v1289
  %v1314 = vunpack.c.l.b16 %v1290
  %v1315 = vunpack.c.l.b16 %v1291
  %v1316 = vpack.c.b16 %v1309, %v1308
  %v1317 = vpack.c.b16 %v1311, %v1310
  %v1318 = vpack.c.b16 %v1313, %v1312
  %v1319 = vpack.c.b16 %v1315, %v1314
  %v1325 = vsel %vm965, %v1297, 0
  %v1328 = vsel %vm965, %v1299, 0
  %v1331 = vsel %vm965, %v1298, 0
  %1333 = vmatprep.subr.bf16.mxu0 0
  %1334 = vmatpush1.bf16.msra.mxu0 0
  %1335 = vmatprep.subr.bf16.mxu0 0
  %1336 = vmatpush1.bf16.msra.mxu0 0
  %1337 = vmatprep.subr.bf16.mxu0 0
  %1338 = vmatpush1.bf16.msra.mxu0 0
  %1339 = vmatprep.subr.bf16.mxu0 0
  %1340 = vmatpush1.bf16.msra.mxu0 0
  %1341 = vmatprep.subr.bf16.mxu0 0
  %1342 = vmatpush1.bf16.msra.mxu0 %v1319
  %1343 = vmatprep.subr.bf16.mxu0 0
  %1344 = vmatpush1.bf16.msra.mxu0 %v1318
  %1345 = vmatprep.subr.bf16.mxu0 0
  %1346 = vmatpush1.bf16.msra.mxu0 %v1317
  %1347 = vmatprep.subr.bf16.mxu0 0
  %1348 = vmatpush1.bf16.msra.mxu0 %v1316
  %1349 = vmatprep.subr.bf16.mxu0 0
  %1350 = vmatpush2.bf16.msra.mxu0 0
  %1351 = vmatprep.subr.bf16.mxu0 0
  %1352 = vmatpush2.bf16.msra.mxu0 0
  %1353 = vmatprep.subr.bf16.mxu0 0
  %1354 = vmatpush2.bf16.msra.mxu0 0
  %1355 = vmatprep.subr.bf16.mxu0 0
  %1356 = vmatpush2.bf16.msra.mxu0 0
  %1357 = vmatprep.subr.bf16.mxu0 0
  %1358 = vmatpush2.bf16.msra.mxu0 0
  %1359 = vmatprep.subr.bf16.mxu0 0
  %1360 = vmatpush2.bf16.msra.mxu0 0
  %1361 = vmatprep.subr.bf16.mxu0 0
  %1362 = vmatpush2.bf16.msra.mxu0 0
  %1363 = vmatprep.subr.bf16.mxu0 0
  %1364 = vmatpush2.bf16.msra.mxu0 0
  %1365 = vmatprep.mubr.bf16.mxu0 0
  %1366 = vmatmul.mubr.bf16.gmra.mxu0 %v1325
  %v1367 = vpop.f32.mrf.mxu0
  %v1368 = vadd.f32 0.0, %v1367
  %v1369 = vpop.f32.mrf.mxu0
  %v1370 = vpop.f32.mrf.mxu0
  %v1371 = vadd.f32 0.0, %v1370
  %v1372 = vpop.f32.mrf.mxu0
  %1373 = vmatprep.mubr.bf16.mxu0 0
  %1374 = vmatmul.mubr.bf16.gmra.mxu0 %v1328
  %v1375 = vpop.f32.mrf.mxu0
  %v1376 = vadd.f32 0.0, %v1375
  %v1377 = vpop.f32.mrf.mxu0
  %v1378 = vpop.f32.mrf.mxu0
  %v1379 = vadd.f32 0.0, %v1378
  %v1380 = vpop.f32.mrf.mxu0
  %1381 = vmatprep.mubr.bf16.mxu0 0
  %1382 = vmatmul.mubr.bf16.gmra.mxu0 %v1331
  %v1383 = vpop.f32.mrf.mxu0
  %v1384 = vadd.f32 0.0, %v1383
  %v1385 = vpop.f32.mrf.mxu0
  %v1386 = vpop.f32.mrf.mxu0
  %v1387 = vadd.f32 0.0, %v1386
  %v1388 = vpop.f32.mrf.mxu0
  %1389 = vdwg.mxu0
  %v1390 = vadd.f32 %v1276, %v1368
  %v1391 = vadd.f32 %v1277, %v1371
  %v1392 = vadd.f32 %v1278, %v1376
  %v1393 = vadd.f32 %v1279, %v1379
  %v1394 = vadd.f32 %v1280, %v1384
  %v1395 = vadd.f32 %v1281, %v1387
  %v1396 = vld [vmem:[#allocation2] sm:$0x8]
  %v1397 = vld [vmem:[#allocation2 + $0x4] sm:$0xf]
  %v1398 = vld [vmem:[#allocation2 + $0x8] sm:$0xf]
  %v1399 = vld [vmem:[#allocation2 + $0xc] sm:$0xf]
  %v1400 = vld [vmem:[#allocation2 + $0x10] sm:$0xf]
  %v1401 = vld [vmem:[#allocation2 + $0x14] sm:$0xf]
  %v1402 = vld [vmem:[#allocation2 + $0x18] sm:$0x1]
  %s1403 = scalar_lea.vmem %s9, 128
  %v1404 = vld [vmem:[%s1403] sm:$0xf]
  %v1405 = vld [vmem:[%s1403 + $0x4] sm:$0xf]
  %v1406 = vld [vmem:[%s1403 + $0x8] sm:$0xf]
  %v1407 = vld [vmem:[%s1403 + $0xc] sm:$0xf]
  %v1408 = vld [vmem:[%s1403 + $0x10] sm:$0xf]
  %v1409 = vld [vmem:[%s1403 + $0x14] sm:$0xf]
  %v1410 = vld [vmem:[%s1403 + $0x18] sm:$0xf]
  %v1411 = vld [vmem:[%s1403 + $0x1c] sm:$0xf]
  %v1419 = vunpack.c.l.b16 %v1396
  %v1420 = vunpack.c.l.b16 %v1397
  %v1421 = vunpack.c.l.b16 %v1398
  %v1422 = vunpack.c.l.b16 %v1399
  %v1423 = vunpack.c.l.b16 %v1400
  %v1424 = vunpack.c.l.b16 %v1401
  %v1425 = vunpack.c.l.b16 %v1402
  %v1426 = vpack.c.b16 %v1420, %v1419
  %v1427 = vpack.c.b16 %v1422, %v1421
  %v1428 = vpack.c.b16 %v1424, %v1423
  %v1429 = vpack.c.b16 %v1425, %v1425
  %vm1430 = vsmask.f32 4352
  %v1432 = vshrl.u32 %v1426, 16
  %v1434 = vrot.slane %v1432, 3
  %v1435 = vshll.u32 %v1426, 16
  %v1437 = vrot.slane %v1435, 4
  %v1438 = vor.u32 %v1434, %v1437
  %v1440 = vshrl.u32 %v1427, 16
  %v1442 = vrot.slane %v1440, 3
  %v1443 = vshll.u32 %v1427, 16
  %v1445 = vrot.slane %v1443, 4
  %v1446 = vor.u32 %v1442, %v1445
  %v1447 = vsel %vm1430, %v1438, %v1446
  %v1449 = vshrl.u32 %v1428, 16
  %v1451 = vrot.slane %v1449, 3
  %v1452 = vshll.u32 %v1428, 16
  %v1454 = vrot.slane %v1452, 4
  %v1455 = vor.u32 %v1451, %v1454
  %v1456 = vsel %vm1430, %v1446, %v1455
  %v1458 = vshll.u32 %v1429, 16
  %v1460 = vrot.slane %v1458, 4
  %v1461 = vsel %vm1430, %v1455, %v1460
  %v1470 = vunpack.c.l.b16 %v1404
  %v1471 = vunpack.c.l.b16 %v1405
  %v1472 = vunpack.c.l.b16 %v1406
  %v1473 = vunpack.c.l.b16 %v1407
  %v1474 = vunpack.c.l.b16 %v1408
  %v1475 = vunpack.c.l.b16 %v1409
  %v1476 = vunpack.c.l.b16 %v1410
  %v1477 = vunpack.c.l.b16 %v1411
  %v1478 = vpack.c.b16 %v1471, %v1470
  %v1479 = vpack.c.b16 %v1473, %v1472
  %v1480 = vpack.c.b16 %v1475, %v1474
  %v1481 = vpack.c.b16 %v1477, %v1476
  %v1487 = vsel %vm965, %v1447, 0
  %v1490 = vsel %vm965, %v1456, 0
  %v1493 = vsel %vm965, %v1461, 0
  %1495 = vmatprep.subr.bf16.mxu0 0
  %1496 = vmatpush1.bf16.msra.mxu0 0
  %1497 = vmatprep.subr.bf16.mxu0 0
  %1498 = vmatpush1.bf16.msra.mxu0 0
  %1499 = vmatprep.subr.bf16.mxu0 0
  %1500 = vmatpush1.bf16.msra.mxu0 0
  %1501 = vmatprep.subr.bf16.mxu0 0
  %1502 = vmatpush1.bf16.msra.mxu0 0
  %1503 = vmatprep.subr.bf16.mxu0 0
  %1504 = vmatpush1.bf16.msra.mxu0 %v1481
  %1505 = vmatprep.subr.bf16.mxu0 0
  %1506 = vmatpush1.bf16.msra.mxu0 %v1480
  %1507 = vmatprep.subr.bf16.mxu0 0
  %1508 = vmatpush1.bf16.msra.mxu0 %v1479
  %1509 = vmatprep.subr.bf16.mxu0 0
  %1510 = vmatpush1.bf16.msra.mxu0 %v1478
  %1511 = vmatprep.subr.bf16.mxu0 0
  %1512 = vmatpush2.bf16.msra.mxu0 0
  %1513 = vmatprep.subr.bf16.mxu0 0
  %1514 = vmatpush2.bf16.msra.mxu0 0
  %1515 = vmatprep.subr.bf16.mxu0 0
  %1516 = vmatpush2.bf16.msra.mxu0 0
  %1517 = vmatprep.subr.bf16.mxu0 0
  %1518 = vmatpush2.bf16.msra.mxu0 0
  %1519 = vmatprep.subr.bf16.mxu0 0
  %1520 = vmatpush2.bf16.msra.mxu0 0
  %1521 = vmatprep.subr.bf16.mxu0 0
  %1522 = vmatpush2.bf16.msra.mxu0 0
  %1523 = vmatprep.subr.bf16.mxu0 0
  %1524 = vmatpush2.bf16.msra.mxu0 0
  %1525 = vmatprep.subr.bf16.mxu0 0
  %1526 = vmatpush2.bf16.msra.mxu0 0
  %1527 = vmatprep.mubr.bf16.mxu0 0
  %1528 = vmatmul.mubr.bf16.gmra.mxu0 %v1487
  %v1529 = vpop.f32.mrf.mxu0
  %v1530 = vadd.f32 0.0, %v1529
  %v1531 = vpop.f32.mrf.mxu0
  %v1532 = vpop.f32.mrf.mxu0
  %v1533 = vadd.f32 0.0, %v1532
  %v1534 = vpop.f32.mrf.mxu0
  %1535 = vmatprep.mubr.bf16.mxu0 0
  %1536 = vmatmul.mubr.bf16.gmra.mxu0 %v1490
  %v1537 = vpop.f32.mrf.mxu0
  %v1538 = vadd.f32 0.0, %v1537
  %v1539 = vpop.f32.mrf.mxu0
  %v1540 = vpop.f32.mrf.mxu0
  %v1541 = vadd.f32 0.0, %v1540
  %v1542 = vpop.f32.mrf.mxu0
  %1543 = vmatprep.mubr.bf16.mxu0 0
  %1544 = vmatmul.mubr.bf16.gmra.mxu0 %v1493
  %v1545 = vpop.f32.mrf.mxu0
  %v1546 = vadd.f32 0.0, %v1545
  %v1547 = vpop.f32.mrf.mxu0
  %v1548 = vpop.f32.mrf.mxu0
  %v1549 = vadd.f32 0.0, %v1548
  %v1550 = vpop.f32.mrf.mxu0
  %1551 = vdwg.mxu0
  %v1552 = vadd.f32 %v1390, %v1530
  %v1553 = vadd.f32 %v1391, %v1533
  %v1554 = vadd.f32 %v1392, %v1538
  %v1555 = vadd.f32 %v1393, %v1541
  %v1556 = vadd.f32 %v1394, %v1546
  %v1557 = vadd.f32 %v1395, %v1549
  %v1558 = vld [vmem:[%s10] sm:$0x1]
  %v1560 = vlaneseq
  %v1561 = vshrl.u32 %v1560, 7
  %v1562 = vsub.s32 0, %v1561
  %v1563 = vrot.slane %v1558, %v1562
  %v1565 = vadd.f32 %v1552, %v1563
  %v1566 = vadd.f32 %v1553, %v1563
  %v1567 = vadd.f32 %v1554, %v1563
  %v1568 = vadd.f32 %v1555, %v1563
  %v1569 = vadd.f32 %v1556, %v1563
  %v1570 = vadd.f32 %v1557, %v1563
  %v1571 = vmax.f32 %v1565, 0.0
  %v1572 = vmax.f32 %v1566, 0.0
  %v1573 = vmax.f32 %v1567, 0.0
  %v1574 = vmax.f32 %v1568, 0.0
  %v1575 = vmax.f32 %v1569, 0.0
  %v1576 = vmax.f32 %v1570, 0.0
  %v1577 = vld [vmem:[%s11] sm:$0x1]
  %v1579 = vlaneseq
  %v1580 = vshrl.u32 %v1579, 7
  %v1581 = vsub.s32 0, %v1580
  %v1582 = vrot.slane %v1577, %v1581
  %v1584 = vmul.f32 %v1571, %v1582
  %v1585 = vmul.f32 %v1572, %v1582
  %v1586 = vmul.f32 %v1573, %v1582
  %v1587 = vmul.f32 %v1574, %v1582
  %v1588 = vmul.f32 %v1575, %v1582
  %v1589 = vmul.f32 %v1576, %v1582
  %v1590 = vld [vmem:[%s12] sm:$0x1]
  %v1592 = vlaneseq
  %v1593 = vshrl.u32 %v1592, 7
  %v1594 = vsub.s32 0, %v1593
  %v1595 = vrot.slane %v1590, %v1594
  %v1597 = vadd.f32 %v1584, %v1595
  %v1598 = vadd.f32 %v1585, %v1595
  %v1599 = vadd.f32 %v1586, %v1595
  %v1600 = vadd.f32 %v1587, %v1595
  %v1601 = vadd.f32 %v1588, %v1595
  %v1602 = vadd.f32 %v1589, %v1595
  %v1603 = vpack.c.bf16 %v1598, %v1597
  %v1604 = vpack.c.bf16 %v1600, %v1599
  %v1605 = vpack.c.bf16 %v1602, %v1601
  %v1609 = vunpack.c.l.b16 %v1603
  %v1610 = vunpack.c.h.b16 %v1603
  %v1611 = vunpack.c.l.b16 %v1604
  %v1612 = vunpack.c.h.b16 %v1604
  %v1613 = vunpack.c.l.b16 %v1605
  %v1614 = vunpack.c.h.b16 %v1605
  %v1615 = vpack.c.b16 %v1609, %v1609
  %v1616 = vpack.c.b16 %v1610, %v1610
  %v1617 = vpack.c.b16 %v1611, %v1611
  %v1618 = vpack.c.b16 %v1612, %v1612
  %v1619 = vpack.c.b16 %v1613, %v1613
  %v1620 = vpack.c.b16 %v1614, %v1614
  %v1622 = vshrl.u32 %v1615, 16
  %v1624 = vrot.slane %v1622, 5
  %v1625 = vshll.u32 %v1615, 16
  %v1627 = vrot.slane %v1625, 6
  %v1628 = vor.u32 %v1624, %v1627
  %v1629 = vrot.slane %v1628, 4
  %v1631 = vshrl.u32 %v1616, 16
  %v1633 = vrot.slane %v1631, 5
  %v1634 = vshll.u32 %v1616, 16
  %v1636 = vrot.slane %v1634, 6
  %v1637 = vor.u32 %v1633, %v1636
  %v1638 = vsel %vm208, %v1629, %v1637
  %v1639 = vrot.slane %v1637, 4
  %v1641 = vshrl.u32 %v1617, 16
  %v1643 = vrot.slane %v1641, 5
  %v1644 = vshll.u32 %v1617, 16
  %v1646 = vrot.slane %v1644, 6
  %v1647 = vor.u32 %v1643, %v1646
  %v1648 = vsel %vm208, %v1639, %v1647
  %v1649 = vrot.slane %v1647, 4
  %v1651 = vshrl.u32 %v1618, 16
  %v1653 = vrot.slane %v1651, 5
  %v1654 = vshll.u32 %v1618, 16
  %v1656 = vrot.slane %v1654, 6
  %v1657 = vor.u32 %v1653, %v1656
  %v1658 = vsel %vm208, %v1649, %v1657
  %v1659 = vrot.slane %v1657, 4
  %v1661 = vshrl.u32 %v1619, 16
  %v1663 = vrot.slane %v1661, 5
  %v1664 = vshll.u32 %v1619, 16
  %v1666 = vrot.slane %v1664, 6
  %v1667 = vor.u32 %v1663, %v1666
  %v1668 = vsel %vm208, %v1659, %v1667
  %v1669 = vrot.slane %v1667, 4
  %v1671 = vshrl.u32 %v1620, 16
  %v1673 = vrot.slane %v1671, 5
  %v1674 = vshll.u32 %v1620, 16
  %v1676 = vrot.slane %v1674, 6
  %v1677 = vor.u32 %v1673, %v1676
  %v1678 = vsel %vm208, %v1669, %v1677
  %v1685 = vsel %vm790, %v1628, %v911
  %1686 = vst [vmem:[#allocation2] sm:$0xc] %v1685
  %1687 = vst.msk [vmem:[#allocation2 + $0x4] sm:$0xf] %vm793, %v1638
  %1688 = vst.msk [vmem:[#allocation2 + $0x8] sm:$0xf] %vm793, %v1648
  %1689 = vst.msk [vmem:[#allocation2 + $0xc] sm:$0xf] %vm793, %v1658
  %1690 = vst.msk [vmem:[#allocation2 + $0x10] sm:$0xf] %vm793, %v1668
  %v1691 = vld [vmem:[#allocation2 + $0x14] sm:$0xf]
  %v1692 = vsel %vm799, %v1678, %v1691
  %1693 = vst [vmem:[#allocation2 + $0x14] sm:$0xf] %v1692
  %v1695 = vshrl.u32 %v1603, 16
  %v1697 = vrot.slane %v1695, 2
  %v1699 = vshll.u32 %v1603, 16
  %v1701 = vrot.slane %v1699, 2
  %v1704 = vrot.slane %v1695, 6
  %v1705 = vsel %vm807, %v1697, %v1701
  %vm1706 = vcmask 1040384
  %v1709 = vsel %vm1706, %v1705, %v1695
  %vm1711 = vcmask 1041408
  %vm1712 = vsmask.f32 1280
  %vm1713 = vmand %vm1711, %vm1712
  %v1714 = vsel %vm1713, %v1709, %v1699
  %vm1715 = vcmask 1041408
  %v1718 = vsel %vm1715, %v1714, %v1704
  %v1720 = vrot.slane %v1603, 7
  %v1722 = vrot.slane %v1603, 6
  %v1724 = vrot.slane %v1603, 5
  %v1725 = vrot.slane %v1603, 4
  %v1727 = vrot.slane %v1603, 3
  %v1728 = vsel %vm807, %v1720, %v1722
  %v1731 = vsel %vm1706, %v1728, %v1724
  %v1733 = vsel %vm1713, %v1731, %v1725
  %v1736 = vsel %vm1715, %v1733, %v1727
  %vm1737 = vcmask 518144
  %vm1738 = vmand %vm1737, %vm206
  %v1739 = vld [vmem:[#allocation2] sm:$0x7]
  %v1740 = vsel %vm1738, %v1718, %v1739
  %1741 = vst [vmem:[#allocation2] sm:$0x7] %v1740
  %v1743 = vunpack.c.l.b16 %v1736
  %v1744 = vpack.c.b16 %v1743, %v1743
  %v1746 = vshrl.u32 %v1744, 16
  %v1748 = vrot.slane %v1746, 5
  %v1749 = vshll.u32 %v1744, 16
  %v1751 = vrot.slane %v1749, 6
  %v1752 = vor.u32 %v1748, %v1751
  %v1753 = vrot.slane %v1752, 4
  %v1756 = vld [vmem:[#allocation2 + $0x8] sm:$0xc]
  %v1757 = vsel %vm790, %v1752, %v1756
  %1758 = vst [vmem:[#allocation2 + $0x8] sm:$0xc] %v1757
  %vm1759 = vcmask 516096
  %1760 = vst.msk [vmem:[#allocation2 + $0xc] sm:$0x1] %vm1759, %v1753
  %v1762 = vshrl.u32 %v1604, 16
  %v1764 = vrot.slane %v1762, 7
  %v1766 = vshll.u32 %v1604, 16
  %v1768 = vrot.slane %v1766, 7
  %v1770 = vrot.slane %v1762, 5
  %v1771 = vrot.slane %v1766, 5
  %v1773 = vrot.slane %v1762, 3
  %v1774 = vsel %vm807, %v1764, %v1768
  %v1777 = vsel %vm1706, %v1774, %v1770
  %v1779 = vsel %vm1713, %v1777, %v1771
  %v1782 = vsel %vm1715, %v1779, %v1773
  %v1783 = vrot.slane %v1605, 4
  %v1785 = vrot.slane %v1605, 3
  %v1787 = vrot.slane %v1605, 2
  %v1788 = vrot.slane %v1605, 1
  %v1790 = vsel %vm807, %v1783, %v1785
  %v1793 = vsel %vm1706, %v1790, %v1787
  %v1795 = vsel %vm1713, %v1793, %v1788
  %v1798 = vsel %vm1715, %v1795, %v1605
  %v1800 = vunpack.c.l.b16 %v1782
  %v1801 = vpack.c.b16 %v1800, %v1800
  %v1802 = vrot.slane %v1801, 7
  %vm1804 = vcmask 519169
  %vm1805 = vmand %vm1804, %vm249
  %v1806 = vld [vmem:[#allocation2 + $0xc] sm:$0xe]
  %v1807 = vsel %vm1805, %v1802, %v1806
  %1808 = vst [vmem:[#allocation2 + $0xc] sm:$0xe] %v1807
  %v1810 = vunpack.c.l.b16 %v1798
  %v1811 = vpack.c.b16 %v1810, %v1810
  %v1813 = vshll.u32 %v1811, 16
  %v1815 = vrot.slane %v1813, 5
  %v1816 = vshrl.u32 %v1811, 16
  %v1818 = vrot.slane %v1816, 4
  %v1819 = vor.u32 %v1818, %v1815
  %v1820 = vrot.slane %v1819, 4
  %v1823 = vld [vmem:[#allocation2 + $0x14] sm:$0x8]
  %v1824 = vsel %vm888, %v1815, %v1823
  %1825 = vst [vmem:[#allocation2 + $0x14] sm:$0x8] %v1824
  %vm1826 = vcmask 517120
  %1827 = vst.msk [vmem:[#allocation2 + $0x18] sm:$0x3] %vm1826, %v1820
  %v1828 = vld [vmem:[#allocation2] sm:$0xf]
  %v1829 = vld [vmem:[#allocation2 + $0x4] sm:$0xf]
  %v1830 = vld [vmem:[#allocation2 + $0x8] sm:$0xf]
  %v1831 = vld [vmem:[#allocation2 + $0xc] sm:$0xf]
  %v1832 = vld [vmem:[#allocation2 + $0x10] sm:$0xf]
  %v1833 = vld [vmem:[#allocation2 + $0x14] sm:$0x1]
  %v1834 = vld [vmem:[%s13] sm:$0xf]
  %v1835 = vld [vmem:[%s13 + $0x4] sm:$0xf]
  %v1836 = vld [vmem:[%s13 + $0x8] sm:$0xf]
  %v1837 = vld [vmem:[%s13 + $0xc] sm:$0xf]
  %v1838 = vld [vmem:[%s13 + $0x10] sm:$0xf]
  %v1839 = vld [vmem:[%s13 + $0x14] sm:$0xf]
  %v1840 = vld [vmem:[%s13 + $0x18] sm:$0xf]
  %v1841 = vld [vmem:[%s13 + $0x1c] sm:$0xf]
  %v1842 = vld [vmem:[#allocation2 + $0x14] sm:$0x3]
  %s1843 = scalar_lea.vmem %s13, 32
  %v1844 = vld [vmem:[%s1843] sm:$0xf]
  %v1845 = vld [vmem:[%s1843 + $0x4] sm:$0xf]
  %v1846 = vld [vmem:[%s1843 + $0x8] sm:$0xf]
  %v1847 = vld [vmem:[%s1843 + $0xc] sm:$0xf]
  %v1848 = vld [vmem:[%s1843 + $0x10] sm:$0xf]
  %v1849 = vld [vmem:[%s1843 + $0x14] sm:$0xf]
  %v1850 = vld [vmem:[%s1843 + $0x18] sm:$0xf]
  %v1851 = vld [vmem:[%s1843 + $0x1c] sm:$0xf]
  %v1858 = vunpack.c.l.b16 %v1828
  %v1859 = vunpack.c.l.b16 %v1829
  %v1860 = vunpack.c.l.b16 %v1830
  %v1861 = vunpack.c.l.b16 %v1831
  %v1862 = vunpack.c.l.b16 %v1832
  %v1863 = vunpack.c.l.b16 %v1842
  %v1864 = vpack.c.b16 %v1859, %v1858
  %v1865 = vpack.c.b16 %v1861, %v1860
  %v1866 = vpack.c.b16 %v1863, %v1862
  %vm1867 = vsmask.f32 7424
  %v1869 = vshrl.u32 %v1864, 16
  %v1871 = vshll.u32 %v1864, 16
  %v1873 = vrot.slane %v1871, 1
  %v1874 = vor.u32 %v1869, %v1873
  %v1876 = vshll.u32 %v1865, 16
  %v1878 = vrot.slane %v1876, 1
  %v1879 = vsel %vm1867, %v1874, %v1878
  %v1880 = vshrl.u32 %v1865, 16
  %v1882 = vor.u32 %v1880, %v1878
  %v1884 = vshll.u32 %v1866, 16
  %v1886 = vrot.slane %v1884, 1
  %v1887 = vsel %vm1867, %v1882, %v1886
  %v1888 = vshrl.u32 %v1866, 16
  %v1890 = vor.u32 %v1888, %v1886
  %v1899 = vunpack.c.l.b16 %v1844
  %v1900 = vunpack.c.l.b16 %v1845
  %v1901 = vunpack.c.l.b16 %v1846
  %v1902 = vunpack.c.l.b16 %v1847
  %v1903 = vunpack.c.l.b16 %v1848
  %v1904 = vunpack.c.l.b16 %v1849
  %v1905 = vunpack.c.l.b16 %v1850
  %v1906 = vunpack.c.l.b16 %v1851
  %v1907 = vpack.c.b16 %v1900, %v1899
  %v1908 = vpack.c.b16 %v1902, %v1901
  %v1909 = vpack.c.b16 %v1904, %v1903
  %v1910 = vpack.c.b16 %v1906, %v1905
  %v1916 = vsel %vm965, %v1879, 0
  %v1919 = vsel %vm965, %v1887, 0
  %v1922 = vsel %vm965, %v1890, 0
  %1924 = vmatprep.subr.bf16.mxu0 0
  %1925 = vmatpush1.bf16.msra.mxu0 0
  %1926 = vmatprep.subr.bf16.mxu0 0
  %1927 = vmatpush1.bf16.msra.mxu0 0
  %1928 = vmatprep.subr.bf16.mxu0 0
  %1929 = vmatpush1.bf16.msra.mxu0 0
  %1930 = vmatprep.subr.bf16.mxu0 0
  %1931 = vmatpush1.bf16.msra.mxu0 0
  %1932 = vmatprep.subr.bf16.mxu0 0
  %1933 = vmatpush1.bf16.msra.mxu0 %v1910
  %1934 = vmatprep.subr.bf16.mxu0 0
  %1935 = vmatpush1.bf16.msra.mxu0 %v1909
  %1936 = vmatprep.subr.bf16.mxu0 0
  %1937 = vmatpush1.bf16.msra.mxu0 %v1908
  %1938 = vmatprep.subr.bf16.mxu0 0
  %1939 = vmatpush1.bf16.msra.mxu0 %v1907
  %1940 = vmatprep.subr.bf16.mxu0 0
  %1941 = vmatpush2.bf16.msra.mxu0 0
  %1942 = vmatprep.subr.bf16.mxu0 0
  %1943 = vmatpush2.bf16.msra.mxu0 0
  %1944 = vmatprep.subr.bf16.mxu0 0
  %1945 = vmatpush2.bf16.msra.mxu0 0
  %1946 = vmatprep.subr.bf16.mxu0 0
  %1947 = vmatpush2.bf16.msra.mxu0 0
  %1948 = vmatprep.subr.bf16.mxu0 0
  %1949 = vmatpush2.bf16.msra.mxu0 0
  %1950 = vmatprep.subr.bf16.mxu0 0
  %1951 = vmatpush2.bf16.msra.mxu0 0
  %1952 = vmatprep.subr.bf16.mxu0 0
  %1953 = vmatpush2.bf16.msra.mxu0 0
  %1954 = vmatprep.subr.bf16.mxu0 0
  %1955 = vmatpush2.bf16.msra.mxu0 0
  %1956 = vmatprep.mubr.bf16.mxu0 0
  %1957 = vmatmul.mubr.bf16.gmra.mxu0 %v1916
  %v1958 = vpop.f32.mrf.mxu0
  %v1959 = vadd.f32 0.0, %v1958
  %v1960 = vpop.f32.mrf.mxu0
  %v1961 = vpop.f32.mrf.mxu0
  %v1962 = vadd.f32 0.0, %v1961
  %v1963 = vpop.f32.mrf.mxu0
  %1964 = vmatprep.mubr.bf16.mxu0 0
  %1965 = vmatmul.mubr.bf16.gmra.mxu0 %v1919
  %v1966 = vpop.f32.mrf.mxu0
  %v1967 = vadd.f32 0.0, %v1966
  %v1968 = vpop.f32.mrf.mxu0
  %v1969 = vpop.f32.mrf.mxu0
  %v1970 = vadd.f32 0.0, %v1969
  %v1971 = vpop.f32.mrf.mxu0
  %1972 = vmatprep.mubr.bf16.mxu0 0
  %1973 = vmatmul.mubr.bf16.gmra.mxu0 %v1922
  %v1974 = vpop.f32.mrf.mxu0
  %v1975 = vadd.f32 0.0, %v1974
  %v1976 = vpop.f32.mrf.mxu0
  %v1977 = vpop.f32.mrf.mxu0
  %v1978 = vadd.f32 0.0, %v1977
  %v1979 = vpop.f32.mrf.mxu0
  %1980 = vdwg.mxu0
  %v1982 = vunpack.c.l.b16 %v1833
  %v1983 = vpack.c.b16 %v1982, %v1862
  %v1992 = vunpack.c.l.b16 %v1834
  %v1993 = vunpack.c.l.b16 %v1835
  %v1994 = vunpack.c.l.b16 %v1836
  %v1995 = vunpack.c.l.b16 %v1837
  %v1996 = vunpack.c.l.b16 %v1838
  %v1997 = vunpack.c.l.b16 %v1839
  %v1998 = vunpack.c.l.b16 %v1840
  %v1999 = vunpack.c.l.b16 %v1841
  %v2000 = vpack.c.b16 %v1993, %v1992
  %v2001 = vpack.c.b16 %v1995, %v1994
  %v2002 = vpack.c.b16 %v1997, %v1996
  %v2003 = vpack.c.b16 %v1999, %v1998
  %v2008 = vsel %vm965, %v1864, 0
  %v2010 = vsel %vm965, %v1865, 0
  %v2013 = vsel %vm965, %v1983, 0
  %2015 = vmatprep.subr.bf16.mxu0 0
  %2016 = vmatpush1.bf16.msra.mxu0 0
  %2017 = vmatprep.subr.bf16.mxu0 0
  %2018 = vmatpush1.bf16.msra.mxu0 0
  %2019 = vmatprep.subr.bf16.mxu0 0
  %2020 = vmatpush1.bf16.msra.mxu0 0
  %2021 = vmatprep.subr.bf16.mxu0 0
  %2022 = vmatpush1.bf16.msra.mxu0 0
  %2023 = vmatprep.subr.bf16.mxu0 0
  %2024 = vmatpush1.bf16.msra.mxu0 %v2003
  %2025 = vmatprep.subr.bf16.mxu0 0
  %2026 = vmatpush1.bf16.msra.mxu0 %v2002
  %2027 = vmatprep.subr.bf16.mxu0 0
  %2028 = vmatpush1.bf16.msra.mxu0 %v2001
  %2029 = vmatprep.subr.bf16.mxu0 0
  %2030 = vmatpush1.bf16.msra.mxu0 %v2000
  %2031 = vmatprep.subr.bf16.mxu0 0
  %2032 = vmatpush2.bf16.msra.mxu0 0
  %2033 = vmatprep.subr.bf16.mxu0 0
  %2034 = vmatpush2.bf16.msra.mxu0 0
  %2035 = vmatprep.subr.bf16.mxu0 0
  %2036 = vmatpush2.bf16.msra.mxu0 0
  %2037 = vmatprep.subr.bf16.mxu0 0
  %2038 = vmatpush2.bf16.msra.mxu0 0
  %2039 = vmatprep.subr.bf16.mxu0 0
  %2040 = vmatpush2.bf16.msra.mxu0 0
  %2041 = vmatprep.subr.bf16.mxu0 0
  %2042 = vmatpush2.bf16.msra.mxu0 0
  %2043 = vmatprep.subr.bf16.mxu0 0
  %2044 = vmatpush2.bf16.msra.mxu0 0
  %2045 = vmatprep.subr.bf16.mxu0 0
  %2046 = vmatpush2.bf16.msra.mxu0 0
  %2047 = vmatprep.mubr.bf16.mxu0 0
  %2048 = vmatmul.mubr.bf16.gmra.mxu0 %v2008
  %v2049 = vpop.f32.mrf.mxu0
  %v2050 = vadd.f32 %v1959, %v2049
  %v2051 = vpop.f32.mrf.mxu0
  %v2052 = vpop.f32.mrf.mxu0
  %v2053 = vadd.f32 %v1962, %v2052
  %v2054 = vpop.f32.mrf.mxu0
  %2055 = vmatprep.mubr.bf16.mxu0 0
  %2056 = vmatmul.mubr.bf16.gmra.mxu0 %v2010
  %v2057 = vpop.f32.mrf.mxu0
  %v2058 = vadd.f32 %v1967, %v2057
  %v2059 = vpop.f32.mrf.mxu0
  %v2060 = vpop.f32.mrf.mxu0
  %v2061 = vadd.f32 %v1970, %v2060
  %v2062 = vpop.f32.mrf.mxu0
  %2063 = vmatprep.mubr.bf16.mxu0 0
  %2064 = vmatmul.mubr.bf16.gmra.mxu0 %v2013
  %v2065 = vpop.f32.mrf.mxu0
  %v2066 = vadd.f32 %v1975, %v2065
  %v2067 = vpop.f32.mrf.mxu0
  %v2068 = vpop.f32.mrf.mxu0
  %v2069 = vadd.f32 %v1978, %v2068
  %v2070 = vpop.f32.mrf.mxu0
  %2071 = vdwg.mxu0
  %v2072 = vld [vmem:[#allocation2] sm:$0xe]
  %s2073 = scalar_lea.vmem %s13, 64
  %v2074 = vld [vmem:[%s2073] sm:$0xf]
  %v2075 = vld [vmem:[%s2073 + $0x4] sm:$0xf]
  %v2076 = vld [vmem:[%s2073 + $0x8] sm:$0xf]
  %v2077 = vld [vmem:[%s2073 + $0xc] sm:$0xf]
  %v2078 = vld [vmem:[%s2073 + $0x10] sm:$0xf]
  %v2079 = vld [vmem:[%s2073 + $0x14] sm:$0xf]
  %v2080 = vld [vmem:[%s2073 + $0x18] sm:$0xf]
  %v2081 = vld [vmem:[%s2073 + $0x1c] sm:$0xf]
  %v2083 = vunpack.c.l.b16 %v2072
  %v2084 = vpack.c.b16 %v1859, %v2083
  %vm2085 = vcmask 1046528
  %v2086 = vrot.slane %v2084, 1
  %v2087 = vrot.slane %v1865, 1
  %v2088 = vsel %vm2085, %v2086, %v2087
  %v2089 = vrot.slane %v1866, 1
  %v2090 = vsel %vm2085, %v2087, %v2089
  %v2099 = vunpack.c.l.b16 %v2074
  %v2100 = vunpack.c.l.b16 %v2075
  %v2101 = vunpack.c.l.b16 %v2076
  %v2102 = vunpack.c.l.b16 %v2077
  %v2103 = vunpack.c.l.b16 %v2078
  %v2104 = vunpack.c.l.b16 %v2079
  %v2105 = vunpack.c.l.b16 %v2080
  %v2106 = vunpack.c.l.b16 %v2081
  %v2107 = vpack.c.b16 %v2100, %v2099
  %v2108 = vpack.c.b16 %v2102, %v2101
  %v2109 = vpack.c.b16 %v2104, %v2103
  %v2110 = vpack.c.b16 %v2106, %v2105
  %v2116 = vsel %vm965, %v2088, 0
  %v2119 = vsel %vm965, %v2090, 0
  %v2122 = vsel %vm965, %v2089, 0
  %2124 = vmatprep.subr.bf16.mxu0 0
  %2125 = vmatpush1.bf16.msra.mxu0 0
  %2126 = vmatprep.subr.bf16.mxu0 0
  %2127 = vmatpush1.bf16.msra.mxu0 0
  %2128 = vmatprep.subr.bf16.mxu0 0
  %2129 = vmatpush1.bf16.msra.mxu0 0
  %2130 = vmatprep.subr.bf16.mxu0 0
  %2131 = vmatpush1.bf16.msra.mxu0 0
  %2132 = vmatprep.subr.bf16.mxu0 0
  %2133 = vmatpush1.bf16.msra.mxu0 %v2110
  %2134 = vmatprep.subr.bf16.mxu0 0
  %2135 = vmatpush1.bf16.msra.mxu0 %v2109
  %2136 = vmatprep.subr.bf16.mxu0 0
  %2137 = vmatpush1.bf16.msra.mxu0 %v2108
  %2138 = vmatprep.subr.bf16.mxu0 0
  %2139 = vmatpush1.bf16.msra.mxu0 %v2107
  %2140 = vmatprep.subr.bf16.mxu0 0
  %2141 = vmatpush2.bf16.msra.mxu0 0
  %2142 = vmatprep.subr.bf16.mxu0 0
  %2143 = vmatpush2.bf16.msra.mxu0 0
  %2144 = vmatprep.subr.bf16.mxu0 0
  %2145 = vmatpush2.bf16.msra.mxu0 0
  %2146 = vmatprep.subr.bf16.mxu0 0
  %2147 = vmatpush2.bf16.msra.mxu0 0
  %2148 = vmatprep.subr.bf16.mxu0 0
  %2149 = vmatpush2.bf16.msra.mxu0 0
  %2150 = vmatprep.subr.bf16.mxu0 0
  %2151 = vmatpush2.bf16.msra.mxu0 0
  %2152 = vmatprep.subr.bf16.mxu0 0
  %2153 = vmatpush2.bf16.msra.mxu0 0
  %2154 = vmatprep.subr.bf16.mxu0 0
  %2155 = vmatpush2.bf16.msra.mxu0 0
  %2156 = vmatprep.mubr.bf16.mxu0 0
  %2157 = vmatmul.mubr.bf16.gmra.mxu0 %v2116
  %v2158 = vpop.f32.mrf.mxu0
  %v2159 = vadd.f32 0.0, %v2158
  %v2160 = vpop.f32.mrf.mxu0
  %v2161 = vpop.f32.mrf.mxu0
  %v2162 = vadd.f32 0.0, %v2161
  %v2163 = vpop.f32.mrf.mxu0
  %2164 = vmatprep.mubr.bf16.mxu0 0
  %2165 = vmatmul.mubr.bf16.gmra.mxu0 %v2119
  %v2166 = vpop.f32.mrf.mxu0
  %v2167 = vadd.f32 0.0, %v2166
  %v2168 = vpop.f32.mrf.mxu0
  %v2169 = vpop.f32.mrf.mxu0
  %v2170 = vadd.f32 0.0, %v2169
  %v2171 = vpop.f32.mrf.mxu0
  %2172 = vmatprep.mubr.bf16.mxu0 0
  %2173 = vmatmul.mubr.bf16.gmra.mxu0 %v2122
  %v2174 = vpop.f32.mrf.mxu0
  %v2175 = vadd.f32 0.0, %v2174
  %v2176 = vpop.f32.mrf.mxu0
  %v2177 = vpop.f32.mrf.mxu0
  %v2178 = vadd.f32 0.0, %v2177
  %v2179 = vpop.f32.mrf.mxu0
  %2180 = vdwg.mxu0
  %v2181 = vadd.f32 %v2050, %v2159
  %v2182 = vadd.f32 %v2053, %v2162
  %v2183 = vadd.f32 %v2058, %v2167
  %v2184 = vadd.f32 %v2061, %v2170
  %v2185 = vadd.f32 %v2066, %v2175
  %v2186 = vadd.f32 %v2069, %v2178
  %v2187 = vld [vmem:[#allocation2 + $0x14] sm:$0x7]
  %s2188 = scalar_lea.vmem %s13, 96
  %v2189 = vld [vmem:[%s2188] sm:$0xf]
  %v2190 = vld [vmem:[%s2188 + $0x4] sm:$0xf]
  %v2191 = vld [vmem:[%s2188 + $0x8] sm:$0xf]
  %v2192 = vld [vmem:[%s2188 + $0xc] sm:$0xf]
  %v2193 = vld [vmem:[%s2188 + $0x10] sm:$0xf]
  %v2194 = vld [vmem:[%s2188 + $0x14] sm:$0xf]
  %v2195 = vld [vmem:[%s2188 + $0x18] sm:$0xf]
  %v2196 = vld [vmem:[%s2188 + $0x1c] sm:$0xf]
  %v2198 = vunpack.c.l.b16 %v2187
  %v2199 = vpack.c.b16 %v2198, %v1862
  %v2201 = vshrl.u32 %v2084, 16
  %v2203 = vrot.slane %v2201, 1
  %v2204 = vshll.u32 %v2084, 16
  %v2206 = vrot.slane %v2204, 2
  %v2207 = vor.u32 %v2203, %v2206
  %v2208 = vrot.slane %v1880, 1
  %v2209 = vrot.slane %v1876, 2
  %v2210 = vor.u32 %v2208, %v2209
  %v2211 = vsel %vm1035, %v2207, %v2210
  %v2213 = vshrl.u32 %v2199, 16
  %v2215 = vrot.slane %v2213, 1
  %v2216 = vshll.u32 %v2199, 16
  %v2218 = vrot.slane %v2216, 2
  %v2219 = vor.u32 %v2215, %v2218
  %v2220 = vsel %vm1035, %v2210, %v2219
  %v2229 = vunpack.c.l.b16 %v2189
  %v2230 = vunpack.c.l.b16 %v2190
  %v2231 = vunpack.c.l.b16 %v2191
  %v2232 = vunpack.c.l.b16 %v2192
  %v2233 = vunpack.c.l.b16 %v2193
  %v2234 = vunpack.c.l.b16 %v2194
  %v2235 = vunpack.c.l.b16 %v2195
  %v2236 = vunpack.c.l.b16 %v2196
  %v2237 = vpack.c.b16 %v2230, %v2229
  %v2238 = vpack.c.b16 %v2232, %v2231
  %v2239 = vpack.c.b16 %v2234, %v2233
  %v2240 = vpack.c.b16 %v2236, %v2235
  %v2246 = vsel %vm965, %v2211, 0
  %v2249 = vsel %vm965, %v2220, 0
  %v2252 = vsel %vm965, %v2219, 0
  %2254 = vmatprep.subr.bf16.mxu0 0
  %2255 = vmatpush1.bf16.msra.mxu0 0
  %2256 = vmatprep.subr.bf16.mxu0 0
  %2257 = vmatpush1.bf16.msra.mxu0 0
  %2258 = vmatprep.subr.bf16.mxu0 0
  %2259 = vmatpush1.bf16.msra.mxu0 0
  %2260 = vmatprep.subr.bf16.mxu0 0
  %2261 = vmatpush1.bf16.msra.mxu0 0
  %2262 = vmatprep.subr.bf16.mxu0 0
  %2263 = vmatpush1.bf16.msra.mxu0 %v2240
  %2264 = vmatprep.subr.bf16.mxu0 0
  %2265 = vmatpush1.bf16.msra.mxu0 %v2239
  %2266 = vmatprep.subr.bf16.mxu0 0
  %2267 = vmatpush1.bf16.msra.mxu0 %v2238
  %2268 = vmatprep.subr.bf16.mxu0 0
  %2269 = vmatpush1.bf16.msra.mxu0 %v2237
  %2270 = vmatprep.subr.bf16.mxu0 0
  %2271 = vmatpush2.bf16.msra.mxu0 0
  %2272 = vmatprep.subr.bf16.mxu0 0
  %2273 = vmatpush2.bf16.msra.mxu0 0
  %2274 = vmatprep.subr.bf16.mxu0 0
  %2275 = vmatpush2.bf16.msra.mxu0 0
  %2276 = vmatprep.subr.bf16.mxu0 0
  %2277 = vmatpush2.bf16.msra.mxu0 0
  %2278 = vmatprep.subr.bf16.mxu0 0
  %2279 = vmatpush2.bf16.msra.mxu0 0
  %2280 = vmatprep.subr.bf16.mxu0 0
  %2281 = vmatpush2.bf16.msra.mxu0 0
  %2282 = vmatprep.subr.bf16.mxu0 0
  %2283 = vmatpush2.bf16.msra.mxu0 0
  %2284 = vmatprep.subr.bf16.mxu0 0
  %2285 = vmatpush2.bf16.msra.mxu0 0
  %2286 = vmatprep.mubr.bf16.mxu0 0
  %2287 = vmatmul.mubr.bf16.gmra.mxu0 %v2246
  %v2288 = vpop.f32.mrf.mxu0
  %v2289 = vadd.f32 0.0, %v2288
  %v2290 = vpop.f32.mrf.mxu0
  %v2291 = vpop.f32.mrf.mxu0
  %v2292 = vadd.f32 0.0, %v2291
  %v2293 = vpop.f32.mrf.mxu0
  %2294 = vmatprep.mubr.bf16.mxu0 0
  %2295 = vmatmul.mubr.bf16.gmra.mxu0 %v2249
  %v2296 = vpop.f32.mrf.mxu0
  %v2297 = vadd.f32 0.0, %v2296
  %v2298 = vpop.f32.mrf.mxu0
  %v2299 = vpop.f32.mrf.mxu0
  %v2300 = vadd.f32 0.0, %v2299
  %v2301 = vpop.f32.mrf.mxu0
  %2302 = vmatprep.mubr.bf16.mxu0 0
  %2303 = vmatmul.mubr.bf16.gmra.mxu0 %v2252
  %v2304 = vpop.f32.mrf.mxu0
  %v2305 = vadd.f32 0.0, %v2304
  %v2306 = vpop.f32.mrf.mxu0
  %v2307 = vpop.f32.mrf.mxu0
  %v2308 = vadd.f32 0.0, %v2307
  %v2309 = vpop.f32.mrf.mxu0
  %2310 = vdwg.mxu0
  %v2311 = vadd.f32 %v2181, %v2289
  %v2312 = vadd.f32 %v2182, %v2292
  %v2313 = vadd.f32 %v2183, %v2297
  %v2314 = vadd.f32 %v2184, %v2300
  %v2315 = vadd.f32 %v2185, %v2305
  %v2316 = vadd.f32 %v2186, %v2308
  %v2317 = vld [vmem:[#allocation2] sm:$0xc]
  %s2318 = scalar_lea.vmem %s13, 128
  %v2319 = vld [vmem:[%s2318] sm:$0xf]
  %v2320 = vld [vmem:[%s2318 + $0x4] sm:$0xf]
  %v2321 = vld [vmem:[%s2318 + $0x8] sm:$0xf]
  %v2322 = vld [vmem:[%s2318 + $0xc] sm:$0xf]
  %v2323 = vld [vmem:[%s2318 + $0x10] sm:$0xf]
  %v2324 = vld [vmem:[%s2318 + $0x14] sm:$0xf]
  %v2325 = vld [vmem:[%s2318 + $0x18] sm:$0xf]
  %v2326 = vld [vmem:[%s2318 + $0x1c] sm:$0xf]
  %v2328 = vunpack.c.l.b16 %v2317
  %v2329 = vpack.c.b16 %v1859, %v2328
  %v2330 = vrot.slane %v2329, 2
  %v2331 = vrot.slane %v1865, 2
  %v2332 = vsel %vm461, %v2330, %v2331
  %v2333 = vrot.slane %v2199, 2
  %v2334 = vsel %vm461, %v2331, %v2333
  %v2343 = vunpack.c.l.b16 %v2319
  %v2344 = vunpack.c.l.b16 %v2320
  %v2345 = vunpack.c.l.b16 %v2321
  %v2346 = vunpack.c.l.b16 %v2322
  %v2347 = vunpack.c.l.b16 %v2323
  %v2348 = vunpack.c.l.b16 %v2324
  %v2349 = vunpack.c.l.b16 %v2325
  %v2350 = vunpack.c.l.b16 %v2326
  %v2351 = vpack.c.b16 %v2344, %v2343
  %v2352 = vpack.c.b16 %v2346, %v2345
  %v2353 = vpack.c.b16 %v2348, %v2347
  %v2354 = vpack.c.b16 %v2350, %v2349
  %v2360 = vsel %vm965, %v2332, 0
  %v2363 = vsel %vm965, %v2334, 0
  %v2366 = vsel %vm965, %v2333, 0
  %2368 = vmatprep.subr.bf16.mxu0 0
  %2369 = vmatpush1.bf16.msra.mxu0 0
  %2370 = vmatprep.subr.bf16.mxu0 0
  %2371 = vmatpush1.bf16.msra.mxu0 0
  %2372 = vmatprep.subr.bf16.mxu0 0
  %2373 = vmatpush1.bf16.msra.mxu0 0
  %2374 = vmatprep.subr.bf16.mxu0 0
  %2375 = vmatpush1.bf16.msra.mxu0 0
  %2376 = vmatprep.subr.bf16.mxu0 0
  %2377 = vmatpush1.bf16.msra.mxu0 %v2354
  %2378 = vmatprep.subr.bf16.mxu0 0
  %2379 = vmatpush1.bf16.msra.mxu0 %v2353
  %2380 = vmatprep.subr.bf16.mxu0 0
  %2381 = vmatpush1.bf16.msra.mxu0 %v2352
  %2382 = vmatprep.subr.bf16.mxu0 0
  %2383 = vmatpush1.bf16.msra.mxu0 %v2351
  %2384 = vmatprep.subr.bf16.mxu0 0
  %2385 = vmatpush2.bf16.msra.mxu0 0
  %2386 = vmatprep.subr.bf16.mxu0 0
  %2387 = vmatpush2.bf16.msra.mxu0 0
  %2388 = vmatprep.subr.bf16.mxu0 0
  %2389 = vmatpush2.bf16.msra.mxu0 0
  %2390 = vmatprep.subr.bf16.mxu0 0
  %2391 = vmatpush2.bf16.msra.mxu0 0
  %2392 = vmatprep.subr.bf16.mxu0 0
  %2393 = vmatpush2.bf16.msra.mxu0 0
  %2394 = vmatprep.subr.bf16.mxu0 0
  %2395 = vmatpush2.bf16.msra.mxu0 0
  %2396 = vmatprep.subr.bf16.mxu0 0
  %2397 = vmatpush2.bf16.msra.mxu0 0
  %2398 = vmatprep.subr.bf16.mxu0 0
  %2399 = vmatpush2.bf16.msra.mxu0 0
  %2400 = vmatprep.mubr.bf16.mxu0 0
  %2401 = vmatmul.mubr.bf16.gmra.mxu0 %v2360
  %v2402 = vpop.f32.mrf.mxu0
  %v2403 = vadd.f32 0.0, %v2402
  %v2404 = vpop.f32.mrf.mxu0
  %v2405 = vpop.f32.mrf.mxu0
  %v2406 = vadd.f32 0.0, %v2405
  %v2407 = vpop.f32.mrf.mxu0
  %2408 = vmatprep.mubr.bf16.mxu0 0
  %2409 = vmatmul.mubr.bf16.gmra.mxu0 %v2363
  %v2410 = vpop.f32.mrf.mxu0
  %v2411 = vadd.f32 0.0, %v2410
  %v2412 = vpop.f32.mrf.mxu0
  %v2413 = vpop.f32.mrf.mxu0
  %v2414 = vadd.f32 0.0, %v2413
  %v2415 = vpop.f32.mrf.mxu0
  %2416 = vmatprep.mubr.bf16.mxu0 0
  %2417 = vmatmul.mubr.bf16.gmra.mxu0 %v2366
  %v2418 = vpop.f32.mrf.mxu0
  %v2419 = vadd.f32 0.0, %v2418
  %v2420 = vpop.f32.mrf.mxu0
  %v2421 = vpop.f32.mrf.mxu0
  %v2422 = vadd.f32 0.0, %v2421
  %v2423 = vpop.f32.mrf.mxu0
  %2424 = vdwg.mxu0
  %v2425 = vadd.f32 %v2311, %v2403
  %v2426 = vadd.f32 %v2312, %v2406
  %v2427 = vadd.f32 %v2313, %v2411
  %v2428 = vadd.f32 %v2314, %v2414
  %v2429 = vadd.f32 %v2315, %v2419
  %v2430 = vadd.f32 %v2316, %v2422
  %v2431 = vld [vmem:[#allocation2 + $0x14] sm:$0xf]
  %s2432 = scalar_lea.vmem %s13, 160
  %v2433 = vld [vmem:[%s2432] sm:$0xf]
  %v2434 = vld [vmem:[%s2432 + $0x4] sm:$0xf]
  %v2435 = vld [vmem:[%s2432 + $0x8] sm:$0xf]
  %v2436 = vld [vmem:[%s2432 + $0xc] sm:$0xf]
  %v2437 = vld [vmem:[%s2432 + $0x10] sm:$0xf]
  %v2438 = vld [vmem:[%s2432 + $0x14] sm:$0xf]
  %v2439 = vld [vmem:[%s2432 + $0x18] sm:$0xf]
  %v2440 = vld [vmem:[%s2432 + $0x1c] sm:$0xf]
  %v2442 = vunpack.c.l.b16 %v2431
  %v2443 = vpack.c.b16 %v2442, %v1862
  %v2445 = vshrl.u32 %v2329, 16
  %v2447 = vrot.slane %v2445, 2
  %v2448 = vshll.u32 %v2329, 16
  %v2450 = vrot.slane %v2448, 3
  %v2451 = vor.u32 %v2447, %v2450
  %v2452 = vrot.slane %v1880, 2
  %v2453 = vrot.slane %v1876, 3
  %v2454 = vor.u32 %v2452, %v2453
  %v2455 = vsel %vm345, %v2451, %v2454
  %v2457 = vshrl.u32 %v2443, 16
  %v2459 = vrot.slane %v2457, 2
  %v2460 = vshll.u32 %v2443, 16
  %v2462 = vrot.slane %v2460, 3
  %v2463 = vor.u32 %v2459, %v2462
  %v2464 = vsel %vm345, %v2454, %v2463
  %v2473 = vunpack.c.l.b16 %v2433
  %v2474 = vunpack.c.l.b16 %v2434
  %v2475 = vunpack.c.l.b16 %v2435
  %v2476 = vunpack.c.l.b16 %v2436
  %v2477 = vunpack.c.l.b16 %v2437
  %v2478 = vunpack.c.l.b16 %v2438
  %v2479 = vunpack.c.l.b16 %v2439
  %v2480 = vunpack.c.l.b16 %v2440
  %v2481 = vpack.c.b16 %v2474, %v2473
  %v2482 = vpack.c.b16 %v2476, %v2475
  %v2483 = vpack.c.b16 %v2478, %v2477
  %v2484 = vpack.c.b16 %v2480, %v2479
  %v2490 = vsel %vm965, %v2455, 0
  %v2493 = vsel %vm965, %v2464, 0
  %v2496 = vsel %vm965, %v2463, 0
  %2498 = vmatprep.subr.bf16.mxu0 0
  %2499 = vmatpush1.bf16.msra.mxu0 0
  %2500 = vmatprep.subr.bf16.mxu0 0
  %2501 = vmatpush1.bf16.msra.mxu0 0
  %2502 = vmatprep.subr.bf16.mxu0 0
  %2503 = vmatpush1.bf16.msra.mxu0 0
  %2504 = vmatprep.subr.bf16.mxu0 0
  %2505 = vmatpush1.bf16.msra.mxu0 0
  %2506 = vmatprep.subr.bf16.mxu0 0
  %2507 = vmatpush1.bf16.msra.mxu0 %v2484
  %2508 = vmatprep.subr.bf16.mxu0 0
  %2509 = vmatpush1.bf16.msra.mxu0 %v2483
  %2510 = vmatprep.subr.bf16.mxu0 0
  %2511 = vmatpush1.bf16.msra.mxu0 %v2482
  %2512 = vmatprep.subr.bf16.mxu0 0
  %2513 = vmatpush1.bf16.msra.mxu0 %v2481
  %2514 = vmatprep.subr.bf16.mxu0 0
  %2515 = vmatpush2.bf16.msra.mxu0 0
  %2516 = vmatprep.subr.bf16.mxu0 0
  %2517 = vmatpush2.bf16.msra.mxu0 0
  %2518 = vmatprep.subr.bf16.mxu0 0
  %2519 = vmatpush2.bf16.msra.mxu0 0
  %2520 = vmatprep.subr.bf16.mxu0 0
  %2521 = vmatpush2.bf16.msra.mxu0 0
  %2522 = vmatprep.subr.bf16.mxu0 0
  %2523 = vmatpush2.bf16.msra.mxu0 0
  %2524 = vmatprep.subr.bf16.mxu0 0
  %2525 = vmatpush2.bf16.msra.mxu0 0
  %2526 = vmatprep.subr.bf16.mxu0 0
  %2527 = vmatpush2.bf16.msra.mxu0 0
  %2528 = vmatprep.subr.bf16.mxu0 0
  %2529 = vmatpush2.bf16.msra.mxu0 0
  %2530 = vmatprep.mubr.bf16.mxu0 0
  %2531 = vmatmul.mubr.bf16.gmra.mxu0 %v2490
  %v2532 = vpop.f32.mrf.mxu0
  %v2533 = vadd.f32 0.0, %v2532
  %v2534 = vpop.f32.mrf.mxu0
  %v2535 = vpop.f32.mrf.mxu0
  %v2536 = vadd.f32 0.0, %v2535
  %v2537 = vpop.f32.mrf.mxu0
  %2538 = vmatprep.mubr.bf16.mxu0 0
  %2539 = vmatmul.mubr.bf16.gmra.mxu0 %v2493
  %v2540 = vpop.f32.mrf.mxu0
  %v2541 = vadd.f32 0.0, %v2540
  %v2542 = vpop.f32.mrf.mxu0
  %v2543 = vpop.f32.mrf.mxu0
  %v2544 = vadd.f32 0.0, %v2543
  %v2545 = vpop.f32.mrf.mxu0
  %2546 = vmatprep.mubr.bf16.mxu0 0
  %2547 = vmatmul.mubr.bf16.gmra.mxu0 %v2496
  %v2548 = vpop.f32.mrf.mxu0
  %v2549 = vadd.f32 0.0, %v2548
  %v2550 = vpop.f32.mrf.mxu0
  %v2551 = vpop.f32.mrf.mxu0
  %v2552 = vadd.f32 0.0, %v2551
  %v2553 = vpop.f32.mrf.mxu0
  %2554 = vdwg.mxu0
  %v2555 = vadd.f32 %v2425, %v2533
  %v2556 = vadd.f32 %v2426, %v2536
  %v2557 = vadd.f32 %v2427, %v2541
  %v2558 = vadd.f32 %v2428, %v2544
  %v2559 = vadd.f32 %v2429, %v2549
  %v2560 = vadd.f32 %v2430, %v2552
  %v2561 = vld [vmem:[#allocation2] sm:$0x8]
  %s2562 = scalar_lea.vmem %s13, 192
  %v2563 = vld [vmem:[%s2562] sm:$0xf]
  %v2564 = vld [vmem:[%s2562 + $0x4] sm:$0xf]
  %v2565 = vld [vmem:[%s2562 + $0x8] sm:$0xf]
  %v2566 = vld [vmem:[%s2562 + $0xc] sm:$0xf]
  %v2567 = vld [vmem:[%s2562 + $0x10] sm:$0xf]
  %v2568 = vld [vmem:[%s2562 + $0x14] sm:$0xf]
  %v2569 = vld [vmem:[%s2562 + $0x18] sm:$0xf]
  %v2570 = vld [vmem:[%s2562 + $0x1c] sm:$0xf]
  %v2572 = vunpack.c.l.b16 %v2561
  %v2573 = vpack.c.b16 %v1859, %v2572
  %v2574 = vrot.slane %v2573, 3
  %v2575 = vrot.slane %v1865, 3
  %v2576 = vsel %vm564, %v2574, %v2575
  %v2577 = vrot.slane %v2443, 3
  %v2578 = vsel %vm564, %v2575, %v2577
  %v2587 = vunpack.c.l.b16 %v2563
  %v2588 = vunpack.c.l.b16 %v2564
  %v2589 = vunpack.c.l.b16 %v2565
  %v2590 = vunpack.c.l.b16 %v2566
  %v2591 = vunpack.c.l.b16 %v2567
  %v2592 = vunpack.c.l.b16 %v2568
  %v2593 = vunpack.c.l.b16 %v2569
  %v2594 = vunpack.c.l.b16 %v2570
  %v2595 = vpack.c.b16 %v2588, %v2587
  %v2596 = vpack.c.b16 %v2590, %v2589
  %v2597 = vpack.c.b16 %v2592, %v2591
  %v2598 = vpack.c.b16 %v2594, %v2593
  %v2604 = vsel %vm965, %v2576, 0
  %v2607 = vsel %vm965, %v2578, 0
  %v2610 = vsel %vm965, %v2577, 0
  %2612 = vmatprep.subr.bf16.mxu0 0
  %2613 = vmatpush1.bf16.msra.mxu0 0
  %2614 = vmatprep.subr.bf16.mxu0 0
  %2615 = vmatpush1.bf16.msra.mxu0 0
  %2616 = vmatprep.subr.bf16.mxu0 0
  %2617 = vmatpush1.bf16.msra.mxu0 0
  %2618 = vmatprep.subr.bf16.mxu0 0
  %2619 = vmatpush1.bf16.msra.mxu0 0
  %2620 = vmatprep.subr.bf16.mxu0 0
  %2621 = vmatpush1.bf16.msra.mxu0 %v2598
  %2622 = vmatprep.subr.bf16.mxu0 0
  %2623 = vmatpush1.bf16.msra.mxu0 %v2597
  %2624 = vmatprep.subr.bf16.mxu0 0
  %2625 = vmatpush1.bf16.msra.mxu0 %v2596
  %2626 = vmatprep.subr.bf16.mxu0 0
  %2627 = vmatpush1.bf16.msra.mxu0 %v2595
  %2628 = vmatprep.subr.bf16.mxu0 0
  %2629 = vmatpush2.bf16.msra.mxu0 0
  %2630 = vmatprep.subr.bf16.mxu0 0
  %2631 = vmatpush2.bf16.msra.mxu0 0
  %2632 = vmatprep.subr.bf16.mxu0 0
  %2633 = vmatpush2.bf16.msra.mxu0 0
  %2634 = vmatprep.subr.bf16.mxu0 0
  %2635 = vmatpush2.bf16.msra.mxu0 0
  %2636 = vmatprep.subr.bf16.mxu0 0
  %2637 = vmatpush2.bf16.msra.mxu0 0
  %2638 = vmatprep.subr.bf16.mxu0 0
  %2639 = vmatpush2.bf16.msra.mxu0 0
  %2640 = vmatprep.subr.bf16.mxu0 0
  %2641 = vmatpush2.bf16.msra.mxu0 0
  %2642 = vmatprep.subr.bf16.mxu0 0
  %2643 = vmatpush2.bf16.msra.mxu0 0
  %2644 = vmatprep.mubr.bf16.mxu0 0
  %2645 = vmatmul.mubr.bf16.gmra.mxu0 %v2604
  %v2646 = vpop.f32.mrf.mxu0
  %v2647 = vadd.f32 0.0, %v2646
  %v2648 = vpop.f32.mrf.mxu0
  %v2649 = vpop.f32.mrf.mxu0
  %v2650 = vadd.f32 0.0, %v2649
  %v2651 = vpop.f32.mrf.mxu0
  %2652 = vmatprep.mubr.bf16.mxu0 0
  %2653 = vmatmul.mubr.bf16.gmra.mxu0 %v2607
  %v2654 = vpop.f32.mrf.mxu0
  %v2655 = vadd.f32 0.0, %v2654
  %v2656 = vpop.f32.mrf.mxu0
  %v2657 = vpop.f32.mrf.mxu0
  %v2658 = vadd.f32 0.0, %v2657
  %v2659 = vpop.f32.mrf.mxu0
  %2660 = vmatprep.mubr.bf16.mxu0 0
  %2661 = vmatmul.mubr.bf16.gmra.mxu0 %v2610
  %v2662 = vpop.f32.mrf.mxu0
  %v2663 = vadd.f32 0.0, %v2662
  %v2664 = vpop.f32.mrf.mxu0
  %v2665 = vpop.f32.mrf.mxu0
  %v2666 = vadd.f32 0.0, %v2665
  %v2667 = vpop.f32.mrf.mxu0
  %2668 = vdwg.mxu0
  %v2669 = vadd.f32 %v2555, %v2647
  %v2670 = vadd.f32 %v2556, %v2650
  %v2671 = vadd.f32 %v2557, %v2655
  %v2672 = vadd.f32 %v2558, %v2658
  %v2673 = vadd.f32 %v2559, %v2663
  %v2674 = vadd.f32 %v2560, %v2666
  %v2675 = vld [vmem:[#allocation2] sm:$0x8]
  %v2676 = vld [vmem:[#allocation2 + $0x4] sm:$0xf]
  %v2677 = vld [vmem:[#allocation2 + $0x8] sm:$0xf]
  %v2678 = vld [vmem:[#allocation2 + $0xc] sm:$0xf]
  %v2679 = vld [vmem:[#allocation2 + $0x10] sm:$0xf]
  %v2680 = vld [vmem:[#allocation2 + $0x14] sm:$0xf]
  %v2681 = vld [vmem:[#allocation2 + $0x18] sm:$0x1]
  %s2682 = scalar_lea.vmem %s13, 224
  %v2683 = vld [vmem:[%s2682] sm:$0xf]
  %v2684 = vld [vmem:[%s2682 + $0x4] sm:$0xf]
  %v2685 = vld [vmem:[%s2682 + $0x8] sm:$0xf]
  %v2686 = vld [vmem:[%s2682 + $0xc] sm:$0xf]
  %v2687 = vld [vmem:[%s2682 + $0x10] sm:$0xf]
  %v2688 = vld [vmem:[%s2682 + $0x14] sm:$0xf]
  %v2689 = vld [vmem:[%s2682 + $0x18] sm:$0xf]
  %v2690 = vld [vmem:[%s2682 + $0x1c] sm:$0xf]
  %v2698 = vunpack.c.l.b16 %v2675
  %v2699 = vunpack.c.l.b16 %v2676
  %v2700 = vunpack.c.l.b16 %v2677
  %v2701 = vunpack.c.l.b16 %v2678
  %v2702 = vunpack.c.l.b16 %v2679
  %v2703 = vunpack.c.l.b16 %v2680
  %v2704 = vunpack.c.l.b16 %v2681
  %v2705 = vpack.c.b16 %v2699, %v2698
  %v2706 = vpack.c.b16 %v2701, %v2700
  %v2707 = vpack.c.b16 %v2703, %v2702
  %v2708 = vpack.c.b16 %v2704, %v2704
  %v2710 = vshrl.u32 %v2705, 16
  %v2712 = vrot.slane %v2710, 3
  %v2713 = vshll.u32 %v2705, 16
  %v2715 = vrot.slane %v2713, 4
  %v2716 = vor.u32 %v2712, %v2715
  %v2718 = vshrl.u32 %v2706, 16
  %v2720 = vrot.slane %v2718, 3
  %v2721 = vshll.u32 %v2706, 16
  %v2723 = vrot.slane %v2721, 4
  %v2724 = vor.u32 %v2720, %v2723
  %v2725 = vsel %vm1430, %v2716, %v2724
  %v2727 = vshrl.u32 %v2707, 16
  %v2729 = vrot.slane %v2727, 3
  %v2730 = vshll.u32 %v2707, 16
  %v2732 = vrot.slane %v2730, 4
  %v2733 = vor.u32 %v2729, %v2732
  %v2734 = vsel %vm1430, %v2724, %v2733
  %v2736 = vshll.u32 %v2708, 16
  %v2738 = vrot.slane %v2736, 4
  %v2739 = vsel %vm1430, %v2733, %v2738
  %v2748 = vunpack.c.l.b16 %v2683
  %v2749 = vunpack.c.l.b16 %v2684
  %v2750 = vunpack.c.l.b16 %v2685
  %v2751 = vunpack.c.l.b16 %v2686
  %v2752 = vunpack.c.l.b16 %v2687
  %v2753 = vunpack.c.l.b16 %v2688
  %v2754 = vunpack.c.l.b16 %v2689
  %v2755 = vunpack.c.l.b16 %v2690
  %v2756 = vpack.c.b16 %v2749, %v2748
  %v2757 = vpack.c.b16 %v2751, %v2750
  %v2758 = vpack.c.b16 %v2753, %v2752
  %v2759 = vpack.c.b16 %v2755, %v2754
  %v2765 = vsel %vm965, %v2725, 0
  %v2768 = vsel %vm965, %v2734, 0
  %v2771 = vsel %vm965, %v2739, 0
  %2773 = vmatprep.subr.bf16.mxu0 0
  %2774 = vmatpush1.bf16.msra.mxu0 0
  %2775 = vmatprep.subr.bf16.mxu0 0
  %2776 = vmatpush1.bf16.msra.mxu0 0
  %2777 = vmatprep.subr.bf16.mxu0 0
  %2778 = vmatpush1.bf16.msra.mxu0 0
  %2779 = vmatprep.subr.bf16.mxu0 0
  %2780 = vmatpush1.bf16.msra.mxu0 0
  %2781 = vmatprep.subr.bf16.mxu0 0
  %2782 = vmatpush1.bf16.msra.mxu0 %v2759
  %2783 = vmatprep.subr.bf16.mxu0 0
  %2784 = vmatpush1.bf16.msra.mxu0 %v2758
  %2785 = vmatprep.subr.bf16.mxu0 0
  %2786 = vmatpush1.bf16.msra.mxu0 %v2757
  %2787 = vmatprep.subr.bf16.mxu0 0
  %2788 = vmatpush1.bf16.msra.mxu0 %v2756
  %2789 = vmatprep.subr.bf16.mxu0 0
  %2790 = vmatpush2.bf16.msra.mxu0 0
  %2791 = vmatprep.subr.bf16.mxu0 0
  %2792 = vmatpush2.bf16.msra.mxu0 0
  %2793 = vmatprep.subr.bf16.mxu0 0
  %2794 = vmatpush2.bf16.msra.mxu0 0
  %2795 = vmatprep.subr.bf16.mxu0 0
  %2796 = vmatpush2.bf16.msra.mxu0 0
  %2797 = vmatprep.subr.bf16.mxu0 0
  %2798 = vmatpush2.bf16.msra.mxu0 0
  %2799 = vmatprep.subr.bf16.mxu0 0
  %2800 = vmatpush2.bf16.msra.mxu0 0
  %2801 = vmatprep.subr.bf16.mxu0 0
  %2802 = vmatpush2.bf16.msra.mxu0 0
  %2803 = vmatprep.subr.bf16.mxu0 0
  %2804 = vmatpush2.bf16.msra.mxu0 0
  %2805 = vmatprep.mubr.bf16.mxu0 0
  %2806 = vmatmul.mubr.bf16.gmra.mxu0 %v2765
  %v2807 = vpop.f32.mrf.mxu0
  %v2808 = vadd.f32 0.0, %v2807
  %v2809 = vpop.f32.mrf.mxu0
  %v2810 = vpop.f32.mrf.mxu0
  %v2811 = vadd.f32 0.0, %v2810
  %v2812 = vpop.f32.mrf.mxu0
  %2813 = vmatprep.mubr.bf16.mxu0 0
  %2814 = vmatmul.mubr.bf16.gmra.mxu0 %v2768
  %v2815 = vpop.f32.mrf.mxu0
  %v2816 = vadd.f32 0.0, %v2815
  %v2817 = vpop.f32.mrf.mxu0
  %v2818 = vpop.f32.mrf.mxu0
  %v2819 = vadd.f32 0.0, %v2818
  %v2820 = vpop.f32.mrf.mxu0
  %2821 = vmatprep.mubr.bf16.mxu0 0
  %2822 = vmatmul.mubr.bf16.gmra.mxu0 %v2771
  %v2823 = vpop.f32.mrf.mxu0
  %v2824 = vadd.f32 0.0, %v2823
  %v2825 = vpop.f32.mrf.mxu0
  %v2826 = vpop.f32.mrf.mxu0
  %v2827 = vadd.f32 0.0, %v2826
  %v2828 = vpop.f32.mrf.mxu0
  %2829 = vdwg.mxu0
  %v2830 = vadd.f32 %v2669, %v2808
  %v2831 = vadd.f32 %v2670, %v2811
  %v2832 = vadd.f32 %v2671, %v2816
  %v2833 = vadd.f32 %v2672, %v2819
  %v2834 = vadd.f32 %v2673, %v2824
  %v2835 = vadd.f32 %v2674, %v2827
  %s2836 = scalar_lea.vmem %s13, 256
  %v2837 = vld [vmem:[%s2836] sm:$0xf]
  %v2838 = vld [vmem:[%s2836 + $0x4] sm:$0xf]
  %v2839 = vld [vmem:[%s2836 + $0x8] sm:$0xf]
  %v2840 = vld [vmem:[%s2836 + $0xc] sm:$0xf]
  %v2841 = vld [vmem:[%s2836 + $0x10] sm:$0xf]
  %v2842 = vld [vmem:[%s2836 + $0x14] sm:$0xf]
  %v2843 = vld [vmem:[%s2836 + $0x18] sm:$0xf]
  %v2844 = vld [vmem:[%s2836 + $0x1c] sm:$0xf]
  %v2845 = vpack.c.b16 %v2700, %v2699
  %v2846 = vpack.c.b16 %v2702, %v2701
  %v2847 = vpack.c.b16 %v2704, %v2703
  %v2856 = vunpack.c.l.b16 %v2837
  %v2857 = vunpack.c.l.b16 %v2838
  %v2858 = vunpack.c.l.b16 %v2839
  %v2859 = vunpack.c.l.b16 %v2840
  %v2860 = vunpack.c.l.b16 %v2841
  %v2861 = vunpack.c.l.b16 %v2842
  %v2862 = vunpack.c.l.b16 %v2843
  %v2863 = vunpack.c.l.b16 %v2844
  %v2864 = vpack.c.b16 %v2857, %v2856
  %v2865 = vpack.c.b16 %v2859, %v2858
  %v2866 = vpack.c.b16 %v2861, %v2860
  %v2867 = vpack.c.b16 %v2863, %v2862
  %v2873 = vsel %vm965, %v2845, 0
  %v2876 = vsel %vm965, %v2846, 0
  %v2879 = vsel %vm965, %v2847, 0
  %2881 = vmatprep.subr.bf16.mxu0 0
  %2882 = vmatpush1.bf16.msra.mxu0 0
  %2883 = vmatprep.subr.bf16.mxu0 0
  %2884 = vmatpush1.bf16.msra.mxu0 0
  %2885 = vmatprep.subr.bf16.mxu0 0
  %2886 = vmatpush1.bf16.msra.mxu0 0
  %2887 = vmatprep.subr.bf16.mxu0 0
  %2888 = vmatpush1.bf16.msra.mxu0 0
  %2889 = vmatprep.subr.bf16.mxu0 0
  %2890 = vmatpush1.bf16.msra.mxu0 %v2867
  %2891 = vmatprep.subr.bf16.mxu0 0
  %2892 = vmatpush1.bf16.msra.mxu0 %v2866
  %2893 = vmatprep.subr.bf16.mxu0 0
  %2894 = vmatpush1.bf16.msra.mxu0 %v2865
  %2895 = vmatprep.subr.bf16.mxu0 0
  %2896 = vmatpush1.bf16.msra.mxu0 %v2864
  %2897 = vmatprep.subr.bf16.mxu0 0
  %2898 = vmatpush2.bf16.msra.mxu0 0
  %2899 = vmatprep.subr.bf16.mxu0 0
  %2900 = vmatpush2.bf16.msra.mxu0 0
  %2901 = vmatprep.subr.bf16.mxu0 0
  %2902 = vmatpush2.bf16.msra.mxu0 0
  %2903 = vmatprep.subr.bf16.mxu0 0
  %2904 = vmatpush2.bf16.msra.mxu0 0
  %2905 = vmatprep.subr.bf16.mxu0 0
  %2906 = vmatpush2.bf16.msra.mxu0 0
  %2907 = vmatprep.subr.bf16.mxu0 0
  %2908 = vmatpush2.bf16.msra.mxu0 0
  %2909 = vmatprep.subr.bf16.mxu0 0
  %2910 = vmatpush2.bf16.msra.mxu0 0
  %2911 = vmatprep.subr.bf16.mxu0 0
  %2912 = vmatpush2.bf16.msra.mxu0 0
  %2913 = vmatprep.mubr.bf16.mxu0 0
  %2914 = vmatmul.mubr.bf16.gmra.mxu0 %v2873
  %v2915 = vpop.f32.mrf.mxu0
  %v2916 = vadd.f32 0.0, %v2915
  %v2917 = vpop.f32.mrf.mxu0
  %v2918 = vpop.f32.mrf.mxu0
  %v2919 = vadd.f32 0.0, %v2918
  %v2920 = vpop.f32.mrf.mxu0
  %2921 = vmatprep.mubr.bf16.mxu0 0
  %2922 = vmatmul.mubr.bf16.gmra.mxu0 %v2876
  %v2923 = vpop.f32.mrf.mxu0
  %v2924 = vadd.f32 0.0, %v2923
  %v2925 = vpop.f32.mrf.mxu0
  %v2926 = vpop.f32.mrf.mxu0
  %v2927 = vadd.f32 0.0, %v2926
  %v2928 = vpop.f32.mrf.mxu0
  %2929 = vmatprep.mubr.bf16.mxu0 0
  %2930 = vmatmul.mubr.bf16.gmra.mxu0 %v2879
  %v2931 = vpop.f32.mrf.mxu0
  %v2932 = vadd.f32 0.0, %v2931
  %v2933 = vpop.f32.mrf.mxu0
  %v2934 = vpop.f32.mrf.mxu0
  %v2935 = vadd.f32 0.0, %v2934
  %v2936 = vpop.f32.mrf.mxu0
  %2937 = vdwg.mxu0
  %v2938 = vadd.f32 %v2830, %v2916
  %v2939 = vadd.f32 %v2831, %v2919
  %v2940 = vadd.f32 %v2832, %v2924
  %v2941 = vadd.f32 %v2833, %v2927
  %v2942 = vadd.f32 %v2834, %v2932
  %v2943 = vadd.f32 %v2835, %v2935
  %v2944 = vld [vmem:[#allocation2 + $0x18] sm:$0x3]
  %s2945 = scalar_lea.vmem %s13, 288
  %v2946 = vld [vmem:[%s2945] sm:$0xf]
  %v2947 = vld [vmem:[%s2945 + $0x4] sm:$0xf]
  %v2948 = vld [vmem:[%s2945 + $0x8] sm:$0xf]
  %v2949 = vld [vmem:[%s2945 + $0xc] sm:$0xf]
  %v2950 = vld [vmem:[%s2945 + $0x10] sm:$0xf]
  %v2951 = vld [vmem:[%s2945 + $0x14] sm:$0xf]
  %v2952 = vld [vmem:[%s2945 + $0x18] sm:$0xf]
  %v2953 = vld [vmem:[%s2945 + $0x1c] sm:$0xf]
  %v2955 = vunpack.c.l.b16 %v2944
  %v2956 = vpack.c.b16 %v2955, %v2703
  %v2957 = vshrl.u32 %v2845, 16
  %v2959 = vshll.u32 %v2845, 16
  %v2961 = vrot.slane %v2959, 1
  %v2962 = vor.u32 %v2957, %v2961
  %v2963 = vshll.u32 %v2846, 16
  %v2965 = vrot.slane %v2963, 1
  %v2966 = vsel %vm1867, %v2962, %v2965
  %v2967 = vshrl.u32 %v2846, 16
  %v2969 = vor.u32 %v2967, %v2965
  %v2971 = vshll.u32 %v2956, 16
  %v2973 = vrot.slane %v2971, 1
  %v2974 = vsel %vm1867, %v2969, %v2973
  %v2975 = vshrl.u32 %v2956, 16
  %v2977 = vor.u32 %v2975, %v2973
  %v2986 = vunpack.c.l.b16 %v2946
  %v2987 = vunpack.c.l.b16 %v2947
  %v2988 = vunpack.c.l.b16 %v2948
  %v2989 = vunpack.c.l.b16 %v2949
  %v2990 = vunpack.c.l.b16 %v2950
  %v2991 = vunpack.c.l.b16 %v2951
  %v2992 = vunpack.c.l.b16 %v2952
  %v2993 = vunpack.c.l.b16 %v2953
  %v2994 = vpack.c.b16 %v2987, %v2986
  %v2995 = vpack.c.b16 %v2989, %v2988
  %v2996 = vpack.c.b16 %v2991, %v2990
  %v2997 = vpack.c.b16 %v2993, %v2992
  %v3003 = vsel %vm965, %v2966, 0
  %v3006 = vsel %vm965, %v2974, 0
  %v3009 = vsel %vm965, %v2977, 0
  %3011 = vmatprep.subr.bf16.mxu0 0
  %3012 = vmatpush1.bf16.msra.mxu0 0
  %3013 = vmatprep.subr.bf16.mxu0 0
  %3014 = vmatpush1.bf16.msra.mxu0 0
  %3015 = vmatprep.subr.bf16.mxu0 0
  %3016 = vmatpush1.bf16.msra.mxu0 0
  %3017 = vmatprep.subr.bf16.mxu0 0
  %3018 = vmatpush1.bf16.msra.mxu0 0
  %3019 = vmatprep.subr.bf16.mxu0 0
  %3020 = vmatpush1.bf16.msra.mxu0 %v2997
  %3021 = vmatprep.subr.bf16.mxu0 0
  %3022 = vmatpush1.bf16.msra.mxu0 %v2996
  %3023 = vmatprep.subr.bf16.mxu0 0
  %3024 = vmatpush1.bf16.msra.mxu0 %v2995
  %3025 = vmatprep.subr.bf16.mxu0 0
  %3026 = vmatpush1.bf16.msra.mxu0 %v2994
  %3027 = vmatprep.subr.bf16.mxu0 0
  %3028 = vmatpush2.bf16.msra.mxu0 0
  %3029 = vmatprep.subr.bf16.mxu0 0
  %3030 = vmatpush2.bf16.msra.mxu0 0
  %3031 = vmatprep.subr.bf16.mxu0 0
  %3032 = vmatpush2.bf16.msra.mxu0 0
  %3033 = vmatprep.subr.bf16.mxu0 0
  %3034 = vmatpush2.bf16.msra.mxu0 0
  %3035 = vmatprep.subr.bf16.mxu0 0
  %3036 = vmatpush2.bf16.msra.mxu0 0
  %3037 = vmatprep.subr.bf16.mxu0 0
  %3038 = vmatpush2.bf16.msra.mxu0 0
  %3039 = vmatprep.subr.bf16.mxu0 0
  %3040 = vmatpush2.bf16.msra.mxu0 0
  %3041 = vmatprep.subr.bf16.mxu0 0
  %3042 = vmatpush2.bf16.msra.mxu0 0
  %3043 = vmatprep.mubr.bf16.mxu0 0
  %3044 = vmatmul.mubr.bf16.gmra.mxu0 %v3003
  %v3045 = vpop.f32.mrf.mxu0
  %v3046 = vadd.f32 0.0, %v3045
  %v3047 = vpop.f32.mrf.mxu0
  %v3048 = vpop.f32.mrf.mxu0
  %v3049 = vadd.f32 0.0, %v3048
  %v3050 = vpop.f32.mrf.mxu0
  %3051 = vmatprep.mubr.bf16.mxu0 0
  %3052 = vmatmul.mubr.bf16.gmra.mxu0 %v3006
  %v3053 = vpop.f32.mrf.mxu0
  %v3054 = vadd.f32 0.0, %v3053
  %v3055 = vpop.f32.mrf.mxu0
  %v3056 = vpop.f32.mrf.mxu0
  %v3057 = vadd.f32 0.0, %v3056
  %v3058 = vpop.f32.mrf.mxu0
  %3059 = vmatprep.mubr.bf16.mxu0 0
  %3060 = vmatmul.mubr.bf16.gmra.mxu0 %v3009
  %v3061 = vpop.f32.mrf.mxu0
  %v3062 = vadd.f32 0.0, %v3061
  %v3063 = vpop.f32.mrf.mxu0
  %v3064 = vpop.f32.mrf.mxu0
  %v3065 = vadd.f32 0.0, %v3064
  %v3066 = vpop.f32.mrf.mxu0
  %3067 = vdwg.mxu0
  %v3068 = vadd.f32 %v2938, %v3046
  %v3069 = vadd.f32 %v2939, %v3049
  %v3070 = vadd.f32 %v2940, %v3054
  %v3071 = vadd.f32 %v2941, %v3057
  %v3072 = vadd.f32 %v2942, %v3062
  %v3073 = vadd.f32 %v2943, %v3065
  %v3074 = vld [vmem:[#allocation2 + $0x4] sm:$0xe]
  %s3075 = scalar_lea.vmem %s13, 320
  %v3076 = vld [vmem:[%s3075] sm:$0xf]
  %v3077 = vld [vmem:[%s3075 + $0x4] sm:$0xf]
  %v3078 = vld [vmem:[%s3075 + $0x8] sm:$0xf]
  %v3079 = vld [vmem:[%s3075 + $0xc] sm:$0xf]
  %v3080 = vld [vmem:[%s3075 + $0x10] sm:$0xf]
  %v3081 = vld [vmem:[%s3075 + $0x14] sm:$0xf]
  %v3082 = vld [vmem:[%s3075 + $0x18] sm:$0xf]
  %v3083 = vld [vmem:[%s3075 + $0x1c] sm:$0xf]
  %v3085 = vunpack.c.l.b16 %v3074
  %v3086 = vpack.c.b16 %v2700, %v3085
  %v3087 = vrot.slane %v3086, 1
  %v3088 = vrot.slane %v2846, 1
  %v3089 = vsel %vm2085, %v3087, %v3088
  %v3090 = vrot.slane %v2956, 1
  %v3091 = vsel %vm2085, %v3088, %v3090
  %v3100 = vunpack.c.l.b16 %v3076
  %v3101 = vunpack.c.l.b16 %v3077
  %v3102 = vunpack.c.l.b16 %v3078
  %v3103 = vunpack.c.l.b16 %v3079
  %v3104 = vunpack.c.l.b16 %v3080
  %v3105 = vunpack.c.l.b16 %v3081
  %v3106 = vunpack.c.l.b16 %v3082
  %v3107 = vunpack.c.l.b16 %v3083
  %v3108 = vpack.c.b16 %v3101, %v3100
  %v3109 = vpack.c.b16 %v3103, %v3102
  %v3110 = vpack.c.b16 %v3105, %v3104
  %v3111 = vpack.c.b16 %v3107, %v3106
  %v3117 = vsel %vm965, %v3089, 0
  %v3120 = vsel %vm965, %v3091, 0
  %v3123 = vsel %vm965, %v3090, 0
  %3125 = vmatprep.subr.bf16.mxu0 0
  %3126 = vmatpush1.bf16.msra.mxu0 0
  %3127 = vmatprep.subr.bf16.mxu0 0
  %3128 = vmatpush1.bf16.msra.mxu0 0
  %3129 = vmatprep.subr.bf16.mxu0 0
  %3130 = vmatpush1.bf16.msra.mxu0 0
  %3131 = vmatprep.subr.bf16.mxu0 0
  %3132 = vmatpush1.bf16.msra.mxu0 0
  %3133 = vmatprep.subr.bf16.mxu0 0
  %3134 = vmatpush1.bf16.msra.mxu0 %v3111
  %3135 = vmatprep.subr.bf16.mxu0 0
  %3136 = vmatpush1.bf16.msra.mxu0 %v3110
  %3137 = vmatprep.subr.bf16.mxu0 0
  %3138 = vmatpush1.bf16.msra.mxu0 %v3109
  %3139 = vmatprep.subr.bf16.mxu0 0
  %3140 = vmatpush1.bf16.msra.mxu0 %v3108
  %3141 = vmatprep.subr.bf16.mxu0 0
  %3142 = vmatpush2.bf16.msra.mxu0 0
  %3143 = vmatprep.subr.bf16.mxu0 0
  %3144 = vmatpush2.bf16.msra.mxu0 0
  %3145 = vmatprep.subr.bf16.mxu0 0
  %3146 = vmatpush2.bf16.msra.mxu0 0
  %3147 = vmatprep.subr.bf16.mxu0 0
  %3148 = vmatpush2.bf16.msra.mxu0 0
  %3149 = vmatprep.subr.bf16.mxu0 0
  %3150 = vmatpush2.bf16.msra.mxu0 0
  %3151 = vmatprep.subr.bf16.mxu0 0
  %3152 = vmatpush2.bf16.msra.mxu0 0
  %3153 = vmatprep.subr.bf16.mxu0 0
  %3154 = vmatpush2.bf16.msra.mxu0 0
  %3155 = vmatprep.subr.bf16.mxu0 0
  %3156 = vmatpush2.bf16.msra.mxu0 0
  %3157 = vmatprep.mubr.bf16.mxu0 0
  %3158 = vmatmul.mubr.bf16.gmra.mxu0 %v3117
  %v3159 = vpop.f32.mrf.mxu0
  %v3160 = vadd.f32 0.0, %v3159
  %v3161 = vpop.f32.mrf.mxu0
  %v3162 = vpop.f32.mrf.mxu0
  %v3163 = vadd.f32 0.0, %v3162
  %v3164 = vpop.f32.mrf.mxu0
  %3165 = vmatprep.mubr.bf16.mxu0 0
  %3166 = vmatmul.mubr.bf16.gmra.mxu0 %v3120
  %v3167 = vpop.f32.mrf.mxu0
  %v3168 = vadd.f32 0.0, %v3167
  %v3169 = vpop.f32.mrf.mxu0
  %v3170 = vpop.f32.mrf.mxu0
  %v3171 = vadd.f32 0.0, %v3170
  %v3172 = vpop.f32.mrf.mxu0
  %3173 = vmatprep.mubr.bf16.mxu0 0
  %3174 = vmatmul.mubr.bf16.gmra.mxu0 %v3123
  %v3175 = vpop.f32.mrf.mxu0
  %v3176 = vadd.f32 0.0, %v3175
  %v3177 = vpop.f32.mrf.mxu0
  %v3178 = vpop.f32.mrf.mxu0
  %v3179 = vadd.f32 0.0, %v3178
  %v3180 = vpop.f32.mrf.mxu0
  %3181 = vdwg.mxu0
  %v3182 = vadd.f32 %v3068, %v3160
  %v3183 = vadd.f32 %v3069, %v3163
  %v3184 = vadd.f32 %v3070, %v3168
  %v3185 = vadd.f32 %v3071, %v3171
  %v3186 = vadd.f32 %v3072, %v3176
  %v3187 = vadd.f32 %v3073, %v3179
  %v3188 = vld [vmem:[%s14] sm:$0x1]
  %v3190 = vlaneseq
  %v3191 = vshrl.u32 %v3190, 7
  %v3192 = vsub.s32 0, %v3191
  %v3193 = vrot.slane %v3188, %v3192
  %v3195 = vadd.f32 %v3182, %v3193
  %v3196 = vadd.f32 %v3183, %v3193
  %v3197 = vadd.f32 %v3184, %v3193
  %v3198 = vadd.f32 %v3185, %v3193
  %v3199 = vadd.f32 %v3186, %v3193
  %v3200 = vadd.f32 %v3187, %v3193
  %v3201 = vmax.f32 %v3195, 0.0
  %v3202 = vmax.f32 %v3196, 0.0
  %v3203 = vmax.f32 %v3197, 0.0
  %v3204 = vmax.f32 %v3198, 0.0
  %v3205 = vmax.f32 %v3199, 0.0
  %v3206 = vmax.f32 %v3200, 0.0
  %v3207 = vld [vmem:[%s15] sm:$0x1]
  %v3209 = vlaneseq
  %v3210 = vshrl.u32 %v3209, 7
  %v3211 = vsub.s32 0, %v3210
  %v3212 = vrot.slane %v3207, %v3211
  %v3214 = vmul.f32 %v3201, %v3212
  %v3215 = vmul.f32 %v3202, %v3212
  %v3216 = vmul.f32 %v3203, %v3212
  %v3217 = vmul.f32 %v3204, %v3212
  %v3218 = vmul.f32 %v3205, %v3212
  %v3219 = vmul.f32 %v3206, %v3212
  %v3220 = vld [vmem:[%s16] sm:$0x1]
  %v3222 = vlaneseq
  %v3223 = vshrl.u32 %v3222, 7
  %v3224 = vsub.s32 0, %v3223
  %v3225 = vrot.slane %v3220, %v3224
  %v3227 = vadd.f32 %v3214, %v3225
  %v3228 = vadd.f32 %v3215, %v3225
  %v3229 = vadd.f32 %v3216, %v3225
  %v3230 = vadd.f32 %v3217, %v3225
  %v3231 = vadd.f32 %v3218, %v3225
  %v3232 = vadd.f32 %v3219, %v3225
  %v3233 = vpack.c.bf16 %v3228, %v3227
  %v3234 = vpack.c.bf16 %v3230, %v3229
  %v3235 = vpack.c.bf16 %v3232, %v3231
  %v3236 = vld [vmem:[%s17] sm:$0xf]
  %v3237 = vld [vmem:[%s17 + $0x4] sm:$0xf]
  %v3238 = vld [vmem:[%s17 + $0x8] sm:$0xf]
  %v3239 = vld [vmem:[%s17 + $0xc] sm:$0xf]
  %v3240 = vld [vmem:[%s17 + $0x10] sm:$0xf]
  %v3241 = vld [vmem:[%s17 + $0x14] sm:$0xf]
  %v3242 = vld [vmem:[%s17 + $0x18] sm:$0xf]
  %v3243 = vld [vmem:[%s17 + $0x1c] sm:$0xf]
  %v3244 = vld [vmem:[%s18] sm:$0x1]
  %v3246 = vlaneseq
  %v3247 = vshrl.u32 %v3246, 7
  %v3248 = vsub.s32 0, %v3247
  %v3249 = vrot.slane %v3244, %v3248
  %v3259 = vunpack.c.l.b16 %v3236
  %v3260 = vunpack.c.l.b16 %v3237
  %v3261 = vunpack.c.l.b16 %v3238
  %v3262 = vunpack.c.l.b16 %v3239
  %v3263 = vunpack.c.l.b16 %v3240
  %v3264 = vunpack.c.l.b16 %v3241
  %v3265 = vunpack.c.l.b16 %v3242
  %v3266 = vunpack.c.l.b16 %v3243
  %v3267 = vpack.c.b16 %v3260, %v3259
  %v3268 = vpack.c.b16 %v3262, %v3261
  %v3269 = vpack.c.b16 %v3264, %v3263
  %v3270 = vpack.c.b16 %v3266, %v3265
  %v3276 = vsel %vm965, %v3233, 0
  %v3279 = vsel %vm965, %v3234, 0
  %v3282 = vsel %vm965, %v3235, 0
  %3284 = vmatprep.subr.bf16.mxu0 0
  %3285 = vmatpush1.bf16.msra.mxu0 0
  %3286 = vmatprep.subr.bf16.mxu0 0
  %3287 = vmatpush1.bf16.msra.mxu0 0
  %3288 = vmatprep.subr.bf16.mxu0 0
  %3289 = vmatpush1.bf16.msra.mxu0 0
  %3290 = vmatprep.subr.bf16.mxu0 0
  %3291 = vmatpush1.bf16.msra.mxu0 0
  %3292 = vmatprep.subr.bf16.mxu0 0
  %3293 = vmatpush1.bf16.msra.mxu0 %v3270
  %3294 = vmatprep.subr.bf16.mxu0 0
  %3295 = vmatpush1.bf16.msra.mxu0 %v3269
  %3296 = vmatprep.subr.bf16.mxu0 0
  %3297 = vmatpush1.bf16.msra.mxu0 %v3268
  %3298 = vmatprep.subr.bf16.mxu0 0
  %3299 = vmatpush1.bf16.msra.mxu0 %v3267
  %3300 = vmatprep.subr.bf16.mxu0 0
  %3301 = vmatpush2.bf16.msra.mxu0 0
  %3302 = vmatprep.subr.bf16.mxu0 0
  %3303 = vmatpush2.bf16.msra.mxu0 0
  %3304 = vmatprep.subr.bf16.mxu0 0
  %3305 = vmatpush2.bf16.msra.mxu0 0
  %3306 = vmatprep.subr.bf16.mxu0 0
  %3307 = vmatpush2.bf16.msra.mxu0 0
  %3308 = vmatprep.subr.bf16.mxu0 0
  %3309 = vmatpush2.bf16.msra.mxu0 0
  %3310 = vmatprep.subr.bf16.mxu0 0
  %3311 = vmatpush2.bf16.msra.mxu0 0
  %3312 = vmatprep.subr.bf16.mxu0 0
  %3313 = vmatpush2.bf16.msra.mxu0 0
  %3314 = vmatprep.subr.bf16.mxu0 0
  %3315 = vmatpush2.bf16.msra.mxu0 0
  %3316 = vmatprep.mubr.bf16.mxu0 0
  %3317 = vmatmul.mubr.bf16.gmra.mxu0 %v3276
  %v3318 = vpop.f32.mrf.mxu0
  %v3319 = vadd.f32 %v3249, %v3318
  %v3320 = vpop.f32.mrf.mxu0
  %v3321 = vpop.f32.mrf.mxu0
  %v3322 = vadd.f32 %v3249, %v3321
  %v3323 = vpop.f32.mrf.mxu0
  %3324 = vmatprep.mubr.bf16.mxu0 0
  %3325 = vmatmul.mubr.bf16.gmra.mxu0 %v3279
  %v3326 = vpop.f32.mrf.mxu0
  %v3327 = vadd.f32 %v3249, %v3326
  %v3328 = vpop.f32.mrf.mxu0
  %v3329 = vpop.f32.mrf.mxu0
  %v3330 = vadd.f32 %v3249, %v3329
  %v3331 = vpop.f32.mrf.mxu0
  %3332 = vmatprep.mubr.bf16.mxu0 0
  %3333 = vmatmul.mubr.bf16.gmra.mxu0 %v3282
  %v3334 = vpop.f32.mrf.mxu0
  %v3335 = vadd.f32 %v3249, %v3334
  %v3336 = vpop.f32.mrf.mxu0
  %v3337 = vpop.f32.mrf.mxu0
  %v3338 = vadd.f32 %v3249, %v3337
  %v3339 = vpop.f32.mrf.mxu0
  %3340 = vdwg.mxu0
  %v3341 = vmax.f32 %v3319, 0.0
  %v3342 = vmax.f32 %v3322, 0.0
  %v3343 = vmax.f32 %v3327, 0.0
  %v3344 = vmax.f32 %v3330, 0.0
  %v3345 = vmax.f32 %v3335, 0.0
  %v3346 = vmax.f32 %v3338, 0.0
  %v3347 = vpack.c.bf16 %v3342, %v3341
  %v3348 = vpack.c.bf16 %v3344, %v3343
  %v3349 = vpack.c.bf16 %v3346, %v3345
  %v3350 = vld [vmem:[%s19] sm:$0xf]
  %v3351 = vld [vmem:[%s19 + $0x4] sm:$0xf]
  %v3352 = vld [vmem:[%s19 + $0x8] sm:$0xf]
  %v3353 = vld [vmem:[%s19 + $0xc] sm:$0xf]
  %v3354 = vld [vmem:[%s19 + $0x10] sm:$0xf]
  %v3355 = vld [vmem:[%s19 + $0x14] sm:$0xf]
  %v3356 = vld [vmem:[%s19 + $0x18] sm:$0xf]
  %v3357 = vld [vmem:[%s19 + $0x1c] sm:$0xf]
  %v3358 = vld [vmem:[%s19 + $0x20] sm:$0xf]
  %v3359 = vld [vmem:[%s19 + $0x24] sm:$0xf]
  %v3360 = vld [vmem:[%s19 + $0x28] sm:$0xf]
  %v3361 = vld [vmem:[%s19 + $0x2c] sm:$0xf]
  %v3362 = vld [vmem:[%s19 + $0x30] sm:$0xf]
  %v3363 = vld [vmem:[%s19 + $0x34] sm:$0xf]
  %v3364 = vld [vmem:[%s19 + $0x38] sm:$0xf]
  %v3365 = vld [vmem:[%s19 + $0x3c] sm:$0x7]
  %v3366 = vld [vmem:[%s20] sm:$0x1]
  %v3368 = vlaneseq
  %v3369 = vshrl.u32 %v3368, 7
  %v3370 = vsub.s32 0, %v3369
  %v3371 = vrot.slane %v3366, %v3370
  %v3389 = vunpack.c.l.b16 %v3350
  %v3390 = vunpack.c.l.b16 %v3351
  %v3391 = vunpack.c.l.b16 %v3352
  %v3392 = vunpack.c.l.b16 %v3353
  %v3393 = vunpack.c.l.b16 %v3354
  %v3394 = vunpack.c.l.b16 %v3355
  %v3395 = vunpack.c.l.b16 %v3356
  %v3396 = vunpack.c.l.b16 %v3357
  %v3397 = vunpack.c.l.b16 %v3358
  %v3398 = vunpack.c.l.b16 %v3359
  %v3399 = vunpack.c.l.b16 %v3360
  %v3400 = vunpack.c.l.b16 %v3361
  %v3401 = vunpack.c.l.b16 %v3362
  %v3402 = vunpack.c.l.b16 %v3363
  %v3403 = vunpack.c.l.b16 %v3364
  %v3404 = vunpack.c.l.b16 %v3365
  %v3405 = vpack.c.b16 %v3390, %v3389
  %v3406 = vpack.c.b16 %v3392, %v3391
  %v3407 = vpack.c.b16 %v3394, %v3393
  %v3408 = vpack.c.b16 %v3396, %v3395
  %v3409 = vpack.c.b16 %v3398, %v3397
  %v3410 = vpack.c.b16 %v3400, %v3399
  %v3411 = vpack.c.b16 %v3402, %v3401
  %v3412 = vpack.c.b16 %v3404, %v3403
  %vm3420 = vcmask 1031168
  %v3422 = vsel %vm3420, %v3347, 0
  %v3425 = vsel %vm3420, %v3348, 0
  %v3428 = vsel %vm3420, %v3349, 0
  %vm3430 = vcmask 1046528
  %v3432 = vsel %vm3430, %v3412, 0
  %3434 = vmatprep.subr.bf16.mxu0 0
  %3435 = vmatpush1.bf16.msra.mxu0 %v3432
  %3436 = vmatprep.subr.bf16.mxu0 0
  %3437 = vmatpush1.bf16.msra.mxu0 %v3411
  %3438 = vmatprep.subr.bf16.mxu0 0
  %3439 = vmatpush1.bf16.msra.mxu0 %v3410
  %3440 = vmatprep.subr.bf16.mxu0 0
  %3441 = vmatpush1.bf16.msra.mxu0 %v3409
  %3442 = vmatprep.subr.bf16.mxu0 0
  %3443 = vmatpush1.bf16.msra.mxu0 %v3408
  %3444 = vmatprep.subr.bf16.mxu0 0
  %3445 = vmatpush1.bf16.msra.mxu0 %v3407
  %3446 = vmatprep.subr.bf16.mxu0 0
  %3447 = vmatpush1.bf16.msra.mxu0 %v3406
  %3448 = vmatprep.subr.bf16.mxu0 0
  %3449 = vmatpush1.bf16.msra.mxu0 %v3405
  %3450 = vmatprep.subr.bf16.mxu0 0
  %3451 = vmatpush2.bf16.msra.mxu0 0
  %3452 = vmatprep.subr.bf16.mxu0 0
  %3453 = vmatpush2.bf16.msra.mxu0 0
  %3454 = vmatprep.subr.bf16.mxu0 0
  %3455 = vmatpush2.bf16.msra.mxu0 0
  %3456 = vmatprep.subr.bf16.mxu0 0
  %3457 = vmatpush2.bf16.msra.mxu0 0
  %3458 = vmatprep.subr.bf16.mxu0 0
  %3459 = vmatpush2.bf16.msra.mxu0 0
  %3460 = vmatprep.subr.bf16.mxu0 0
  %3461 = vmatpush2.bf16.msra.mxu0 0
  %3462 = vmatprep.subr.bf16.mxu0 0
  %3463 = vmatpush2.bf16.msra.mxu0 0
  %3464 = vmatprep.subr.bf16.mxu0 0
  %3465 = vmatpush2.bf16.msra.mxu0 0
  %3466 = vmatprep.mubr.bf16.mxu0 0
  %3467 = vmatmul.mubr.bf16.gmra.mxu0 %v3422
  %v3468 = vpop.f32.mrf.mxu0
  %v3469 = vadd.f32 %v3371, %v3468
  %v3470 = vpop.f32.mrf.mxu0
  %v3471 = vpop.f32.mrf.mxu0
  %v3472 = vadd.f32 %v3371, %v3471
  %v3473 = vpop.f32.mrf.mxu0
  %3474 = vmatprep.mubr.bf16.mxu0 0
  %3475 = vmatmul.mubr.bf16.gmra.mxu0 %v3425
  %v3476 = vpop.f32.mrf.mxu0
  %v3477 = vpop.f32.mrf.mxu0
  %v3478 = vpop.f32.mrf.mxu0
  %v3479 = vadd.f32 %v3371, %v3478
  %v3480 = vpop.f32.mrf.mxu0
  %3481 = vmatprep.mubr.bf16.mxu0 0
  %3482 = vmatmul.mubr.bf16.gmra.mxu0 %v3428
  %v3483 = vpop.f32.mrf.mxu0
  %v3484 = vadd.f32 %v3371, %v3483
  %v3485 = vpop.f32.mrf.mxu0
  %v3486 = vpop.f32.mrf.mxu0
  %v3487 = vadd.f32 %v3371, %v3486
  %v3488 = vpop.f32.mrf.mxu0
  %3489 = vdwg.mxu0
  %vm3490 = vcmask 64512
  %v3491 = vsel %vm3490, %v3469, -inf
  %3492 = vmax.xlane.f32.xlu0 %v3491
  %v3493 = vpop.xlane.xlu0 %3492
  %v3494 = vsel %vm3490, %v3472, -inf
  %3495 = vmax.xlane.f32.xlu0 %v3494
  %v3496 = vpop.xlane.xlu0 %3495
  %v3497 = vsel %vm3490, %v3479, -inf
  %3498 = vmax.xlane.f32.xlu0 %v3497
  %v3499 = vpop.xlane.xlu0 %3498
  %v3500 = vsel %vm3490, %v3484, -inf
  %3501 = vmax.xlane.f32.xlu0 %v3500
  %v3502 = vpop.xlane.xlu0 %3501
  %vm3503 = vcmask 58368
  %v3504 = vsel %vm3503, %v3487, -inf
  %3505 = vmax.xlane.f32.xlu0 %v3504
  %v3506 = vpop.xlane.xlu0 %3505
  %v3507 = vsub.f32 %v3469, %v3493
  %v3508 = vsub.f32 %v3472, %v3496
  %v3509 = vsub.f32 %v3479, %v3499
  %v3510 = vsub.f32 %v3484, %v3502
  %v3511 = vsub.f32 %v3487, %v3506
  %v3512 = vmul.f32 %v3507, 1.442695
  %v3513 = vpow.pop %v3512
  %v3514 = vmul.f32 %v3508, 1.442695
  %v3515 = vpow.pop %v3514
  %v3516 = vmul.f32 %v3509, 1.442695
  %v3517 = vpow.pop %v3516
  %v3518 = vmul.f32 %v3510, 1.442695
  %v3519 = vpow.pop %v3518
  %v3520 = vmul.f32 %v3511, 1.442695
  %v3521 = vpow.pop %v3520
  %v3522 = vsel %vm3490, %v3513, 0.0
  %3523 = vadd.xlane.f32.xlu0 %v3522
  %v3524 = vpop.xlane.xlu0 %3523
  %v3525 = vsel %vm3490, %v3515, 0.0
  %3526 = vadd.xlane.f32.xlu0 %v3525
  %v3527 = vpop.xlane.xlu0 %3526
  %v3528 = vsel %vm3490, %v3517, 0.0
  %3529 = vadd.xlane.f32.xlu0 %v3528
  %v3530 = vpop.xlane.xlu0 %3529
  %v3531 = vsel %vm3490, %v3519, 0.0
  %3532 = vadd.xlane.f32.xlu0 %v3531
  %v3533 = vpop.xlane.xlu0 %3532
  %v3534 = vsel %vm3503, %v3521, 0.0
  %3535 = vadd.xlane.f32.xlu0 %v3534
  %v3536 = vpop.xlane.xlu0 %3535
  %v3537 = vrcp.pop %v3524
  %v3538 = vrcp.pop %v3527
  %v3539 = vrcp.pop %v3530
  %v3540 = vrcp.pop %v3533
  %v3541 = vrcp.pop %v3536
  %v3542 = vmul.f32 %v3513, %v3537
  %v3543 = vmul.f32 %v3515, %v3538
  %v3544 = vmul.f32 %v3517, %v3539
  %v3545 = vmul.f32 %v3519, %v3540
  %v3546 = vmul.f32 %v3521, %v3541
  %3547 = vst.msk [vmem:[%s21] sm:$0xff] %vm3490, %v3542
  %3548 = vst.msk [vmem:[%s21 + $0x8] sm:$0xff] %vm3490, %v3543
  %vm3549 = vcmask 64514
  %3550 = vst.msk [vmem:[%s21 + $0xe] sm:$0xfc] %vm3549, %v3544
  %3551 = vst.msk [vmem:[%s21 + $0x16] sm:$0xff] %vm3490, %v3545
  %3552 = vst.msk [vmem:[%s21 + $0x1e] sm:$0x3] %vm3503, %v3546
  // Predicated region
  $region86: #{model_forward.1} parent=0 // pred_check
    _
  $region87: #{model_forward.1} parent=0 // pred_check_branch
    %3554 = sbr.rel (0) target = $region89
  $region88: #{model_forward.1} parent=0 // pred_region
    _
  $region89: #{model_forward.1} parent=0 // pred_fallthru
    _
  // Predicated region
  $region90: #{model_forward.1} parent=0 // pred_check
    _
  $region91: #{model_forward.1} parent=0 // pred_check_branch
    %3556 = sbr.rel (0) target = $region93
  $region92: #{model_forward.1} parent=0 // pred_region
    _
  $region93: #{model_forward.1} parent=0 // pred_fallthru
    _

</llo_original>
